<compile_context>
chip_gen: v6e
topology: v6e:2x2x1
jax: 0.10.0
libtpu: 0.0.40
codegen_flags: <defaults>
</compile_context>

<pallas_src>
import functools

import jax
import jax.numpy as jnp
from jax import lax
from jax.experimental import pallas as pl
from jax.experimental.pallas import tpu as pltpu  # noqa: F401  (TPU backend)


# --------------------------------------------------------------------------
# Fused Pallas kernel (whole forward pass, one invocation, no grid)
# --------------------------------------------------------------------------
def _conv_bn_relu_pool(x, w2d, shift, *, K, pad):
    """One conv block on a single batch element, entirely on values in vregs.

    x     : (C_in, L) f32
    w2d   : (C_out, K*C_in) f32  -- Conv1d weight with BN scale folded in,
                                    flattened so column index = k*C_in + c
    shift : (C_out, 1) f32       -- folded BN shift
    Returns (C_out, L_pool) after Conv1d(stride=1, padding=pad, bias=False)
    -> BatchNorm1d(eval) -> ReLU -> MaxPool1d(kernel=2, stride=2, padding=1).
    """
    C_in, L = x.shape
    L_pad = L + 2 * pad
    L_conv = L_pad - K + 1
    L_pool = L_conv // 2 + 1

    zpad = jnp.zeros((C_in, pad), x.dtype)
    xp = jnp.concatenate([zpad, x, zpad], axis=1)                    # (C_in, L_pad)

    # im2col: one MXU matmul with contraction dim K*C_in (32 / 256 / 512).
    cols = jnp.concatenate([xp[:, k:k + L_conv] for k in range(K)], axis=0)
    y = jnp.dot(w2d, cols, preferred_element_type=jnp.float32) + shift
    y = jnp.maximum(y, 0.0)                                          # ReLU

    # MaxPool1d(2, 2, padding=1): window j covers input indices {2j-1, 2j}.
    # Out-of-range taps are pool padding; because the preceding ReLU makes every
    # value >= 0, a zero stand-in is equivalent to the -inf pool padding.
    # NOTE: this shortcut breaks if the activation before the pool can go < 0.
    zero_col = jnp.zeros((y.shape[0], 1), y.dtype)
    parts = []
    for j in range(L_pool):
        left = y[:, 2 * j - 1:2 * j] if 2 * j - 1 >= 0 else zero_col
        right = y[:, 2 * j:2 * j + 1] if 2 * j < L_conv else zero_col
        parts.append(jnp.maximum(left, right))
    return jnp.concatenate(parts, axis=1)                            # (C_out, L_pool)


def _tfc_fused_kernel(x_ref,
                      w1_ref, t1_ref, w2_ref, t2_ref, w3_ref, t3_ref,
                      dw1_ref, db1_ref, dw2_ref, db2_ref,
                      h_ref, z_ref, *, layer_kp):
    """Fused 3x conv block + dense head.  No grid; tiny batch unrolled in-kernel."""
    B = x_ref.shape[0]
    conv_w = (w1_ref[...], w2_ref[...], w3_ref[...])   # weights loaded once, reused per batch
    conv_t = (t1_ref[...], t2_ref[...], t3_ref[...])

    h_rows = []
    for b in range(B):                                  # B is tiny & static -> unroll
        xb = x_ref[b]                                   # (C_in, L)
        for (K, pad), w2d, shift in zip(layer_kp, conv_w, conv_t):
            xb = _conv_bn_relu_pool(xb, w2d, shift, K=K, pad=pad)
        C_out, L_pool = xb.shape
        # torch .reshape(B, -1): h[b, c*L_pool + l] = x[b, c, l]
        h_rows.append(jnp.concatenate([xb[c:c + 1, :] for c in range(C_out)],
                                      axis=1))          # (1, C_out*L_pool)
    h = jnp.concatenate(h_rows, axis=0)                 # (B, F)
    h_ref[...] = h

    # Dense head: Linear -> BN(eval, folded into dw1/db1) -> ReLU -> Linear.
    a = jnp.dot(h, dw1_ref[...], preferred_element_type=jnp.float32) + db1_ref[...]
    a = jnp.maximum(a, 0.0)
    z_ref[...] = jnp.dot(a, dw2_ref[...],
                         preferred_element_type=jnp.float32) + db2_ref[...]


# --------------------------------------------------------------------------
# Wrappers: one-time parameter prep + single pallas_call
# --------------------------------------------------------------------------
def _fold_bn(gamma, beta, mean, var, eps=1e-5):
    s = gamma / jnp.sqrt(var + eps)
    return s, beta - mean * s


def prepare_params(p, cfg):
    """One-time prep: fold BN(eval) scale into weights, reshape for im2col."""
    del cfg
    out = {}
    for i, (wk, bnk) in enumerate((("w1", "bn1"), ("w2", "bn2"), ("w3", "bn3")), 1):
        s, t = _fold_bn(*p[bnk])
        w = p[wk] * s[:, None, None]                    # fold BN scale into conv weight
        C_out, C_in, K = w.shape
        # flatten so column index = k*C_in + c  (matches in-kernel im2col stacking)
        out[f"w{i}"] = jnp.transpose(w, (0, 2, 1)).reshape(C_out, K * C_in).astype(jnp.float32)
        out[f"t{i}"] = t.reshape(C_out, 1).astype(jnp.float32)
    sd, td = _fold_bn(*p["bnd"])
    out["dw1"] = (jnp.transpose(p["lw1"]) * sd[None, :]).astype(jnp.float32)   # (F, 256)
    out["db1"] = (p["lb1"] * sd + td).reshape(1, -1).astype(jnp.float32)
    out["dw2"] = jnp.transpose(p["lw2"]).astype(jnp.float32)                   # (256, 128)
    out["db2"] = p["lb2"].reshape(1, -1).astype(jnp.float32)
    return out


def _pooled_len(L, K, pad):
    return (L + 2 * pad - K + 1) // 2 + 1


def tfc_forward(x_in_t, prep, cfg):
    """Reproduces TFC.forward(x_in_t, pretrain=False) -> (h, z)."""
    B, _, L = x_in_t.shape
    K1 = cfg["kernel_size"]
    layer_kp = ((K1, K1 // 2), (8, 4), (8, 4))
    Lp = L
    for K, pad in layer_kp:
        Lp = _pooled_len(Lp, K, pad)
    F = cfg["final_out_channels"] * Lp
    assert F == cfg["final_out_channels"] * cfg["CNNoutput_channel"]
    H2 = prep["db2"].shape[1]

    kern = functools.partial(_tfc_fused_kernel, layer_kp=layer_kp)
    h, z = pl.pallas_call(
        kern,
        out_shape=(jax.ShapeDtypeStruct((B, F), jnp.float32),
                   jax.ShapeDtypeStruct((B, H2), jnp.float32)),
    )(x_in_t,
      prep["w1"], prep["t1"], prep["w2"], prep["t2"], prep["w3"], prep["t3"],
      prep["dw1"], prep["db1"], prep["dw2"], prep["db2"])
    return h, z


# --------------------------------------------------------------------------
# Pure-JAX reference (correctness check only)
# --------------------------------------------------------------------------
def _ref_conv_block(x, w, scale, shift, pad):
    y = lax.conv_general_dilated(x, w, (1,), [(pad, pad)],
                                 dimension_numbers=("NCH", "OIH", "NCH"),
                                 precision=lax.Precision.HIGHEST)
    y = y * scale[None, :, None] + shift[None, :, None]
    y = jnp.maximum(y, 0.0)
    y = lax.reduce_window(y, -jnp.inf, lax.max, (1, 1, 2), (1, 1, 2),
                          [(0, 0), (0, 0), (1, 1)])
    return y


def _ref_forward(x_in_t, p, cfg):
    s1, t1 = _fold_bn(*p["bn1"])
    s2, t2 = _fold_bn(*p["bn2"])
    s3, t3 = _fold_bn(*p["bn3"])
    sd, td = _fold_bn(*p["bnd"])
    x = _ref_conv_block(x_in_t, p["w1"], s1, t1, cfg["kernel_size"] // 2)
    x = _ref_conv_block(x, p["w2"], s2, t2, 4)
    x = _ref_conv_block(x, p["w3"], s3, t3, 4)
    h = x.reshape(x.shape[0], -1)
    a = jnp.dot(h, p["lw1"].T, precision=lax.Precision.HIGHEST) + p["lb1"]
    a = jnp.maximum(a * sd + td, 0.0)
    z = jnp.dot(a, p["lw2"].T, precision=lax.Precision.HIGHEST) + p["lb2"]
    return h, z


# --------------------------------------------------------------------------
# Parameter construction + run
# --------------------------------------------------------------------------
def make_params(key, cfg):
    ks = jax.random.split(key, 12)

    def bn_params(k, c):
        k1, k2, k3, k4 = jax.random.split(k, 4)
        gamma = 1.0 + 0.1 * jax.random.normal(k1, (c,), jnp.float32)
        beta = 0.1 * jax.random.normal(k2, (c,), jnp.float32)
        mean = 0.1 * jax.random.normal(k3, (c,), jnp.float32)
        var = 0.5 + jnp.abs(jax.random.normal(k4, (c,), jnp.float32))
        return (gamma, beta, mean, var)

    c_in, K = cfg["input_channels"], cfg["kernel_size"]
    fo = cfg["final_out_channels"]
    feat = cfg["CNNoutput_channel"] * fo
    p = {
        "w1": 0.05 * jax.random.normal(ks[0], (32, c_in, K), jnp.float32),
        "w2": 0.05 * jax.random.normal(ks[1], (64, 32, 8), jnp.float32),
        "w3": 0.05 * jax.random.normal(ks[2], (fo, 64, 8), jnp.float32),
        "bn1": bn_params(ks[3], 32),
        "bn2": bn_params(ks[4], 64),
        "bn3": bn_params(ks[5], fo),
        "lw1": 0.05 * jax.random.normal(ks[6], (256, feat), jnp.float32),
        "lb1": 0.05 * jax.random.normal(ks[7], (256,), jnp.float32),
        "bnd": bn_params(ks[8], 256),
        "lw2": 0.05 * jax.random.normal(ks[9], (128, 256), jnp.float32),
        "lb2": 0.05 * jax.random.normal(ks[10], (128,), jnp.float32),
    }
    return p


if __name__ == "__main__":
    # configs: input_channels=4, kernel_size=8, stride=1, dropout=0.35,
    #          final_out_channels=16, CNNoutput_channel=4 ; seq_len=16, batch=2.
    cfg = dict(input_channels=4, kernel_size=8, stride=1,
               final_out_channels=16, CNNoutput_channel=4)
    B, L = 2, 16

    key = jax.random.PRNGKey(0)
    k_x, k_p = jax.random.split(key)
    x_in_t = jax.random.normal(k_x, (B, cfg["input_channels"], L), jnp.float32)
    params = make_params(k_p, cfg)

    # One-time parameter prep (BN folding, im2col weight reshapes) — outside hot path.
    prep = prepare_params(params, cfg)
    fwd = jax.jit(lambda x: tfc_forward(x, prep, cfg))

    h, z = fwd(x_in_t)
    h = jax.block_until_ready(h)
    z = jax.block_until_ready(z)

    # correctness check against a pure-JAX reference
    h_ref, z_ref = _ref_forward(x_in_t, params, cfg)
    assert h.shape == (B, cfg["CNNoutput_channel"] * cfg["final_out_channels"])
    assert z.shape == (B, 128)
    assert jnp.allclose(h, h_ref, rtol=2e-3, atol=2e-3)
    assert jnp.allclose(z, z_ref, rtol=2e-3, atol=2e-3)

    print("KERNEL_OK")
</pallas_src>

<mosaic_0001>
module attributes {stable_mosaic.version = 11 : i64} {
  func.func @_tfc_fused_kernel(%arg0: memref<2x4x16xf32, #tpu.memory_space<vmem>>, %arg1: memref<32x32xf32, #tpu.memory_space<vmem>>, %arg2: memref<32x1xf32, #tpu.memory_space<vmem>>, %arg3: memref<64x256xf32, #tpu.memory_space<vmem>>, %arg4: memref<64x1xf32, #tpu.memory_space<vmem>>, %arg5: memref<16x512xf32, #tpu.memory_space<vmem>>, %arg6: memref<16x1xf32, #tpu.memory_space<vmem>>, %arg7: memref<64x256xf32, #tpu.memory_space<vmem>>, %arg8: memref<1x256xf32, #tpu.memory_space<vmem>>, %arg9: memref<256x128xf32, #tpu.memory_space<vmem>>, %arg10: memref<1x128xf32, #tpu.memory_space<vmem>>, %arg11: memref<2x64xf32, #tpu.memory_space<vmem>>, %arg12: memref<2x128xf32, #tpu.memory_space<vmem>>) attributes {dimension_semantics = [], scalar_prefetch = 0 : i64, scratch_operands = 0 : i64, tpu.core_type = #tpu.core_type<tc>} {
    %c0 = arith.constant 0 : index
    %c0_0 = arith.constant 0 : index
    %0 = vector.load %arg1[%c0, %c0_0] : memref<32x32xf32, #tpu.memory_space<vmem>>, vector<32x32xf32>
    %c0_1 = arith.constant 0 : index
    %c0_2 = arith.constant 0 : index
    %1 = vector.load %arg3[%c0_1, %c0_2] : memref<64x256xf32, #tpu.memory_space<vmem>>, vector<64x256xf32>
    %c0_3 = arith.constant 0 : index
    %c0_4 = arith.constant 0 : index
    %2 = vector.load %arg5[%c0_3, %c0_4] : memref<16x512xf32, #tpu.memory_space<vmem>>, vector<16x512xf32>
    %c0_5 = arith.constant 0 : index
    %c0_6 = arith.constant 0 : index
    %3 = vector.load %arg2[%c0_5, %c0_6] : memref<32x1xf32, #tpu.memory_space<vmem>>, vector<32x1xf32>
    %c0_7 = arith.constant 0 : index
    %c0_8 = arith.constant 0 : index
    %4 = vector.load %arg4[%c0_7, %c0_8] : memref<64x1xf32, #tpu.memory_space<vmem>>, vector<64x1xf32>
    %c0_9 = arith.constant 0 : index
    %c0_10 = arith.constant 0 : index
    %5 = vector.load %arg6[%c0_9, %c0_10] : memref<16x1xf32, #tpu.memory_space<vmem>>, vector<16x1xf32>
    %c0_11 = arith.constant 0 : index
    %c0_12 = arith.constant 0 : index
    %c0_13 = arith.constant 0 : index
    %6 = vector.load %arg0[%c0_11, %c0_12, %c0_13] : memref<2x4x16xf32, #tpu.memory_space<vmem>>, vector<1x4x16xf32>
    %7 = vector.shape_cast %6 : vector<1x4x16xf32> to vector<4x16xf32>
    %cst = arith.constant 0.000000e+00 : f32
    %8 = vector.broadcast %cst : f32 to vector<4x4xf32>
    %9 = tpu.concatenate %8, %7, %8 in 1 : vector<4x4xf32>, vector<4x16xf32>, vector<4x4xf32> -> vector<4x24xf32>
    %10 = vector.extract_strided_slice %9 {offsets = [0, 0], sizes = [4, 17], strides = [1, 1]} : vector<4x24xf32> to vector<4x17xf32>
    %11 = vector.extract_strided_slice %9 {offsets = [0, 1], sizes = [4, 17], strides = [1, 1]} : vector<4x24xf32> to vector<4x17xf32>
    %12 = vector.extract_strided_slice %9 {offsets = [0, 2], sizes = [4, 17], strides = [1, 1]} : vector<4x24xf32> to vector<4x17xf32>
    %13 = vector.extract_strided_slice %9 {offsets = [0, 3], sizes = [4, 17], strides = [1, 1]} : vector<4x24xf32> to vector<4x17xf32>
    %14 = vector.extract_strided_slice %9 {offsets = [0, 4], sizes = [4, 17], strides = [1, 1]} : vector<4x24xf32> to vector<4x17xf32>
    %15 = vector.extract_strided_slice %9 {offsets = [0, 5], sizes = [4, 17], strides = [1, 1]} : vector<4x24xf32> to vector<4x17xf32>
    %16 = vector.extract_strided_slice %9 {offsets = [0, 6], sizes = [4, 17], strides = [1, 1]} : vector<4x24xf32> to vector<4x17xf32>
    %17 = vector.extract_strided_slice %9 {offsets = [0, 7], sizes = [4, 17], strides = [1, 1]} : vector<4x24xf32> to vector<4x17xf32>
    %18 = tpu.concatenate %10, %11, %12, %13, %14, %15, %16, %17 in 0 : vector<4x17xf32>, vector<4x17xf32>, vector<4x17xf32>, vector<4x17xf32>, vector<4x17xf32>, vector<4x17xf32>, vector<4x17xf32>, vector<4x17xf32> -> vector<32x17xf32>
    %cst_14 = arith.constant dense<0.000000e+00> : vector<32x17xf32>
    %19 = tpu.matmul %0, %18, %cst_14 {dimension_numbers = #tpu.dot_dimension_numbers<[1], [0], [0], [1], [0, 0, 1, 1], [], []>} : vector<32x32xf32>, vector<32x17xf32>, vector<32x17xf32> -> vector<32x17xf32>
    %20 = vector.broadcast %3 : vector<32x1xf32> to vector<32x17xf32>
    %21 = arith.addf %19, %20 : vector<32x17xf32>
    %cst_15 = arith.constant 0.000000e+00 : f32
    %22 = vector.broadcast %cst_15 : f32 to vector<32x17xf32>
    %23 = arith.maximumf %21, %22 : vector<32x17xf32>
    %cst_16 = arith.constant 0.000000e+00 : f32
    %24 = vector.broadcast %cst_16 : f32 to vector<32x1xf32>
    %25 = vector.extract_strided_slice %23 {offsets = [0, 0], sizes = [32, 1], strides = [1, 1]} : vector<32x17xf32> to vector<32x1xf32>
    %26 = arith.maximumf %24, %25 : vector<32x1xf32>
    %27 = vector.extract_strided_slice %23 {offsets = [0, 1], sizes = [32, 1], strides = [1, 1]} : vector<32x17xf32> to vector<32x1xf32>
    %28 = vector.extract_strided_slice %23 {offsets = [0, 2], sizes = [32, 1], strides = [1, 1]} : vector<32x17xf32> to vector<32x1xf32>
    %29 = arith.maximumf %27, %28 : vector<32x1xf32>
    %30 = vector.extract_strided_slice %23 {offsets = [0, 3], sizes = [32, 1], strides = [1, 1]} : vector<32x17xf32> to vector<32x1xf32>
    %31 = vector.extract_strided_slice %23 {offsets = [0, 4], sizes = [32, 1], strides = [1, 1]} : vector<32x17xf32> to vector<32x1xf32>
    %32 = arith.maximumf %30, %31 : vector<32x1xf32>
    %33 = vector.extract_strided_slice %23 {offsets = [0, 5], sizes = [32, 1], strides = [1, 1]} : vector<32x17xf32> to vector<32x1xf32>
    %34 = vector.extract_strided_slice %23 {offsets = [0, 6], sizes = [32, 1], strides = [1, 1]} : vector<32x17xf32> to vector<32x1xf32>
    %35 = arith.maximumf %33, %34 : vector<32x1xf32>
    %36 = vector.extract_strided_slice %23 {offsets = [0, 7], sizes = [32, 1], strides = [1, 1]} : vector<32x17xf32> to vector<32x1xf32>
    %37 = vector.extract_strided_slice %23 {offsets = [0, 8], sizes = [32, 1], strides = [1, 1]} : vector<32x17xf32> to vector<32x1xf32>
    %38 = arith.maximumf %36, %37 : vector<32x1xf32>
    %39 = vector.extract_strided_slice %23 {offsets = [0, 9], sizes = [32, 1], strides = [1, 1]} : vector<32x17xf32> to vector<32x1xf32>
    %40 = vector.extract_strided_slice %23 {offsets = [0, 10], sizes = [32, 1], strides = [1, 1]} : vector<32x17xf32> to vector<32x1xf32>
    %41 = arith.maximumf %39, %40 : vector<32x1xf32>
    %42 = vector.extract_strided_slice %23 {offsets = [0, 11], sizes = [32, 1], strides = [1, 1]} : vector<32x17xf32> to vector<32x1xf32>
    %43 = vector.extract_strided_slice %23 {offsets = [0, 12], sizes = [32, 1], strides = [1, 1]} : vector<32x17xf32> to vector<32x1xf32>
    %44 = arith.maximumf %42, %43 : vector<32x1xf32>
    %45 = vector.extract_strided_slice %23 {offsets = [0, 13], sizes = [32, 1], strides = [1, 1]} : vector<32x17xf32> to vector<32x1xf32>
    %46 = vector.extract_strided_slice %23 {offsets = [0, 14], sizes = [32, 1], strides = [1, 1]} : vector<32x17xf32> to vector<32x1xf32>
    %47 = arith.maximumf %45, %46 : vector<32x1xf32>
    %48 = vector.extract_strided_slice %23 {offsets = [0, 15], sizes = [32, 1], strides = [1, 1]} : vector<32x17xf32> to vector<32x1xf32>
    %49 = vector.extract_strided_slice %23 {offsets = [0, 16], sizes = [32, 1], strides = [1, 1]} : vector<32x17xf32> to vector<32x1xf32>
    %50 = arith.maximumf %48, %49 : vector<32x1xf32>
    %51 = tpu.concatenate %26, %29, %32, %35, %38, %41, %44, %47, %50 in 1 : vector<32x1xf32>, vector<32x1xf32>, vector<32x1xf32>, vector<32x1xf32>, vector<32x1xf32>, vector<32x1xf32>, vector<32x1xf32>, vector<32x1xf32>, vector<32x1xf32> -> vector<32x9xf32>
    %cst_17 = arith.constant 0.000000e+00 : f32
    %52 = vector.broadcast %cst_17 : f32 to vector<32x4xf32>
    %53 = tpu.concatenate %52, %51, %52 in 1 : vector<32x4xf32>, vector<32x9xf32>, vector<32x4xf32> -> vector<32x17xf32>
    %54 = vector.extract_strided_slice %53 {offsets = [0, 0], sizes = [32, 10], strides = [1, 1]} : vector<32x17xf32> to vector<32x10xf32>
    %55 = vector.extract_strided_slice %53 {offsets = [0, 1], sizes = [32, 10], strides = [1, 1]} : vector<32x17xf32> to vector<32x10xf32>
    %56 = vector.extract_strided_slice %53 {offsets = [0, 2], sizes = [32, 10], strides = [1, 1]} : vector<32x17xf32> to vector<32x10xf32>
    %57 = vector.extract_strided_slice %53 {offsets = [0, 3], sizes = [32, 10], strides = [1, 1]} : vector<32x17xf32> to vector<32x10xf32>
    %58 = vector.extract_strided_slice %53 {offsets = [0, 4], sizes = [32, 10], strides = [1, 1]} : vector<32x17xf32> to vector<32x10xf32>
    %59 = vector.extract_strided_slice %53 {offsets = [0, 5], sizes = [32, 10], strides = [1, 1]} : vector<32x17xf32> to vector<32x10xf32>
    %60 = vector.extract_strided_slice %53 {offsets = [0, 6], sizes = [32, 10], strides = [1, 1]} : vector<32x17xf32> to vector<32x10xf32>
    %61 = vector.extract_strided_slice %53 {offsets = [0, 7], sizes = [32, 10], strides = [1, 1]} : vector<32x17xf32> to vector<32x10xf32>
    %62 = tpu.concatenate %54, %55, %56, %57, %58, %59, %60, %61 in 0 : vector<32x10xf32>, vector<32x10xf32>, vector<32x10xf32>, vector<32x10xf32>, vector<32x10xf32>, vector<32x10xf32>, vector<32x10xf32>, vector<32x10xf32> -> vector<256x10xf32>
    %cst_18 = arith.constant dense<0.000000e+00> : vector<64x10xf32>
    %63 = tpu.matmul %1, %62, %cst_18 {dimension_numbers = #tpu.dot_dimension_numbers<[1], [0], [0], [1], [0, 0, 1, 1], [], []>} : vector<64x256xf32>, vector<256x10xf32>, vector<64x10xf32> -> vector<64x10xf32>
    %64 = vector.broadcast %4 : vector<64x1xf32> to vector<64x10xf32>
    %65 = arith.addf %63, %64 : vector<64x10xf32>
    %cst_19 = arith.constant 0.000000e+00 : f32
    %66 = vector.broadcast %cst_19 : f32 to vector<64x10xf32>
    %67 = arith.maximumf %65, %66 : vector<64x10xf32>
    %cst_20 = arith.constant 0.000000e+00 : f32
    %68 = vector.broadcast %cst_20 : f32 to vector<64x1xf32>
    %69 = vector.extract_strided_slice %67 {offsets = [0, 0], sizes = [64, 1], strides = [1, 1]} : vector<64x10xf32> to vector<64x1xf32>
    %70 = arith.maximumf %68, %69 : vector<64x1xf32>
    %71 = vector.extract_strided_slice %67 {offsets = [0, 1], sizes = [64, 1], strides = [1, 1]} : vector<64x10xf32> to vector<64x1xf32>
    %72 = vector.extract_strided_slice %67 {offsets = [0, 2], sizes = [64, 1], strides = [1, 1]} : vector<64x10xf32> to vector<64x1xf32>
    %73 = arith.maximumf %71, %72 : vector<64x1xf32>
    %74 = vector.extract_strided_slice %67 {offsets = [0, 3], sizes = [64, 1], strides = [1, 1]} : vector<64x10xf32> to vector<64x1xf32>
    %75 = vector.extract_strided_slice %67 {offsets = [0, 4], sizes = [64, 1], strides = [1, 1]} : vector<64x10xf32> to vector<64x1xf32>
    %76 = arith.maximumf %74, %75 : vector<64x1xf32>
    %77 = vector.extract_strided_slice %67 {offsets = [0, 5], sizes = [64, 1], strides = [1, 1]} : vector<64x10xf32> to vector<64x1xf32>
    %78 = vector.extract_strided_slice %67 {offsets = [0, 6], sizes = [64, 1], strides = [1, 1]} : vector<64x10xf32> to vector<64x1xf32>
    %79 = arith.maximumf %77, %78 : vector<64x1xf32>
    %80 = vector.extract_strided_slice %67 {offsets = [0, 7], sizes = [64, 1], strides = [1, 1]} : vector<64x10xf32> to vector<64x1xf32>
    %81 = vector.extract_strided_slice %67 {offsets = [0, 8], sizes = [64, 1], strides = [1, 1]} : vector<64x10xf32> to vector<64x1xf32>
    %82 = arith.maximumf %80, %81 : vector<64x1xf32>
    %83 = vector.extract_strided_slice %67 {offsets = [0, 9], sizes = [64, 1], strides = [1, 1]} : vector<64x10xf32> to vector<64x1xf32>
    %84 = arith.maximumf %83, %68 : vector<64x1xf32>
    %85 = tpu.concatenate %70, %73, %76, %79, %82, %84 in 1 : vector<64x1xf32>, vector<64x1xf32>, vector<64x1xf32>, vector<64x1xf32>, vector<64x1xf32>, vector<64x1xf32> -> vector<64x6xf32>
    %cst_21 = arith.constant 0.000000e+00 : f32
    %86 = vector.broadcast %cst_21 : f32 to vector<64x4xf32>
    %87 = tpu.concatenate %86, %85, %86 in 1 : vector<64x4xf32>, vector<64x6xf32>, vector<64x4xf32> -> vector<64x14xf32>
    %88 = vector.extract_strided_slice %87 {offsets = [0, 0], sizes = [64, 7], strides = [1, 1]} : vector<64x14xf32> to vector<64x7xf32>
    %89 = vector.extract_strided_slice %87 {offsets = [0, 1], sizes = [64, 7], strides = [1, 1]} : vector<64x14xf32> to vector<64x7xf32>
    %90 = vector.extract_strided_slice %87 {offsets = [0, 2], sizes = [64, 7], strides = [1, 1]} : vector<64x14xf32> to vector<64x7xf32>
    %91 = vector.extract_strided_slice %87 {offsets = [0, 3], sizes = [64, 7], strides = [1, 1]} : vector<64x14xf32> to vector<64x7xf32>
    %92 = vector.extract_strided_slice %87 {offsets = [0, 4], sizes = [64, 7], strides = [1, 1]} : vector<64x14xf32> to vector<64x7xf32>
    %93 = vector.extract_strided_slice %87 {offsets = [0, 5], sizes = [64, 7], strides = [1, 1]} : vector<64x14xf32> to vector<64x7xf32>
    %94 = vector.extract_strided_slice %87 {offsets = [0, 6], sizes = [64, 7], strides = [1, 1]} : vector<64x14xf32> to vector<64x7xf32>
    %95 = vector.extract_strided_slice %87 {offsets = [0, 7], sizes = [64, 7], strides = [1, 1]} : vector<64x14xf32> to vector<64x7xf32>
    %96 = tpu.concatenate %88, %89, %90, %91, %92, %93, %94, %95 in 0 : vector<64x7xf32>, vector<64x7xf32>, vector<64x7xf32>, vector<64x7xf32>, vector<64x7xf32>, vector<64x7xf32>, vector<64x7xf32>, vector<64x7xf32> -> vector<512x7xf32>
    %cst_22 = arith.constant dense<0.000000e+00> : vector<16x7xf32>
    %97 = tpu.matmul %2, %96, %cst_22 {dimension_numbers = #tpu.dot_dimension_numbers<[1], [0], [0], [1], [0, 0, 1, 1], [], []>} : vector<16x512xf32>, vector<512x7xf32>, vector<16x7xf32> -> vector<16x7xf32>
    %98 = vector.broadcast %5 : vector<16x1xf32> to vector<16x7xf32>
    %99 = arith.addf %97, %98 : vector<16x7xf32>
    %cst_23 = arith.constant 0.000000e+00 : f32
    %100 = vector.broadcast %cst_23 : f32 to vector<16x7xf32>
    %101 = arith.maximumf %99, %100 : vector<16x7xf32>
    %cst_24 = arith.constant 0.000000e+00 : f32
    %102 = vector.broadcast %cst_24 : f32 to vector<16x1xf32>
    %103 = vector.extract_strided_slice %101 {offsets = [0, 0], sizes = [16, 1], strides = [1, 1]} : vector<16x7xf32> to vector<16x1xf32>
    %104 = arith.maximumf %102, %103 : vector<16x1xf32>
    %105 = vector.extract_strided_slice %101 {offsets = [0, 1], sizes = [16, 1], strides = [1, 1]} : vector<16x7xf32> to vector<16x1xf32>
    %106 = vector.extract_strided_slice %101 {offsets = [0, 2], sizes = [16, 1], strides = [1, 1]} : vector<16x7xf32> to vector<16x1xf32>
    %107 = arith.maximumf %105, %106 : vector<16x1xf32>
    %108 = vector.extract_strided_slice %101 {offsets = [0, 3], sizes = [16, 1], strides = [1, 1]} : vector<16x7xf32> to vector<16x1xf32>
    %109 = vector.extract_strided_slice %101 {offsets = [0, 4], sizes = [16, 1], strides = [1, 1]} : vector<16x7xf32> to vector<16x1xf32>
    %110 = arith.maximumf %108, %109 : vector<16x1xf32>
    %111 = vector.extract_strided_slice %101 {offsets = [0, 5], sizes = [16, 1], strides = [1, 1]} : vector<16x7xf32> to vector<16x1xf32>
    %112 = vector.extract_strided_slice %101 {offsets = [0, 6], sizes = [16, 1], strides = [1, 1]} : vector<16x7xf32> to vector<16x1xf32>
    %113 = arith.maximumf %111, %112 : vector<16x1xf32>
    %114 = tpu.concatenate %104, %107, %110, %113 in 1 : vector<16x1xf32>, vector<16x1xf32>, vector<16x1xf32>, vector<16x1xf32> -> vector<16x4xf32>
    %115 = vector.extract_strided_slice %114 {offsets = [0, 0], sizes = [1, 4], strides = [1, 1]} : vector<16x4xf32> to vector<1x4xf32>
    %116 = vector.extract_strided_slice %114 {offsets = [1, 0], sizes = [1, 4], strides = [1, 1]} : vector<16x4xf32> to vector<1x4xf32>
    %117 = vector.extract_strided_slice %114 {offsets = [2, 0], sizes = [1, 4], strides = [1, 1]} : vector<16x4xf32> to vector<1x4xf32>
    %118 = vector.extract_strided_slice %114 {offsets = [3, 0], sizes = [1, 4], strides = [1, 1]} : vector<16x4xf32> to vector<1x4xf32>
    %119 = vector.extract_strided_slice %114 {offsets = [4, 0], sizes = [1, 4], strides = [1, 1]} : vector<16x4xf32> to vector<1x4xf32>
    %120 = vector.extract_strided_slice %114 {offsets = [5, 0], sizes = [1, 4], strides = [1, 1]} : vector<16x4xf32> to vector<1x4xf32>
    %121 = vector.extract_strided_slice %114 {offsets = [6, 0], sizes = [1, 4], strides = [1, 1]} : vector<16x4xf32> to vector<1x4xf32>
    %122 = vector.extract_strided_slice %114 {offsets = [7, 0], sizes = [1, 4], strides = [1, 1]} : vector<16x4xf32> to vector<1x4xf32>
    %123 = vector.extract_strided_slice %114 {offsets = [8, 0], sizes = [1, 4], strides = [1, 1]} : vector<16x4xf32> to vector<1x4xf32>
    %124 = vector.extract_strided_slice %114 {offsets = [9, 0], sizes = [1, 4], strides = [1, 1]} : vector<16x4xf32> to vector<1x4xf32>
    %125 = vector.extract_strided_slice %114 {offsets = [10, 0], sizes = [1, 4], strides = [1, 1]} : vector<16x4xf32> to vector<1x4xf32>
    %126 = vector.extract_strided_slice %114 {offsets = [11, 0], sizes = [1, 4], strides = [1, 1]} : vector<16x4xf32> to vector<1x4xf32>
    %127 = vector.extract_strided_slice %114 {offsets = [12, 0], sizes = [1, 4], strides = [1, 1]} : vector<16x4xf32> to vector<1x4xf32>
    %128 = vector.extract_strided_slice %114 {offsets = [13, 0], sizes = [1, 4], strides = [1, 1]} : vector<16x4xf32> to vector<1x4xf32>
    %129 = vector.extract_strided_slice %114 {offsets = [14, 0], sizes = [1, 4], strides = [1, 1]} : vector<16x4xf32> to vector<1x4xf32>
    %130 = vector.extract_strided_slice %114 {offsets = [15, 0], sizes = [1, 4], strides = [1, 1]} : vector<16x4xf32> to vector<1x4xf32>
    %131 = tpu.concatenate %115, %116, %117, %118, %119, %120, %121, %122, %123, %124, %125, %126, %127, %128, %129, %130 in 1 : vector<1x4xf32>, vector<1x4xf32>, vector<1x4xf32>, vector<1x4xf32>, vector<1x4xf32>, vector<1x4xf32>, vector<1x4xf32>, vector<1x4xf32>, vector<1x4xf32>, vector<1x4xf32>, vector<1x4xf32>, vector<1x4xf32>, vector<1x4xf32>, vector<1x4xf32>, vector<1x4xf32>, vector<1x4xf32> -> vector<1x64xf32>
    %c1 = arith.constant 1 : index
    %c0_25 = arith.constant 0 : index
    %c0_26 = arith.constant 0 : index
    %132 = vector.load %arg0[%c1, %c0_25, %c0_26] : memref<2x4x16xf32, #tpu.memory_space<vmem>>, vector<1x4x16xf32>
    %133 = vector.shape_cast %132 : vector<1x4x16xf32> to vector<4x16xf32>
    %cst_27 = arith.constant 0.000000e+00 : f32
    %134 = vector.broadcast %cst_27 : f32 to vector<4x4xf32>
    %135 = tpu.concatenate %134, %133, %134 in 1 : vector<4x4xf32>, vector<4x16xf32>, vector<4x4xf32> -> vector<4x24xf32>
    %136 = vector.extract_strided_slice %135 {offsets = [0, 0], sizes = [4, 17], strides = [1, 1]} : vector<4x24xf32> to vector<4x17xf32>
    %137 = vector.extract_strided_slice %135 {offsets = [0, 1], sizes = [4, 17], strides = [1, 1]} : vector<4x24xf32> to vector<4x17xf32>
    %138 = vector.extract_strided_slice %135 {offsets = [0, 2], sizes = [4, 17], strides = [1, 1]} : vector<4x24xf32> to vector<4x17xf32>
    %139 = vector.extract_strided_slice %135 {offsets = [0, 3], sizes = [4, 17], strides = [1, 1]} : vector<4x24xf32> to vector<4x17xf32>
    %140 = vector.extract_strided_slice %135 {offsets = [0, 4], sizes = [4, 17], strides = [1, 1]} : vector<4x24xf32> to vector<4x17xf32>
    %141 = vector.extract_strided_slice %135 {offsets = [0, 5], sizes = [4, 17], strides = [1, 1]} : vector<4x24xf32> to vector<4x17xf32>
    %142 = vector.extract_strided_slice %135 {offsets = [0, 6], sizes = [4, 17], strides = [1, 1]} : vector<4x24xf32> to vector<4x17xf32>
    %143 = vector.extract_strided_slice %135 {offsets = [0, 7], sizes = [4, 17], strides = [1, 1]} : vector<4x24xf32> to vector<4x17xf32>
    %144 = tpu.concatenate %136, %137, %138, %139, %140, %141, %142, %143 in 0 : vector<4x17xf32>, vector<4x17xf32>, vector<4x17xf32>, vector<4x17xf32>, vector<4x17xf32>, vector<4x17xf32>, vector<4x17xf32>, vector<4x17xf32> -> vector<32x17xf32>
    %cst_28 = arith.constant dense<0.000000e+00> : vector<32x17xf32>
    %145 = tpu.matmul %0, %144, %cst_28 {dimension_numbers = #tpu.dot_dimension_numbers<[1], [0], [0], [1], [0, 0, 1, 1], [], []>} : vector<32x32xf32>, vector<32x17xf32>, vector<32x17xf32> -> vector<32x17xf32>
    %146 = vector.broadcast %3 : vector<32x1xf32> to vector<32x17xf32>
    %147 = arith.addf %145, %146 : vector<32x17xf32>
    %cst_29 = arith.constant 0.000000e+00 : f32
    %148 = vector.broadcast %cst_29 : f32 to vector<32x17xf32>
    %149 = arith.maximumf %147, %148 : vector<32x17xf32>
    %cst_30 = arith.constant 0.000000e+00 : f32
    %150 = vector.broadcast %cst_30 : f32 to vector<32x1xf32>
    %151 = vector.extract_strided_slice %149 {offsets = [0, 0], sizes = [32, 1], strides = [1, 1]} : vector<32x17xf32> to vector<32x1xf32>
    %152 = arith.maximumf %150, %151 : vector<32x1xf32>
    %153 = vector.extract_strided_slice %149 {offsets = [0, 1], sizes = [32, 1], strides = [1, 1]} : vector<32x17xf32> to vector<32x1xf32>
    %154 = vector.extract_strided_slice %149 {offsets = [0, 2], sizes = [32, 1], strides = [1, 1]} : vector<32x17xf32> to vector<32x1xf32>
    %155 = arith.maximumf %153, %154 : vector<32x1xf32>
    %156 = vector.extract_strided_slice %149 {offsets = [0, 3], sizes = [32, 1], strides = [1, 1]} : vector<32x17xf32> to vector<32x1xf32>
    %157 = vector.extract_strided_slice %149 {offsets = [0, 4], sizes = [32, 1], strides = [1, 1]} : vector<32x17xf32> to vector<32x1xf32>
    %158 = arith.maximumf %156, %157 : vector<32x1xf32>
    %159 = vector.extract_strided_slice %149 {offsets = [0, 5], sizes = [32, 1], strides = [1, 1]} : vector<32x17xf32> to vector<32x1xf32>
    %160 = vector.extract_strided_slice %149 {offsets = [0, 6], sizes = [32, 1], strides = [1, 1]} : vector<32x17xf32> to vector<32x1xf32>
    %161 = arith.maximumf %159, %160 : vector<32x1xf32>
    %162 = vector.extract_strided_slice %149 {offsets = [0, 7], sizes = [32, 1], strides = [1, 1]} : vector<32x17xf32> to vector<32x1xf32>
    %163 = vector.extract_strided_slice %149 {offsets = [0, 8], sizes = [32, 1], strides = [1, 1]} : vector<32x17xf32> to vector<32x1xf32>
    %164 = arith.maximumf %162, %163 : vector<32x1xf32>
    %165 = vector.extract_strided_slice %149 {offsets = [0, 9], sizes = [32, 1], strides = [1, 1]} : vector<32x17xf32> to vector<32x1xf32>
    %166 = vector.extract_strided_slice %149 {offsets = [0, 10], sizes = [32, 1], strides = [1, 1]} : vector<32x17xf32> to vector<32x1xf32>
    %167 = arith.maximumf %165, %166 : vector<32x1xf32>
    %168 = vector.extract_strided_slice %149 {offsets = [0, 11], sizes = [32, 1], strides = [1, 1]} : vector<32x17xf32> to vector<32x1xf32>
    %169 = vector.extract_strided_slice %149 {offsets = [0, 12], sizes = [32, 1], strides = [1, 1]} : vector<32x17xf32> to vector<32x1xf32>
    %170 = arith.maximumf %168, %169 : vector<32x1xf32>
    %171 = vector.extract_strided_slice %149 {offsets = [0, 13], sizes = [32, 1], strides = [1, 1]} : vector<32x17xf32> to vector<32x1xf32>
    %172 = vector.extract_strided_slice %149 {offsets = [0, 14], sizes = [32, 1], strides = [1, 1]} : vector<32x17xf32> to vector<32x1xf32>
    %173 = arith.maximumf %171, %172 : vector<32x1xf32>
    %174 = vector.extract_strided_slice %149 {offsets = [0, 15], sizes = [32, 1], strides = [1, 1]} : vector<32x17xf32> to vector<32x1xf32>
    %175 = vector.extract_strided_slice %149 {offsets = [0, 16], sizes = [32, 1], strides = [1, 1]} : vector<32x17xf32> to vector<32x1xf32>
    %176 = arith.maximumf %174, %175 : vector<32x1xf32>
    %177 = tpu.concatenate %152, %155, %158, %161, %164, %167, %170, %173, %176 in 1 : vector<32x1xf32>, vector<32x1xf32>, vector<32x1xf32>, vector<32x1xf32>, vector<32x1xf32>, vector<32x1xf32>, vector<32x1xf32>, vector<32x1xf32>, vector<32x1xf32> -> vector<32x9xf32>
    %cst_31 = arith.constant 0.000000e+00 : f32
    %178 = vector.broadcast %cst_31 : f32 to vector<32x4xf32>
    %179 = tpu.concatenate %178, %177, %178 in 1 : vector<32x4xf32>, vector<32x9xf32>, vector<32x4xf32> -> vector<32x17xf32>
    %180 = vector.extract_strided_slice %179 {offsets = [0, 0], sizes = [32, 10], strides = [1, 1]} : vector<32x17xf32> to vector<32x10xf32>
    %181 = vector.extract_strided_slice %179 {offsets = [0, 1], sizes = [32, 10], strides = [1, 1]} : vector<32x17xf32> to vector<32x10xf32>
    %182 = vector.extract_strided_slice %179 {offsets = [0, 2], sizes = [32, 10], strides = [1, 1]} : vector<32x17xf32> to vector<32x10xf32>
    %183 = vector.extract_strided_slice %179 {offsets = [0, 3], sizes = [32, 10], strides = [1, 1]} : vector<32x17xf32> to vector<32x10xf32>
    %184 = vector.extract_strided_slice %179 {offsets = [0, 4], sizes = [32, 10], strides = [1, 1]} : vector<32x17xf32> to vector<32x10xf32>
    %185 = vector.extract_strided_slice %179 {offsets = [0, 5], sizes = [32, 10], strides = [1, 1]} : vector<32x17xf32> to vector<32x10xf32>
    %186 = vector.extract_strided_slice %179 {offsets = [0, 6], sizes = [32, 10], strides = [1, 1]} : vector<32x17xf32> to vector<32x10xf32>
    %187 = vector.extract_strided_slice %179 {offsets = [0, 7], sizes = [32, 10], strides = [1, 1]} : vector<32x17xf32> to vector<32x10xf32>
    %188 = tpu.concatenate %180, %181, %182, %183, %184, %185, %186, %187 in 0 : vector<32x10xf32>, vector<32x10xf32>, vector<32x10xf32>, vector<32x10xf32>, vector<32x10xf32>, vector<32x10xf32>, vector<32x10xf32>, vector<32x10xf32> -> vector<256x10xf32>
    %cst_32 = arith.constant dense<0.000000e+00> : vector<64x10xf32>
    %189 = tpu.matmul %1, %188, %cst_32 {dimension_numbers = #tpu.dot_dimension_numbers<[1], [0], [0], [1], [0, 0, 1, 1], [], []>} : vector<64x256xf32>, vector<256x10xf32>, vector<64x10xf32> -> vector<64x10xf32>
    %190 = vector.broadcast %4 : vector<64x1xf32> to vector<64x10xf32>
    %191 = arith.addf %189, %190 : vector<64x10xf32>
    %cst_33 = arith.constant 0.000000e+00 : f32
    %192 = vector.broadcast %cst_33 : f32 to vector<64x10xf32>
    %193 = arith.maximumf %191, %192 : vector<64x10xf32>
    %cst_34 = arith.constant 0.000000e+00 : f32
    %194 = vector.broadcast %cst_34 : f32 to vector<64x1xf32>
    %195 = vector.extract_strided_slice %193 {offsets = [0, 0], sizes = [64, 1], strides = [1, 1]} : vector<64x10xf32> to vector<64x1xf32>
    %196 = arith.maximumf %194, %195 : vector<64x1xf32>
    %197 = vector.extract_strided_slice %193 {offsets = [0, 1], sizes = [64, 1], strides = [1, 1]} : vector<64x10xf32> to vector<64x1xf32>
    %198 = vector.extract_strided_slice %193 {offsets = [0, 2], sizes = [64, 1], strides = [1, 1]} : vector<64x10xf32> to vector<64x1xf32>
    %199 = arith.maximumf %197, %198 : vector<64x1xf32>
    %200 = vector.extract_strided_slice %193 {offsets = [0, 3], sizes = [64, 1], strides = [1, 1]} : vector<64x10xf32> to vector<64x1xf32>
    %201 = vector.extract_strided_slice %193 {offsets = [0, 4], sizes = [64, 1], strides = [1, 1]} : vector<64x10xf32> to vector<64x1xf32>
    %202 = arith.maximumf %200, %201 : vector<64x1xf32>
    %203 = vector.extract_strided_slice %193 {offsets = [0, 5], sizes = [64, 1], strides = [1, 1]} : vector<64x10xf32> to vector<64x1xf32>
    %204 = vector.extract_strided_slice %193 {offsets = [0, 6], sizes = [64, 1], strides = [1, 1]} : vector<64x10xf32> to vector<64x1xf32>
    %205 = arith.maximumf %203, %204 : vector<64x1xf32>
    %206 = vector.extract_strided_slice %193 {offsets = [0, 7], sizes = [64, 1], strides = [1, 1]} : vector<64x10xf32> to vector<64x1xf32>
    %207 = vector.extract_strided_slice %193 {offsets = [0, 8], sizes = [64, 1], strides = [1, 1]} : vector<64x10xf32> to vector<64x1xf32>
    %208 = arith.maximumf %206, %207 : vector<64x1xf32>
    %209 = vector.extract_strided_slice %193 {offsets = [0, 9], sizes = [64, 1], strides = [1, 1]} : vector<64x10xf32> to vector<64x1xf32>
    %210 = arith.maximumf %209, %194 : vector<64x1xf32>
    %211 = tpu.concatenate %196, %199, %202, %205, %208, %210 in 1 : vector<64x1xf32>, vector<64x1xf32>, vector<64x1xf32>, vector<64x1xf32>, vector<64x1xf32>, vector<64x1xf32> -> vector<64x6xf32>
    %cst_35 = arith.constant 0.000000e+00 : f32
    %212 = vector.broadcast %cst_35 : f32 to vector<64x4xf32>
    %213 = tpu.concatenate %212, %211, %212 in 1 : vector<64x4xf32>, vector<64x6xf32>, vector<64x4xf32> -> vector<64x14xf32>
    %214 = vector.extract_strided_slice %213 {offsets = [0, 0], sizes = [64, 7], strides = [1, 1]} : vector<64x14xf32> to vector<64x7xf32>
    %215 = vector.extract_strided_slice %213 {offsets = [0, 1], sizes = [64, 7], strides = [1, 1]} : vector<64x14xf32> to vector<64x7xf32>
    %216 = vector.extract_strided_slice %213 {offsets = [0, 2], sizes = [64, 7], strides = [1, 1]} : vector<64x14xf32> to vector<64x7xf32>
    %217 = vector.extract_strided_slice %213 {offsets = [0, 3], sizes = [64, 7], strides = [1, 1]} : vector<64x14xf32> to vector<64x7xf32>
    %218 = vector.extract_strided_slice %213 {offsets = [0, 4], sizes = [64, 7], strides = [1, 1]} : vector<64x14xf32> to vector<64x7xf32>
    %219 = vector.extract_strided_slice %213 {offsets = [0, 5], sizes = [64, 7], strides = [1, 1]} : vector<64x14xf32> to vector<64x7xf32>
    %220 = vector.extract_strided_slice %213 {offsets = [0, 6], sizes = [64, 7], strides = [1, 1]} : vector<64x14xf32> to vector<64x7xf32>
    %221 = vector.extract_strided_slice %213 {offsets = [0, 7], sizes = [64, 7], strides = [1, 1]} : vector<64x14xf32> to vector<64x7xf32>
    %222 = tpu.concatenate %214, %215, %216, %217, %218, %219, %220, %221 in 0 : vector<64x7xf32>, vector<64x7xf32>, vector<64x7xf32>, vector<64x7xf32>, vector<64x7xf32>, vector<64x7xf32>, vector<64x7xf32>, vector<64x7xf32> -> vector<512x7xf32>
    %cst_36 = arith.constant dense<0.000000e+00> : vector<16x7xf32>
    %223 = tpu.matmul %2, %222, %cst_36 {dimension_numbers = #tpu.dot_dimension_numbers<[1], [0], [0], [1], [0, 0, 1, 1], [], []>} : vector<16x512xf32>, vector<512x7xf32>, vector<16x7xf32> -> vector<16x7xf32>
    %224 = vector.broadcast %5 : vector<16x1xf32> to vector<16x7xf32>
    %225 = arith.addf %223, %224 : vector<16x7xf32>
    %cst_37 = arith.constant 0.000000e+00 : f32
    %226 = vector.broadcast %cst_37 : f32 to vector<16x7xf32>
    %227 = arith.maximumf %225, %226 : vector<16x7xf32>
    %cst_38 = arith.constant 0.000000e+00 : f32
    %228 = vector.broadcast %cst_38 : f32 to vector<16x1xf32>
    %229 = vector.extract_strided_slice %227 {offsets = [0, 0], sizes = [16, 1], strides = [1, 1]} : vector<16x7xf32> to vector<16x1xf32>
    %230 = arith.maximumf %228, %229 : vector<16x1xf32>
    %231 = vector.extract_strided_slice %227 {offsets = [0, 1], sizes = [16, 1], strides = [1, 1]} : vector<16x7xf32> to vector<16x1xf32>
    %232 = vector.extract_strided_slice %227 {offsets = [0, 2], sizes = [16, 1], strides = [1, 1]} : vector<16x7xf32> to vector<16x1xf32>
    %233 = arith.maximumf %231, %232 : vector<16x1xf32>
    %234 = vector.extract_strided_slice %227 {offsets = [0, 3], sizes = [16, 1], strides = [1, 1]} : vector<16x7xf32> to vector<16x1xf32>
    %235 = vector.extract_strided_slice %227 {offsets = [0, 4], sizes = [16, 1], strides = [1, 1]} : vector<16x7xf32> to vector<16x1xf32>
    %236 = arith.maximumf %234, %235 : vector<16x1xf32>
    %237 = vector.extract_strided_slice %227 {offsets = [0, 5], sizes = [16, 1], strides = [1, 1]} : vector<16x7xf32> to vector<16x1xf32>
    %238 = vector.extract_strided_slice %227 {offsets = [0, 6], sizes = [16, 1], strides = [1, 1]} : vector<16x7xf32> to vector<16x1xf32>
    %239 = arith.maximumf %237, %238 : vector<16x1xf32>
    %240 = tpu.concatenate %230, %233, %236, %239 in 1 : vector<16x1xf32>, vector<16x1xf32>, vector<16x1xf32>, vector<16x1xf32> -> vector<16x4xf32>
    %241 = vector.extract_strided_slice %240 {offsets = [0, 0], sizes = [1, 4], strides = [1, 1]} : vector<16x4xf32> to vector<1x4xf32>
    %242 = vector.extract_strided_slice %240 {offsets = [1, 0], sizes = [1, 4], strides = [1, 1]} : vector<16x4xf32> to vector<1x4xf32>
    %243 = vector.extract_strided_slice %240 {offsets = [2, 0], sizes = [1, 4], strides = [1, 1]} : vector<16x4xf32> to vector<1x4xf32>
    %244 = vector.extract_strided_slice %240 {offsets = [3, 0], sizes = [1, 4], strides = [1, 1]} : vector<16x4xf32> to vector<1x4xf32>
    %245 = vector.extract_strided_slice %240 {offsets = [4, 0], sizes = [1, 4], strides = [1, 1]} : vector<16x4xf32> to vector<1x4xf32>
    %246 = vector.extract_strided_slice %240 {offsets = [5, 0], sizes = [1, 4], strides = [1, 1]} : vector<16x4xf32> to vector<1x4xf32>
    %247 = vector.extract_strided_slice %240 {offsets = [6, 0], sizes = [1, 4], strides = [1, 1]} : vector<16x4xf32> to vector<1x4xf32>
    %248 = vector.extract_strided_slice %240 {offsets = [7, 0], sizes = [1, 4], strides = [1, 1]} : vector<16x4xf32> to vector<1x4xf32>
    %249 = vector.extract_strided_slice %240 {offsets = [8, 0], sizes = [1, 4], strides = [1, 1]} : vector<16x4xf32> to vector<1x4xf32>
    %250 = vector.extract_strided_slice %240 {offsets = [9, 0], sizes = [1, 4], strides = [1, 1]} : vector<16x4xf32> to vector<1x4xf32>
    %251 = vector.extract_strided_slice %240 {offsets = [10, 0], sizes = [1, 4], strides = [1, 1]} : vector<16x4xf32> to vector<1x4xf32>
    %252 = vector.extract_strided_slice %240 {offsets = [11, 0], sizes = [1, 4], strides = [1, 1]} : vector<16x4xf32> to vector<1x4xf32>
    %253 = vector.extract_strided_slice %240 {offsets = [12, 0], sizes = [1, 4], strides = [1, 1]} : vector<16x4xf32> to vector<1x4xf32>
    %254 = vector.extract_strided_slice %240 {offsets = [13, 0], sizes = [1, 4], strides = [1, 1]} : vector<16x4xf32> to vector<1x4xf32>
    %255 = vector.extract_strided_slice %240 {offsets = [14, 0], sizes = [1, 4], strides = [1, 1]} : vector<16x4xf32> to vector<1x4xf32>
    %256 = vector.extract_strided_slice %240 {offsets = [15, 0], sizes = [1, 4], strides = [1, 1]} : vector<16x4xf32> to vector<1x4xf32>
    %257 = tpu.concatenate %241, %242, %243, %244, %245, %246, %247, %248, %249, %250, %251, %252, %253, %254, %255, %256 in 1 : vector<1x4xf32>, vector<1x4xf32>, vector<1x4xf32>, vector<1x4xf32>, vector<1x4xf32>, vector<1x4xf32>, vector<1x4xf32>, vector<1x4xf32>, vector<1x4xf32>, vector<1x4xf32>, vector<1x4xf32>, vector<1x4xf32>, vector<1x4xf32>, vector<1x4xf32>, vector<1x4xf32>, vector<1x4xf32> -> vector<1x64xf32>
    %258 = tpu.concatenate %131, %257 in 0 : vector<1x64xf32>, vector<1x64xf32> -> vector<2x64xf32>
    %c0_39 = arith.constant 0 : index
    %c0_40 = arith.constant 0 : index
    %259 = vector.load %arg11[%c0_39, %c0_40] : memref<2x64xf32, #tpu.memory_space<vmem>>, vector<2x64xf32>
    tpu.vector_store %arg11[%c0_39, %c0_40], %258 {strides = array<i32>} : memref<2x64xf32, #tpu.memory_space<vmem>>, vector<2x64xf32>,
    %c0_41 = arith.constant 0 : index
    %c0_42 = arith.constant 0 : index
    %260 = vector.load %arg7[%c0_41, %c0_42] : memref<64x256xf32, #tpu.memory_space<vmem>>, vector<64x256xf32>
    %cst_43 = arith.constant dense<0.000000e+00> : vector<2x256xf32>
    %261 = tpu.matmul %258, %260, %cst_43 {dimension_numbers = #tpu.dot_dimension_numbers<[1], [0], [0], [1], [0, 0, 1, 1], [], []>} : vector<2x64xf32>, vector<64x256xf32>, vector<2x256xf32> -> vector<2x256xf32>
    %c0_44 = arith.constant 0 : index
    %c0_45 = arith.constant 0 : index
    %262 = vector.load %arg8[%c0_44, %c0_45] : memref<1x256xf32, #tpu.memory_space<vmem>>, vector<1x256xf32>
    %263 = vector.broadcast %262 : vector<1x256xf32> to vector<2x256xf32>
    %264 = arith.addf %261, %263 : vector<2x256xf32>
    %cst_46 = arith.constant 0.000000e+00 : f32
    %265 = vector.broadcast %cst_46 : f32 to vector<2x256xf32>
    %266 = arith.maximumf %264, %265 : vector<2x256xf32>
    %c0_47 = arith.constant 0 : index
    %c0_48 = arith.constant 0 : index
    %267 = vector.load %arg9[%c0_47, %c0_48] : memref<256x128xf32, #tpu.memory_space<vmem>>, vector<256x128xf32>
    %cst_49 = arith.constant dense<0.000000e+00> : vector<2x128xf32>
    %268 = tpu.matmul %266, %267, %cst_49 {dimension_numbers = #tpu.dot_dimension_numbers<[1], [0], [0], [1], [0, 0, 1, 1], [], []>} : vector<2x256xf32>, vector<256x128xf32>, vector<2x128xf32> -> vector<2x128xf32>
    %c0_50 = arith.constant 0 : index
    %c0_51 = arith.constant 0 : index
    %269 = vector.load %arg10[%c0_50, %c0_51] : memref<1x128xf32, #tpu.memory_space<vmem>>, vector<1x128xf32>
    %270 = vector.broadcast %269 : vector<1x128xf32> to vector<2x128xf32>
    %271 = arith.addf %268, %270 : vector<2x128xf32>
    %c0_52 = arith.constant 0 : index
    %c0_53 = arith.constant 0 : index
    %272 = vector.load %arg12[%c0_52, %c0_53] : memref<2x128xf32, #tpu.memory_space<vmem>>, vector<2x128xf32>
    tpu.vector_store %arg12[%c0_52, %c0_53], %271 {strides = array<i32>} : memref<2x128xf32, #tpu.memory_space<vmem>>, vector<2x128xf32>,
    return
  }
}

</mosaic_0001>

<llo_original>
// kernel: _lambda_.1
$region0: #{_lambda_.1}
  #allocation0 [shape = 'u32[]', space=smem, size = 0x4, offset = 0x4, fixed_abs, tag = 'smem constant byte address 0x4 - core index']
  #allocation1 [shape = 'u32[144,128]{1,0:T(1,128)}', space=vmem, size = 0x12000, scoped, tag = 'internal scratch']
  %s0 = inlined_call_operand.hbm [shape: f32[2,4,16], index: 0, kind: input, shape index: {}]
  %s1 = inlined_call_operand.hbm [shape: f32[32,32], index: 1, kind: input, shape index: {}]
  %s2 = inlined_call_operand.hbm [shape: f32[32,1], index: 2, kind: input, shape index: {}]
  %s3 = inlined_call_operand.hbm [shape: f32[64,256], index: 3, kind: input, shape index: {}]
  %s4 = inlined_call_operand.hbm [shape: f32[64,1], index: 4, kind: input, shape index: {}]
  %s5 = inlined_call_operand.hbm [shape: f32[16,512], index: 5, kind: input, shape index: {}]
  %s6 = inlined_call_operand.hbm [shape: f32[16,1], index: 6, kind: input, shape index: {}]
  %s7 = inlined_call_operand.hbm [shape: f32[64,256], index: 7, kind: input, shape index: {}]
  %s8 = inlined_call_operand.vmem [shape: f32[1,256], index: 8, kind: input, shape index: {}]
  %s9 = inlined_call_operand.hbm [shape: f32[256,128], index: 9, kind: input, shape index: {}]
  %s10 = inlined_call_operand.vmem [shape: f32[1,128], index: 10, kind: input, shape index: {}]
  %s11 = inlined_call_operand.hbm [shape: f32[2,64], index: 11, kind: output, shape index: {0}]
  %s12 = inlined_call_operand.hbm [shape: f32[2,128], index: 12, kind: output, shape index: {1}]
  %13 = xla_tuple %s11, %s12
  %s14 = sld [smem:[#allocation0]]
  $region98: #{_lambda_.1} parent=0
    _
  %s16 = ssub.s32 1, %s14
  %s17 = scalar_select 0, %s16, %s14
  $region1: #{_lambda_.1} parent=0
    #allocation2 [shape = 'u8[4096]{0}', space=vmem, size = 0x1000, scoped, tag = 'input window, operand 0, single buffered']
    #allocation3 [shape = 's32[1]{0}', space=sflag, size = 0x4, scoped, tag = 'scoped memory for _lambda_.1']
    #allocation4 [shape = 's32[1]{0}', space=sflag, size = 0x4, scoped, tag = 'scoped memory for _lambda_.1']
    #allocation5 [shape = 'u8[16384]{0}', space=vmem, size = 0x4000, scoped, tag = 'input window, operand 1, single buffered']
    #allocation6 [shape = 's32[1]{0}', space=sflag, size = 0x4, scoped, tag = 'scoped memory for _lambda_.1']
    #allocation7 [shape = 'u8[16384]{0}', space=vmem, size = 0x4000, scoped, tag = 'input window, operand 2, single buffered']
    #allocation8 [shape = 'u8[65536]{0}', space=vmem, size = 0x10000, scoped, tag = 'input window, operand 3, single buffered']
    #allocation9 [shape = 's32[1]{0}', space=sflag, size = 0x4, scoped, tag = 'scoped memory for _lambda_.1']
    #allocation10 [shape = 'u8[32768]{0}', space=vmem, size = 0x8000, scoped, tag = 'input window, operand 4, single buffered']
    #allocation11 [shape = 'u8[32768]{0}', space=vmem, size = 0x8000, scoped, tag = 'input window, operand 5, single buffered']
    #allocation12 [shape = 's32[1]{0}', space=sflag, size = 0x4, scoped, tag = 'scoped memory for _lambda_.1']
    #allocation13 [shape = 'u8[8192]{0}', space=vmem, size = 0x2000, scoped, tag = 'input window, operand 6, single buffered']
    #allocation14 [shape = 'u8[65536]{0}', space=vmem, size = 0x10000, scoped, tag = 'input window, operand 7, single buffered']
    #allocation15 [shape = 's32[1]{0}', space=sflag, size = 0x4, scoped, tag = 'scoped memory for _lambda_.1']
    #allocation16 [shape = 'u8[131072]{0}', space=vmem, size = 0x20000, scoped, tag = 'input window, operand 9, single buffered']
    #allocation17 [shape = 'u8[1024]{0}', space=vmem, size = 0x400, scoped, tag = 'output window, operand 0, single buffered']
    #allocation18 [shape = 'u8[1024]{0}', space=vmem, size = 0x400, scoped, tag = 'output window, operand 1, single buffered']
    #allocation19 [shape = 's32[1]{0}', space=sflag, size = 0x4, scoped, tag = 'scoped memory for _lambda_.1']
    %18 = vsyncpa [#allocation3], 0
    %19 = vsyncpa [#allocation6], 0
    %20 = vsyncpa [#allocation9], 0
    %21 = vsyncpa [#allocation12], 0
    %22 = vsyncpa [#allocation15], 0
    %23 = vsyncpa [#allocation4], 0
    %24 = vsyncpa [#allocation19], 0
    // Predicated region
    $region2: #{_lambda_.1} parent=1 // pred_check
      _
    $region3: #{_lambda_.1} parent=1 // pred_check_branch
      %26 = sbr.rel (0) target = $region5
    $region4: #{_lambda_.1} parent=1 // pred_region
      %s28 = ssub.s32 128, 128
      %29 = vsyncadd [#allocation3], %s28
      %s30 = sshll.u32 [#allocation2], 4
      %s31 = int_to_ptr.vmem [resolvable:$true] %s30
      %36 = dma.hbm_to_vmem [thread:$0]  %s0, 128, %s31, [#allocation3], 64, 64, 4
    $region5: #{_lambda_.1} parent=1 // pred_fallthru
      _
    // Predicated region
    $region6: #{_lambda_.1} parent=1 // pred_check
      _
    $region7: #{_lambda_.1} parent=1 // pred_check_branch
      %38 = sbr.rel (0) target = $region9
    $region8: #{_lambda_.1} parent=1 // pred_region
      %s40 = ssub.s32 512, 512
      %41 = vsyncadd [#allocation6], %s40
      %s42 = sshll.u32 [#allocation5], 4
      %s43 = int_to_ptr.vmem [resolvable:$true] %s42
      %48 = dma.hbm_to_vmem [thread:$0]  %s1, 512, %s43, [#allocation6], 128, 128, 8
    $region9: #{_lambda_.1} parent=1 // pred_fallthru
      _
    // Predicated region
    $region10: #{_lambda_.1} parent=1 // pred_check
      _
    $region11: #{_lambda_.1} parent=1 // pred_check_branch
      %50 = sbr.rel (0) target = $region13
    $region12: #{_lambda_.1} parent=1 // pred_region
      %s52 = ssub.s32 512, 512
      %53 = vsyncadd [#allocation6], %s52
      %s54 = sshll.u32 [#allocation7], 4
      %s55 = int_to_ptr.vmem [resolvable:$true] %s54
      %60 = dma.hbm_to_vmem [thread:$0]  %s2, 512, %s55, [#allocation6], 128, 128, 8
    $region13: #{_lambda_.1} parent=1 // pred_fallthru
      _
    // Predicated region
    $region14: #{_lambda_.1} parent=1 // pred_check
      _
    $region15: #{_lambda_.1} parent=1 // pred_check_branch
      %62 = sbr.rel (0) target = $region17
    $region16: #{_lambda_.1} parent=1 // pred_region
      %s64 = ssub.s32 2048, 2048
      %65 = vsyncadd [#allocation9], %s64
      %s66 = sshll.u32 [#allocation8], 4
      %s67 = int_to_ptr.vmem [resolvable:$true] %s66
      %72 = dma.hbm_to_vmem [thread:$0]  %s3, 2048, %s67, [#allocation9], 256, 256, 16
    $region17: #{_lambda_.1} parent=1 // pred_fallthru
      _
    // Predicated region
    $region18: #{_lambda_.1} parent=1 // pred_check
      _
    $region19: #{_lambda_.1} parent=1 // pred_check_branch
      %74 = sbr.rel (0) target = $region21
    $region20: #{_lambda_.1} parent=1 // pred_region
      %s76 = ssub.s32 1024, 1024
      %77 = vsyncadd [#allocation9], %s76
      %s78 = sshll.u32 [#allocation10], 4
      %s79 = int_to_ptr.vmem [resolvable:$true] %s78
      %84 = dma.hbm_to_vmem [thread:$0]  %s4, 1024, %s79, [#allocation9], 128, 128, 8
    $region21: #{_lambda_.1} parent=1 // pred_fallthru
      _
    // Predicated region
    $region22: #{_lambda_.1} parent=1 // pred_check
      _
    $region23: #{_lambda_.1} parent=1 // pred_check_branch
      %86 = sbr.rel (0) target = $region25
    $region24: #{_lambda_.1} parent=1 // pred_region
      %s88 = ssub.s32 1024, 1024
      %89 = vsyncadd [#allocation12], %s88
      %s90 = sshll.u32 [#allocation11], 4
      %s91 = int_to_ptr.vmem [resolvable:$true] %s90
      %96 = dma.hbm_to_vmem [thread:$0]  %s5, 1024, %s91, [#allocation12], 512, 512, 32
    $region25: #{_lambda_.1} parent=1 // pred_fallthru
      _
    // Predicated region
    $region26: #{_lambda_.1} parent=1 // pred_check
      _
    $region27: #{_lambda_.1} parent=1 // pred_check_branch
      %98 = sbr.rel (0) target = $region29
    $region28: #{_lambda_.1} parent=1 // pred_region
      %s100 = ssub.s32 256, 256
      %101 = vsyncadd [#allocation12], %s100
      %s102 = sshll.u32 [#allocation13], 4
      %s103 = int_to_ptr.vmem [resolvable:$true] %s102
      %108 = dma.hbm_to_vmem [thread:$0]  %s6, 256, %s103, [#allocation12], 128, 128, 8
    $region29: #{_lambda_.1} parent=1 // pred_fallthru
      _
    // Predicated region
    $region30: #{_lambda_.1} parent=1 // pred_check
      _
    $region31: #{_lambda_.1} parent=1 // pred_check_branch
      %110 = sbr.rel (0) target = $region33
    $region32: #{_lambda_.1} parent=1 // pred_region
      %s112 = ssub.s32 2048, 2048
      %113 = vsyncadd [#allocation15], %s112
      %s114 = sshll.u32 [#allocation14], 4
      %s115 = int_to_ptr.vmem [resolvable:$true] %s114
      %120 = dma.hbm_to_vmem [thread:$0]  %s7, 2048, %s115, [#allocation15], 256, 256, 16
    $region33: #{_lambda_.1} parent=1 // pred_fallthru
      _
    // Predicated region
    $region34: #{_lambda_.1} parent=1 // pred_check
      _
    $region35: #{_lambda_.1} parent=1 // pred_check_branch
      %122 = sbr.rel (0) target = $region37
    $region36: #{_lambda_.1} parent=1 // pred_region
      _
    $region37: #{_lambda_.1} parent=1 // pred_fallthru
      _
    // Predicated region
    $region38: #{_lambda_.1} parent=1 // pred_check
      _
    $region39: #{_lambda_.1} parent=1 // pred_check_branch
      %124 = sbr.rel (0) target = $region41
    $region40: #{_lambda_.1} parent=1 // pred_region
      %s126 = ssub.s32 4096, 4096
      %127 = vsyncadd [#allocation15], %s126
      %s128 = sshll.u32 [#allocation16], 4
      %s129 = int_to_ptr.vmem [resolvable:$true] %s128
      %134 = dma.hbm_to_vmem [thread:$0]  %s9, 4096, %s129, [#allocation15], 128, 128, 8
    $region41: #{_lambda_.1} parent=1 // pred_fallthru
      _
    // Predicated region
    $region42: #{_lambda_.1} parent=1 // pred_check
      _
    $region43: #{_lambda_.1} parent=1 // pred_check_branch
      %136 = sbr.rel (0) target = $region45
    $region44: #{_lambda_.1} parent=1 // pred_region
      _
    $region45: #{_lambda_.1} parent=1 // pred_fallthru
      _
    // Predicated region
    $region46: #{_lambda_.1} parent=1 // pred_check
      _
    $region47: #{_lambda_.1} parent=1 // pred_check_branch
      %138 = sbr.rel (0) target = $region49
    $region48: #{_lambda_.1} parent=1 // pred_region
      %139 = dma.done [#allocation3], 128
    $region49: #{_lambda_.1} parent=1 // pred_fallthru
      _
    // Predicated region
    $region50: #{_lambda_.1} parent=1 // pred_check
      _
    $region51: #{_lambda_.1} parent=1 // pred_check_branch
      %141 = sbr.rel (0) target = $region53
    $region52: #{_lambda_.1} parent=1 // pred_region
      %142 = dma.done [#allocation6], 512
    $region53: #{_lambda_.1} parent=1 // pred_fallthru
      _
    // Predicated region
    $region54: #{_lambda_.1} parent=1 // pred_check
      _
    $region55: #{_lambda_.1} parent=1 // pred_check_branch
      %144 = sbr.rel (0) target = $region57
    $region56: #{_lambda_.1} parent=1 // pred_region
      %145 = dma.done [#allocation6], 512
    $region57: #{_lambda_.1} parent=1 // pred_fallthru
      _
    // Predicated region
    $region58: #{_lambda_.1} parent=1 // pred_check
      _
    $region59: #{_lambda_.1} parent=1 // pred_check_branch
      %147 = sbr.rel (0) target = $region61
    $region60: #{_lambda_.1} parent=1 // pred_region
      %148 = dma.done [#allocation9], 2048
    $region61: #{_lambda_.1} parent=1 // pred_fallthru
      _
    // Predicated region
    $region62: #{_lambda_.1} parent=1 // pred_check
      _
    $region63: #{_lambda_.1} parent=1 // pred_check_branch
      %150 = sbr.rel (0) target = $region65
    $region64: #{_lambda_.1} parent=1 // pred_region
      %151 = dma.done [#allocation9], 1024
    $region65: #{_lambda_.1} parent=1 // pred_fallthru
      _
    // Predicated region
    $region66: #{_lambda_.1} parent=1 // pred_check
      _
    $region67: #{_lambda_.1} parent=1 // pred_check_branch
      %153 = sbr.rel (0) target = $region69
    $region68: #{_lambda_.1} parent=1 // pred_region
      %154 = dma.done [#allocation12], 1024
    $region69: #{_lambda_.1} parent=1 // pred_fallthru
      _
    // Predicated region
    $region70: #{_lambda_.1} parent=1 // pred_check
      _
    $region71: #{_lambda_.1} parent=1 // pred_check_branch
      %156 = sbr.rel (0) target = $region73
    $region72: #{_lambda_.1} parent=1 // pred_region
      %157 = dma.done [#allocation12], 256
    $region73: #{_lambda_.1} parent=1 // pred_fallthru
      _
    // Predicated region
    $region74: #{_lambda_.1} parent=1 // pred_check
      _
    $region75: #{_lambda_.1} parent=1 // pred_check_branch
      %159 = sbr.rel (0) target = $region77
    $region76: #{_lambda_.1} parent=1 // pred_region
      %160 = dma.done [#allocation15], 2048
    $region77: #{_lambda_.1} parent=1 // pred_fallthru
      _
    // Predicated region
    $region78: #{_lambda_.1} parent=1 // pred_check
      _
    $region79: #{_lambda_.1} parent=1 // pred_check_branch
      %162 = sbr.rel (0) target = $region81
    $region80: #{_lambda_.1} parent=1 // pred_region
      %163 = dma.done [#allocation15], 4096
    $region81: #{_lambda_.1} parent=1 // pred_fallthru
      _
    %v164 = vld [vmem:[#allocation5] sm:$0xff]
    %v165 = vld [vmem:[#allocation5 + $0x8] sm:$0xff]
    %v166 = vld [vmem:[#allocation5 + $0x10] sm:$0xff]
    %v167 = vld [vmem:[#allocation5 + $0x18] sm:$0xff]
    %v168 = vld [vmem:[#allocation8] sm:$0xff]
    %v169 = vld [vmem:[#allocation8 + $0x8] sm:$0xff]
    %v170 = vld [vmem:[#allocation8 + $0x10] sm:$0xff]
    %v171 = vld [vmem:[#allocation8 + $0x18] sm:$0xff]
    %v172 = vld [vmem:[#allocation8 + $0x20] sm:$0xff]
    %v173 = vld [vmem:[#allocation8 + $0x28] sm:$0xff]
    %v174 = vld [vmem:[#allocation8 + $0x30] sm:$0xff]
    %v175 = vld [vmem:[#allocation8 + $0x38] sm:$0xff]
    %v176 = vld [vmem:[#allocation8 + $0x40] sm:$0xff]
    %v177 = vld [vmem:[#allocation8 + $0x48] sm:$0xff]
    %v178 = vld [vmem:[#allocation8 + $0x50] sm:$0xff]
    %v179 = vld [vmem:[#allocation8 + $0x58] sm:$0xff]
    %v180 = vld [vmem:[#allocation8 + $0x60] sm:$0xff]
    %v181 = vld [vmem:[#allocation8 + $0x68] sm:$0xff]
    %v182 = vld [vmem:[#allocation8 + $0x70] sm:$0xff]
    %v183 = vld [vmem:[#allocation8 + $0x78] sm:$0xff]
    %v184 = vld [vmem:[#allocation11] sm:$0xff]
    %v185 = vld [vmem:[#allocation11 + $0x8] sm:$0xff]
    %v186 = vld [vmem:[#allocation11 + $0x10] sm:$0xff]
    %v187 = vld [vmem:[#allocation11 + $0x18] sm:$0xff]
    %v188 = vld [vmem:[#allocation11 + $0x20] sm:$0xff]
    %v189 = vld [vmem:[#allocation11 + $0x28] sm:$0xff]
    %v190 = vld [vmem:[#allocation11 + $0x30] sm:$0xff]
    %v191 = vld [vmem:[#allocation11 + $0x38] sm:$0xff]
    %v192 = vld [vmem:[#allocation7] sm:$0xff]
    %v193 = vld [vmem:[#allocation7 + $0x8] sm:$0xff]
    %v194 = vld [vmem:[#allocation7 + $0x10] sm:$0xff]
    %v195 = vld [vmem:[#allocation7 + $0x18] sm:$0xff]
    %v196 = vld [vmem:[#allocation10] sm:$0xff]
    %v197 = vld [vmem:[#allocation10 + $0x8] sm:$0xff]
    %v198 = vld [vmem:[#allocation10 + $0x10] sm:$0xff]
    %v199 = vld [vmem:[#allocation10 + $0x18] sm:$0xff]
    %v200 = vld [vmem:[#allocation10 + $0x20] sm:$0xff]
    %v201 = vld [vmem:[#allocation10 + $0x28] sm:$0xff]
    %v202 = vld [vmem:[#allocation10 + $0x30] sm:$0xff]
    %v203 = vld [vmem:[#allocation10 + $0x38] sm:$0xff]
    %v204 = vld [vmem:[#allocation13] sm:$0xff]
    %v205 = vld [vmem:[#allocation13 + $0x8] sm:$0xff]
    %v206 = vld [vmem:[#allocation2] sm:$0xf]
    %208 = vrot.lane.b32.xlu0 %v206, 4
    %v209 = vpop.permute.xlu0 %208
    %vm211 = vcmask 31744
    %v212 = vsel %vm211, 0.0, %v209
    %vm213 = vcmask 162816
    %v214 = vsel %vm213, %v212, 0.0
    %v216 = vrot.slane %v214, 4
    %217 = vrot.lane.b32.xlu0 %v216, 127
    %v218 = vpop.permute.xlu0 %217
    %220 = vrot.lane.b32.xlu0 %v214, 126
    %v221 = vpop.permute.xlu0 %220
    %223 = vrot.lane.b32.xlu0 %v216, 125
    %v224 = vpop.permute.xlu0 %223
    %226 = vrot.lane.b32.xlu0 %v214, 124
    %v227 = vpop.permute.xlu0 %226
    %229 = vrot.lane.b32.xlu0 %v216, 123
    %v230 = vpop.permute.xlu0 %229
    %232 = vrot.lane.b32.xlu0 %v214, 122
    %v233 = vpop.permute.xlu0 %232
    %235 = vrot.lane.b32.xlu0 %v216, 121
    %v236 = vpop.permute.xlu0 %235
    %vm238 = vcmask 1043456
    %v239 = vsel %vm238, %v214, %v218
    %v240 = vsel %vm238, %v221, %v224
    %v241 = vsel %vm238, %v227, %v230
    %v242 = vsel %vm238, %v233, %v236
    %244 = vset.pattern.permute.xlu0 0
    %245 = vperm.xlu0 %244, %v192
    %v246 = vpop.permute.xlu0 %245
    %249 = vset.pattern.permute.xlu0 0
    %250 = vperm.xlu0 %249, %v193
    %v251 = vpop.permute.xlu0 %250
    %254 = vset.pattern.permute.xlu0 0
    %255 = vperm.xlu0 %254, %v194
    %v256 = vpop.permute.xlu0 %255
    %259 = vset.pattern.permute.xlu0 0
    %260 = vperm.xlu0 %259, %v195
    %v261 = vpop.permute.xlu0 %260
    %vm263 = vcmask 261120
    %v265 = vsel %vm263, %v164, 0
    %v268 = vsel %vm263, %v165, 0
    %v271 = vsel %vm263, %v166, 0
    %v274 = vsel %vm263, %v167, 0
    %276 = vmatprep.subr.mxu0 0.0
    %277 = vmatpush1.msra.mxu0 0.0
    %278 = vmatprep.subr.mxu0 0.0
    %279 = vmatpush1.msra.mxu0 0.0
    %280 = vmatprep.subr.mxu0 0.0
    %281 = vmatpush1.msra.mxu0 0.0
    %282 = vmatprep.subr.mxu0 0.0
    %283 = vmatpush1.msra.mxu0 0.0
    %284 = vmatprep.subr.mxu0 0.0
    %285 = vmatpush1.msra.mxu0 0.0
    %286 = vmatprep.subr.mxu0 0.0
    %287 = vmatpush1.msra.mxu0 0.0
    %288 = vmatprep.subr.mxu0 0.0
    %289 = vmatpush1.msra.mxu0 0.0
    %290 = vmatprep.subr.mxu0 0.0
    %291 = vmatpush1.msra.mxu0 0.0
    %292 = vmatprep.subr.mxu0 0.0
    %293 = vmatpush1.msra.mxu0 0.0
    %294 = vmatprep.subr.mxu0 0.0
    %295 = vmatpush1.msra.mxu0 0.0
    %296 = vmatprep.subr.mxu0 0.0
    %297 = vmatpush1.msra.mxu0 0.0
    %298 = vmatprep.subr.mxu0 0.0
    %299 = vmatpush1.msra.mxu0 0.0
    %300 = vmatprep.subr.mxu0 0.0
    %301 = vmatpush1.msra.mxu0 %v242
    %302 = vmatprep.subr.mxu0 0.0
    %303 = vmatpush1.msra.mxu0 %v241
    %304 = vmatprep.subr.mxu0 0.0
    %305 = vmatpush1.msra.mxu0 %v240
    %306 = vmatprep.subr.mxu0 0.0
    %307 = vmatpush1.msra.mxu0 %v239
    %308 = vmatprep.subr.mxu0 0.0
    %309 = vmatpush2.msra.mxu0 0.0
    %310 = vmatprep.subr.mxu0 0.0
    %311 = vmatpush2.msra.mxu0 0.0
    %312 = vmatprep.subr.mxu0 0.0
    %313 = vmatpush2.msra.mxu0 0.0
    %314 = vmatprep.subr.mxu0 0.0
    %315 = vmatpush2.msra.mxu0 0.0
    %316 = vmatprep.subr.mxu0 0.0
    %317 = vmatpush2.msra.mxu0 0.0
    %318 = vmatprep.subr.mxu0 0.0
    %319 = vmatpush2.msra.mxu0 0.0
    %320 = vmatprep.subr.mxu0 0.0
    %321 = vmatpush2.msra.mxu0 0.0
    %322 = vmatprep.subr.mxu0 0.0
    %323 = vmatpush2.msra.mxu0 0.0
    %324 = vmatprep.subr.mxu0 0.0
    %325 = vmatpush2.msra.mxu0 0.0
    %326 = vmatprep.subr.mxu0 0.0
    %327 = vmatpush2.msra.mxu0 0.0
    %328 = vmatprep.subr.mxu0 0.0
    %329 = vmatpush2.msra.mxu0 0.0
    %330 = vmatprep.subr.mxu0 0.0
    %331 = vmatpush2.msra.mxu0 0.0
    %332 = vmatprep.subr.mxu0 0.0
    %333 = vmatpush2.msra.mxu0 0.0
    %334 = vmatprep.subr.mxu0 0.0
    %335 = vmatpush2.msra.mxu0 0.0
    %336 = vmatprep.subr.mxu0 0.0
    %337 = vmatpush2.msra.mxu0 0.0
    %338 = vmatprep.subr.mxu0 0.0
    %339 = vmatpush2.msra.mxu0 0.0
    %340 = vmatprep.mubr.f32.mxu0 0.0
    %341 = vmatmul.mubr.f32.gmra.mxu0 %v265
    %v342 = vpop.f32.mrf.mxu0
    %v343 = vadd.f32 %v246, %v342
    %v344 = vpop.f32.mrf.mxu0
    %345 = vmatprep.mubr.f32.mxu0 0.0
    %346 = vmatmul.mubr.f32.gmra.mxu0 %v268
    %v347 = vpop.f32.mrf.mxu0
    %v348 = vadd.f32 %v251, %v347
    %v349 = vpop.f32.mrf.mxu0
    %350 = vmatprep.mubr.f32.mxu0 0.0
    %351 = vmatmul.mubr.f32.gmra.mxu0 %v271
    %v352 = vpop.f32.mrf.mxu0
    %v353 = vadd.f32 %v256, %v352
    %v354 = vpop.f32.mrf.mxu0
    %355 = vmatprep.mubr.f32.mxu0 0.0
    %356 = vmatmul.mubr.f32.gmra.mxu0 %v274
    %v357 = vpop.f32.mrf.mxu0
    %v358 = vadd.f32 %v261, %v357
    %v359 = vpop.f32.mrf.mxu0
    %360 = vdwg.mxu0
    %v361 = vmax.f32 %v343, 0.0
    %v362 = vmax.f32 %v348, 0.0
    %v363 = vmax.f32 %v353, 0.0
    %v364 = vmax.f32 %v358, 0.0
    %v365 = vmax.f32 %v361, 0.0
    %v366 = vmax.f32 %v362, 0.0
    %v367 = vmax.f32 %v363, 0.0
    %v368 = vmax.f32 %v364, 0.0
    %373 = vrot.lane.b32.xlu0 %v361, 127
    %v374 = vpop.permute.xlu0 %373
    %375 = vrot.lane.b32.xlu0 %v362, 127
    %v376 = vpop.permute.xlu0 %375
    %377 = vrot.lane.b32.xlu0 %v363, 127
    %v378 = vpop.permute.xlu0 %377
    %379 = vrot.lane.b32.xlu0 %v364, 127
    %v380 = vpop.permute.xlu0 %379
    %v385 = vmax.f32 %v361, %v374
    %v386 = vmax.f32 %v362, %v376
    %v387 = vmax.f32 %v363, %v378
    %v388 = vmax.f32 %v364, %v380
    %393 = vrot.lane.b32.xlu0 %v385, 127
    %v394 = vpop.permute.xlu0 %393
    %395 = vrot.lane.b32.xlu0 %v386, 127
    %v396 = vpop.permute.xlu0 %395
    %397 = vrot.lane.b32.xlu0 %v387, 127
    %v398 = vpop.permute.xlu0 %397
    %399 = vrot.lane.b32.xlu0 %v388, 127
    %v400 = vpop.permute.xlu0 %399
    %405 = vrot.lane.b32.xlu0 %v385, 126
    %v406 = vpop.permute.xlu0 %405
    %407 = vrot.lane.b32.xlu0 %v386, 126
    %v408 = vpop.permute.xlu0 %407
    %409 = vrot.lane.b32.xlu0 %v387, 126
    %v410 = vpop.permute.xlu0 %409
    %411 = vrot.lane.b32.xlu0 %v388, 126
    %v412 = vpop.permute.xlu0 %411
    %417 = vrot.lane.b32.xlu0 %v385, 125
    %v418 = vpop.permute.xlu0 %417
    %419 = vrot.lane.b32.xlu0 %v386, 125
    %v420 = vpop.permute.xlu0 %419
    %421 = vrot.lane.b32.xlu0 %v387, 125
    %v422 = vpop.permute.xlu0 %421
    %423 = vrot.lane.b32.xlu0 %v388, 125
    %v424 = vpop.permute.xlu0 %423
    %429 = vrot.lane.b32.xlu0 %v385, 124
    %v430 = vpop.permute.xlu0 %429
    %431 = vrot.lane.b32.xlu0 %v386, 124
    %v432 = vpop.permute.xlu0 %431
    %433 = vrot.lane.b32.xlu0 %v387, 124
    %v434 = vpop.permute.xlu0 %433
    %435 = vrot.lane.b32.xlu0 %v388, 124
    %v436 = vpop.permute.xlu0 %435
    %441 = vrot.lane.b32.xlu0 %v385, 123
    %v442 = vpop.permute.xlu0 %441
    %443 = vrot.lane.b32.xlu0 %v386, 123
    %v444 = vpop.permute.xlu0 %443
    %445 = vrot.lane.b32.xlu0 %v387, 123
    %v446 = vpop.permute.xlu0 %445
    %447 = vrot.lane.b32.xlu0 %v388, 123
    %v448 = vpop.permute.xlu0 %447
    %453 = vrot.lane.b32.xlu0 %v385, 122
    %v454 = vpop.permute.xlu0 %453
    %455 = vrot.lane.b32.xlu0 %v386, 122
    %v456 = vpop.permute.xlu0 %455
    %457 = vrot.lane.b32.xlu0 %v387, 122
    %v458 = vpop.permute.xlu0 %457
    %459 = vrot.lane.b32.xlu0 %v388, 122
    %v460 = vpop.permute.xlu0 %459
    %465 = vrot.lane.b32.xlu0 %v385, 121
    %v466 = vpop.permute.xlu0 %465
    %467 = vrot.lane.b32.xlu0 %v386, 121
    %v468 = vpop.permute.xlu0 %467
    %469 = vrot.lane.b32.xlu0 %v387, 121
    %v470 = vpop.permute.xlu0 %469
    %471 = vrot.lane.b32.xlu0 %v388, 121
    %v472 = vpop.permute.xlu0 %471
    %vm477 = vcmask 7168
    %v478 = vsel %vm477, %v365, %v385
    %v479 = vsel %vm477, %v366, %v386
    %v480 = vsel %vm477, %v367, %v387
    %v481 = vsel %vm477, %v368, %v388
    %vm482 = vcmask 15360
    %v483 = vsel %vm482, %v478, %v394
    %v484 = vsel %vm482, %v479, %v396
    %v485 = vsel %vm482, %v480, %v398
    %v486 = vsel %vm482, %v481, %v400
    %vm487 = vcmask 23552
    %v488 = vsel %vm487, %v483, %v406
    %v489 = vsel %vm487, %v484, %v408
    %v490 = vsel %vm487, %v485, %v410
    %v491 = vsel %vm487, %v486, %v412
    %v492 = vsel %vm211, %v488, %v418
    %v493 = vsel %vm211, %v489, %v420
    %v494 = vsel %vm211, %v490, %v422
    %v495 = vsel %vm211, %v491, %v424
    %vm496 = vcmask 39936
    %v497 = vsel %vm496, %v492, %v430
    %v498 = vsel %vm496, %v493, %v432
    %v499 = vsel %vm496, %v494, %v434
    %v500 = vsel %vm496, %v495, %v436
    %vm501 = vcmask 48128
    %v502 = vsel %vm501, %v497, %v442
    %v503 = vsel %vm501, %v498, %v444
    %v504 = vsel %vm501, %v499, %v446
    %v505 = vsel %vm501, %v500, %v448
    %vm506 = vcmask 56320
    %v507 = vsel %vm506, %v502, %v454
    %v508 = vsel %vm506, %v503, %v456
    %v509 = vsel %vm506, %v504, %v458
    %v510 = vsel %vm506, %v505, %v460
    %vm511 = vcmask 64512
    %v512 = vsel %vm511, %v507, %v466
    %v513 = vsel %vm511, %v508, %v468
    %v514 = vsel %vm511, %v509, %v470
    %v515 = vsel %vm511, %v510, %v472
    %520 = vrot.lane.b32.xlu0 %v512, 4
    %v521 = vpop.permute.xlu0 %520
    %522 = vrot.lane.b32.xlu0 %v513, 4
    %v523 = vpop.permute.xlu0 %522
    %524 = vrot.lane.b32.xlu0 %v514, 4
    %v525 = vpop.permute.xlu0 %524
    %526 = vrot.lane.b32.xlu0 %v515, 4
    %v527 = vpop.permute.xlu0 %526
    %v532 = vsel %vm211, 0.0, %v521
    %v533 = vsel %vm211, 0.0, %v523
    %v534 = vsel %vm211, 0.0, %v525
    %v535 = vsel %vm211, 0.0, %v527
    %vm536 = vcmask 105472
    %v537 = vsel %vm536, %v532, 0.0
    %v538 = vsel %vm536, %v533, 0.0
    %v539 = vsel %vm536, %v534, 0.0
    %v540 = vsel %vm536, %v535, 0.0
    %545 = vrot.lane.b32.xlu0 %v537, 127
    %v546 = vpop.permute.xlu0 %545
    %547 = vrot.lane.b32.xlu0 %v538, 127
    %v548 = vpop.permute.xlu0 %547
    %549 = vrot.lane.b32.xlu0 %v539, 127
    %v550 = vpop.permute.xlu0 %549
    %551 = vrot.lane.b32.xlu0 %v540, 127
    %v552 = vpop.permute.xlu0 %551
    %557 = vrot.lane.b32.xlu0 %v537, 126
    %v558 = vpop.permute.xlu0 %557
    %559 = vrot.lane.b32.xlu0 %v538, 126
    %v560 = vpop.permute.xlu0 %559
    %561 = vrot.lane.b32.xlu0 %v539, 126
    %v562 = vpop.permute.xlu0 %561
    %563 = vrot.lane.b32.xlu0 %v540, 126
    %v564 = vpop.permute.xlu0 %563
    %569 = vrot.lane.b32.xlu0 %v537, 125
    %v570 = vpop.permute.xlu0 %569
    %571 = vrot.lane.b32.xlu0 %v538, 125
    %v572 = vpop.permute.xlu0 %571
    %573 = vrot.lane.b32.xlu0 %v539, 125
    %v574 = vpop.permute.xlu0 %573
    %575 = vrot.lane.b32.xlu0 %v540, 125
    %v576 = vpop.permute.xlu0 %575
    %581 = vrot.lane.b32.xlu0 %v537, 124
    %v582 = vpop.permute.xlu0 %581
    %583 = vrot.lane.b32.xlu0 %v538, 124
    %v584 = vpop.permute.xlu0 %583
    %585 = vrot.lane.b32.xlu0 %v539, 124
    %v586 = vpop.permute.xlu0 %585
    %587 = vrot.lane.b32.xlu0 %v540, 124
    %v588 = vpop.permute.xlu0 %587
    %593 = vrot.lane.b32.xlu0 %v537, 123
    %v594 = vpop.permute.xlu0 %593
    %595 = vrot.lane.b32.xlu0 %v538, 123
    %v596 = vpop.permute.xlu0 %595
    %597 = vrot.lane.b32.xlu0 %v539, 123
    %v598 = vpop.permute.xlu0 %597
    %599 = vrot.lane.b32.xlu0 %v540, 123
    %v600 = vpop.permute.xlu0 %599
    %605 = vrot.lane.b32.xlu0 %v537, 122
    %v606 = vpop.permute.xlu0 %605
    %607 = vrot.lane.b32.xlu0 %v538, 122
    %v608 = vpop.permute.xlu0 %607
    %609 = vrot.lane.b32.xlu0 %v539, 122
    %v610 = vpop.permute.xlu0 %609
    %611 = vrot.lane.b32.xlu0 %v540, 122
    %v612 = vpop.permute.xlu0 %611
    %617 = vrot.lane.b32.xlu0 %v537, 121
    %v618 = vpop.permute.xlu0 %617
    %619 = vrot.lane.b32.xlu0 %v538, 121
    %v620 = vpop.permute.xlu0 %619
    %621 = vrot.lane.b32.xlu0 %v539, 121
    %v622 = vpop.permute.xlu0 %621
    %623 = vrot.lane.b32.xlu0 %v540, 121
    %v624 = vpop.permute.xlu0 %623
    %630 = vset.pattern.permute.xlu0 0
    %631 = vperm.xlu0 %630, %v196
    %v632 = vpop.permute.xlu0 %631
    %635 = vset.pattern.permute.xlu0 0
    %636 = vperm.xlu0 %635, %v197
    %v637 = vpop.permute.xlu0 %636
    %640 = vset.pattern.permute.xlu0 0
    %641 = vperm.xlu0 %640, %v198
    %v642 = vpop.permute.xlu0 %641
    %645 = vset.pattern.permute.xlu0 0
    %646 = vperm.xlu0 %645, %v199
    %v647 = vpop.permute.xlu0 %646
    %650 = vset.pattern.permute.xlu0 0
    %651 = vperm.xlu0 %650, %v200
    %v652 = vpop.permute.xlu0 %651
    %655 = vset.pattern.permute.xlu0 0
    %656 = vperm.xlu0 %655, %v201
    %v657 = vpop.permute.xlu0 %656
    %660 = vset.pattern.permute.xlu0 0
    %661 = vperm.xlu0 %660, %v202
    %v662 = vpop.permute.xlu0 %661
    %665 = vset.pattern.permute.xlu0 0
    %666 = vperm.xlu0 %665, %v203
    %v667 = vpop.permute.xlu0 %666
    %669 = vmatprep.subr.mxu0 0.0
    %670 = vmatpush1.msra.mxu0 %v576
    %671 = vmatprep.subr.mxu0 0.0
    %672 = vmatpush1.msra.mxu0 %v574
    %673 = vmatprep.subr.mxu0 0.0
    %674 = vmatpush1.msra.mxu0 %v572
    %675 = vmatprep.subr.mxu0 0.0
    %676 = vmatpush1.msra.mxu0 %v570
    %677 = vmatprep.subr.mxu0 0.0
    %678 = vmatpush1.msra.mxu0 %v564
    %679 = vmatprep.subr.mxu0 0.0
    %680 = vmatpush1.msra.mxu0 %v562
    %681 = vmatprep.subr.mxu0 0.0
    %682 = vmatpush1.msra.mxu0 %v560
    %683 = vmatprep.subr.mxu0 0.0
    %684 = vmatpush1.msra.mxu0 %v558
    %685 = vmatprep.subr.mxu0 0.0
    %686 = vmatpush1.msra.mxu0 %v552
    %687 = vmatprep.subr.mxu0 0.0
    %688 = vmatpush1.msra.mxu0 %v550
    %689 = vmatprep.subr.mxu0 0.0
    %690 = vmatpush1.msra.mxu0 %v548
    %691 = vmatprep.subr.mxu0 0.0
    %692 = vmatpush1.msra.mxu0 %v546
    %693 = vmatprep.subr.mxu0 0.0
    %694 = vmatpush1.msra.mxu0 %v540
    %695 = vmatprep.subr.mxu0 0.0
    %696 = vmatpush1.msra.mxu0 %v539
    %697 = vmatprep.subr.mxu0 0.0
    %698 = vmatpush1.msra.mxu0 %v538
    %699 = vmatprep.subr.mxu0 0.0
    %700 = vmatpush1.msra.mxu0 %v537
    %701 = vmatprep.subr.mxu0 0.0
    %702 = vmatpush2.msra.mxu0 %v624
    %703 = vmatprep.subr.mxu0 0.0
    %704 = vmatpush2.msra.mxu0 %v622
    %705 = vmatprep.subr.mxu0 0.0
    %706 = vmatpush2.msra.mxu0 %v620
    %707 = vmatprep.subr.mxu0 0.0
    %708 = vmatpush2.msra.mxu0 %v618
    %709 = vmatprep.subr.mxu0 0.0
    %710 = vmatpush2.msra.mxu0 %v612
    %711 = vmatprep.subr.mxu0 0.0
    %712 = vmatpush2.msra.mxu0 %v610
    %713 = vmatprep.subr.mxu0 0.0
    %714 = vmatpush2.msra.mxu0 %v608
    %715 = vmatprep.subr.mxu0 0.0
    %716 = vmatpush2.msra.mxu0 %v606
    %717 = vmatprep.subr.mxu0 0.0
    %718 = vmatpush2.msra.mxu0 %v600
    %719 = vmatprep.subr.mxu0 0.0
    %720 = vmatpush2.msra.mxu0 %v598
    %721 = vmatprep.subr.mxu0 0.0
    %722 = vmatpush2.msra.mxu0 %v596
    %723 = vmatprep.subr.mxu0 0.0
    %724 = vmatpush2.msra.mxu0 %v594
    %725 = vmatprep.subr.mxu0 0.0
    %726 = vmatpush2.msra.mxu0 %v588
    %727 = vmatprep.subr.mxu0 0.0
    %728 = vmatpush2.msra.mxu0 %v586
    %729 = vmatprep.subr.mxu0 0.0
    %730 = vmatpush2.msra.mxu0 %v584
    %731 = vmatprep.subr.mxu0 0.0
    %732 = vmatpush2.msra.mxu0 %v582
    %733 = vmatprep.mubr.f32.mxu0 %v169
    %734 = vmatmul.mubr.f32.gmra.mxu0 %v168
    %v735 = vpop.f32.mrf.mxu0
    %v736 = vadd.f32 %v632, %v735
    %v737 = vpop.f32.mrf.mxu0
    %738 = vmatprep.mubr.f32.mxu0 %v171
    %739 = vmatmul.mubr.f32.gmra.mxu0 %v170
    %v740 = vpop.f32.mrf.mxu0
    %v741 = vadd.f32 %v637, %v740
    %v742 = vpop.f32.mrf.mxu0
    %743 = vmatprep.mubr.f32.mxu0 %v173
    %744 = vmatmul.mubr.f32.gmra.mxu0 %v172
    %v745 = vpop.f32.mrf.mxu0
    %v746 = vadd.f32 %v642, %v745
    %v747 = vpop.f32.mrf.mxu0
    %748 = vmatprep.mubr.f32.mxu0 %v175
    %749 = vmatmul.mubr.f32.gmra.mxu0 %v174
    %v750 = vpop.f32.mrf.mxu0
    %v751 = vadd.f32 %v647, %v750
    %v752 = vpop.f32.mrf.mxu0
    %753 = vmatprep.mubr.f32.mxu0 %v177
    %754 = vmatmul.mubr.f32.gmra.mxu0 %v176
    %v755 = vpop.f32.mrf.mxu0
    %v756 = vadd.f32 %v652, %v755
    %v757 = vpop.f32.mrf.mxu0
    %758 = vmatprep.mubr.f32.mxu0 %v179
    %759 = vmatmul.mubr.f32.gmra.mxu0 %v178
    %v760 = vpop.f32.mrf.mxu0
    %v761 = vadd.f32 %v657, %v760
    %v762 = vpop.f32.mrf.mxu0
    %763 = vmatprep.mubr.f32.mxu0 %v181
    %764 = vmatmul.mubr.f32.gmra.mxu0 %v180
    %v765 = vpop.f32.mrf.mxu0
    %v766 = vadd.f32 %v662, %v765
    %v767 = vpop.f32.mrf.mxu0
    %768 = vmatprep.mubr.f32.mxu0 %v183
    %769 = vmatmul.mubr.f32.gmra.mxu0 %v182
    %v770 = vpop.f32.mrf.mxu0
    %v771 = vadd.f32 %v667, %v770
    %v772 = vpop.f32.mrf.mxu0
    %773 = vdwg.mxu0
    %v774 = vmax.f32 %v736, 0.0
    %v775 = vmax.f32 %v741, 0.0
    %v776 = vmax.f32 %v746, 0.0
    %v777 = vmax.f32 %v751, 0.0
    %v778 = vmax.f32 %v756, 0.0
    %v779 = vmax.f32 %v761, 0.0
    %v780 = vmax.f32 %v766, 0.0
    %v781 = vmax.f32 %v771, 0.0
    %v782 = vmax.f32 %v774, 0.0
    %v783 = vmax.f32 %v775, 0.0
    %v784 = vmax.f32 %v776, 0.0
    %v785 = vmax.f32 %v777, 0.0
    %v786 = vmax.f32 %v778, 0.0
    %v787 = vmax.f32 %v779, 0.0
    %v788 = vmax.f32 %v780, 0.0
    %v789 = vmax.f32 %v781, 0.0
    %798 = vrot.lane.b32.xlu0 %v774, 127
    %v799 = vpop.permute.xlu0 %798
    %800 = vrot.lane.b32.xlu0 %v775, 127
    %v801 = vpop.permute.xlu0 %800
    %802 = vrot.lane.b32.xlu0 %v776, 127
    %v803 = vpop.permute.xlu0 %802
    %804 = vrot.lane.b32.xlu0 %v777, 127
    %v805 = vpop.permute.xlu0 %804
    %806 = vrot.lane.b32.xlu0 %v778, 127
    %v807 = vpop.permute.xlu0 %806
    %808 = vrot.lane.b32.xlu0 %v779, 127
    %v809 = vpop.permute.xlu0 %808
    %810 = vrot.lane.b32.xlu0 %v780, 127
    %v811 = vpop.permute.xlu0 %810
    %812 = vrot.lane.b32.xlu0 %v781, 127
    %v813 = vpop.permute.xlu0 %812
    %v822 = vmax.f32 %v774, %v799
    %v823 = vmax.f32 %v775, %v801
    %v824 = vmax.f32 %v776, %v803
    %v825 = vmax.f32 %v777, %v805
    %v826 = vmax.f32 %v778, %v807
    %v827 = vmax.f32 %v779, %v809
    %v828 = vmax.f32 %v780, %v811
    %v829 = vmax.f32 %v781, %v813
    %838 = vrot.lane.b32.xlu0 %v822, 127
    %v839 = vpop.permute.xlu0 %838
    %840 = vrot.lane.b32.xlu0 %v823, 127
    %v841 = vpop.permute.xlu0 %840
    %842 = vrot.lane.b32.xlu0 %v824, 127
    %v843 = vpop.permute.xlu0 %842
    %844 = vrot.lane.b32.xlu0 %v825, 127
    %v845 = vpop.permute.xlu0 %844
    %846 = vrot.lane.b32.xlu0 %v826, 127
    %v847 = vpop.permute.xlu0 %846
    %848 = vrot.lane.b32.xlu0 %v827, 127
    %v849 = vpop.permute.xlu0 %848
    %850 = vrot.lane.b32.xlu0 %v828, 127
    %v851 = vpop.permute.xlu0 %850
    %852 = vrot.lane.b32.xlu0 %v829, 127
    %v853 = vpop.permute.xlu0 %852
    %862 = vrot.lane.b32.xlu0 %v822, 126
    %v863 = vpop.permute.xlu0 %862
    %864 = vrot.lane.b32.xlu0 %v823, 126
    %v865 = vpop.permute.xlu0 %864
    %866 = vrot.lane.b32.xlu0 %v824, 126
    %v867 = vpop.permute.xlu0 %866
    %868 = vrot.lane.b32.xlu0 %v825, 126
    %v869 = vpop.permute.xlu0 %868
    %870 = vrot.lane.b32.xlu0 %v826, 126
    %v871 = vpop.permute.xlu0 %870
    %872 = vrot.lane.b32.xlu0 %v827, 126
    %v873 = vpop.permute.xlu0 %872
    %874 = vrot.lane.b32.xlu0 %v828, 126
    %v875 = vpop.permute.xlu0 %874
    %876 = vrot.lane.b32.xlu0 %v829, 126
    %v877 = vpop.permute.xlu0 %876
    %886 = vrot.lane.b32.xlu0 %v822, 125
    %v887 = vpop.permute.xlu0 %886
    %888 = vrot.lane.b32.xlu0 %v823, 125
    %v889 = vpop.permute.xlu0 %888
    %890 = vrot.lane.b32.xlu0 %v824, 125
    %v891 = vpop.permute.xlu0 %890
    %892 = vrot.lane.b32.xlu0 %v825, 125
    %v893 = vpop.permute.xlu0 %892
    %894 = vrot.lane.b32.xlu0 %v826, 125
    %v895 = vpop.permute.xlu0 %894
    %896 = vrot.lane.b32.xlu0 %v827, 125
    %v897 = vpop.permute.xlu0 %896
    %898 = vrot.lane.b32.xlu0 %v828, 125
    %v899 = vpop.permute.xlu0 %898
    %900 = vrot.lane.b32.xlu0 %v829, 125
    %v901 = vpop.permute.xlu0 %900
    %918 = vrot.lane.b32.xlu0 %v782, 124
    %v919 = vpop.permute.xlu0 %918
    %920 = vrot.lane.b32.xlu0 %v783, 124
    %v921 = vpop.permute.xlu0 %920
    %922 = vrot.lane.b32.xlu0 %v784, 124
    %v923 = vpop.permute.xlu0 %922
    %924 = vrot.lane.b32.xlu0 %v785, 124
    %v925 = vpop.permute.xlu0 %924
    %926 = vrot.lane.b32.xlu0 %v786, 124
    %v927 = vpop.permute.xlu0 %926
    %928 = vrot.lane.b32.xlu0 %v787, 124
    %v929 = vpop.permute.xlu0 %928
    %930 = vrot.lane.b32.xlu0 %v788, 124
    %v931 = vpop.permute.xlu0 %930
    %932 = vrot.lane.b32.xlu0 %v789, 124
    %v933 = vpop.permute.xlu0 %932
    %v942 = vsel %vm477, %v782, %v822
    %v943 = vsel %vm477, %v783, %v823
    %v944 = vsel %vm477, %v784, %v824
    %v945 = vsel %vm477, %v785, %v825
    %v946 = vsel %vm477, %v786, %v826
    %v947 = vsel %vm477, %v787, %v827
    %v948 = vsel %vm477, %v788, %v828
    %v949 = vsel %vm477, %v789, %v829
    %v950 = vsel %vm482, %v942, %v839
    %v951 = vsel %vm482, %v943, %v841
    %v952 = vsel %vm482, %v944, %v843
    %v953 = vsel %vm482, %v945, %v845
    %v954 = vsel %vm482, %v946, %v847
    %v955 = vsel %vm482, %v947, %v849
    %v956 = vsel %vm482, %v948, %v851
    %v957 = vsel %vm482, %v949, %v853
    %v958 = vsel %vm487, %v950, %v863
    %v959 = vsel %vm487, %v951, %v865
    %v960 = vsel %vm487, %v952, %v867
    %v961 = vsel %vm487, %v953, %v869
    %v962 = vsel %vm487, %v954, %v871
    %v963 = vsel %vm487, %v955, %v873
    %v964 = vsel %vm487, %v956, %v875
    %v965 = vsel %vm487, %v957, %v877
    %v966 = vsel %vm211, %v958, %v887
    %v967 = vsel %vm211, %v959, %v889
    %v968 = vsel %vm211, %v960, %v891
    %v969 = vsel %vm211, %v961, %v893
    %v970 = vsel %vm211, %v962, %v895
    %v971 = vsel %vm211, %v963, %v897
    %v972 = vsel %vm211, %v964, %v899
    %v973 = vsel %vm211, %v965, %v901
    %v974 = vsel %vm496, %v966, %v919
    %v975 = vsel %vm496, %v967, %v921
    %v976 = vsel %vm496, %v968, %v923
    %v977 = vsel %vm496, %v969, %v925
    %v978 = vsel %vm496, %v970, %v927
    %v979 = vsel %vm496, %v971, %v929
    %v980 = vsel %vm496, %v972, %v931
    %v981 = vsel %vm496, %v973, %v933
    %990 = vrot.lane.b32.xlu0 %v974, 4
    %v991 = vpop.permute.xlu0 %990
    %992 = vrot.lane.b32.xlu0 %v975, 4
    %v993 = vpop.permute.xlu0 %992
    %994 = vrot.lane.b32.xlu0 %v976, 4
    %v995 = vpop.permute.xlu0 %994
    %996 = vrot.lane.b32.xlu0 %v977, 4
    %v997 = vpop.permute.xlu0 %996
    %998 = vrot.lane.b32.xlu0 %v978, 4
    %v999 = vpop.permute.xlu0 %998
    %1000 = vrot.lane.b32.xlu0 %v979, 4
    %v1001 = vpop.permute.xlu0 %1000
    %1002 = vrot.lane.b32.xlu0 %v980, 4
    %v1003 = vpop.permute.xlu0 %1002
    %1004 = vrot.lane.b32.xlu0 %v981, 4
    %v1005 = vpop.permute.xlu0 %1004
    %v1014 = vsel %vm211, 0.0, %v991
    %v1015 = vsel %vm211, 0.0, %v993
    %v1016 = vsel %vm211, 0.0, %v995
    %v1017 = vsel %vm211, 0.0, %v997
    %v1018 = vsel %vm211, 0.0, %v999
    %v1019 = vsel %vm211, 0.0, %v1001
    %v1020 = vsel %vm211, 0.0, %v1003
    %v1021 = vsel %vm211, 0.0, %v1005
    %vm1022 = vcmask 80896
    %v1023 = vsel %vm1022, %v1014, 0.0
    %v1024 = vsel %vm1022, %v1015, 0.0
    %v1025 = vsel %vm1022, %v1016, 0.0
    %v1026 = vsel %vm1022, %v1017, 0.0
    %v1027 = vsel %vm1022, %v1018, 0.0
    %v1028 = vsel %vm1022, %v1019, 0.0
    %v1029 = vsel %vm1022, %v1020, 0.0
    %v1030 = vsel %vm1022, %v1021, 0.0
    %1039 = vrot.lane.b32.xlu0 %v1023, 127
    %v1040 = vpop.permute.xlu0 %1039
    %1041 = vrot.lane.b32.xlu0 %v1024, 127
    %v1042 = vpop.permute.xlu0 %1041
    %1043 = vrot.lane.b32.xlu0 %v1025, 127
    %v1044 = vpop.permute.xlu0 %1043
    %1045 = vrot.lane.b32.xlu0 %v1026, 127
    %v1046 = vpop.permute.xlu0 %1045
    %1047 = vrot.lane.b32.xlu0 %v1027, 127
    %v1048 = vpop.permute.xlu0 %1047
    %1049 = vrot.lane.b32.xlu0 %v1028, 127
    %v1050 = vpop.permute.xlu0 %1049
    %1051 = vrot.lane.b32.xlu0 %v1029, 127
    %v1052 = vpop.permute.xlu0 %1051
    %1053 = vrot.lane.b32.xlu0 %v1030, 127
    %v1054 = vpop.permute.xlu0 %1053
    %1063 = vrot.lane.b32.xlu0 %v1023, 126
    %v1064 = vpop.permute.xlu0 %1063
    %1065 = vrot.lane.b32.xlu0 %v1024, 126
    %v1066 = vpop.permute.xlu0 %1065
    %1067 = vrot.lane.b32.xlu0 %v1025, 126
    %v1068 = vpop.permute.xlu0 %1067
    %1069 = vrot.lane.b32.xlu0 %v1026, 126
    %v1070 = vpop.permute.xlu0 %1069
    %1071 = vrot.lane.b32.xlu0 %v1027, 126
    %v1072 = vpop.permute.xlu0 %1071
    %1073 = vrot.lane.b32.xlu0 %v1028, 126
    %v1074 = vpop.permute.xlu0 %1073
    %1075 = vrot.lane.b32.xlu0 %v1029, 126
    %v1076 = vpop.permute.xlu0 %1075
    %1077 = vrot.lane.b32.xlu0 %v1030, 126
    %v1078 = vpop.permute.xlu0 %1077
    %1087 = vrot.lane.b32.xlu0 %v1023, 125
    %v1088 = vpop.permute.xlu0 %1087
    %1089 = vrot.lane.b32.xlu0 %v1024, 125
    %v1090 = vpop.permute.xlu0 %1089
    %1091 = vrot.lane.b32.xlu0 %v1025, 125
    %v1092 = vpop.permute.xlu0 %1091
    %1093 = vrot.lane.b32.xlu0 %v1026, 125
    %v1094 = vpop.permute.xlu0 %1093
    %1095 = vrot.lane.b32.xlu0 %v1027, 125
    %v1096 = vpop.permute.xlu0 %1095
    %1097 = vrot.lane.b32.xlu0 %v1028, 125
    %v1098 = vpop.permute.xlu0 %1097
    %1099 = vrot.lane.b32.xlu0 %v1029, 125
    %v1100 = vpop.permute.xlu0 %1099
    %1101 = vrot.lane.b32.xlu0 %v1030, 125
    %v1102 = vpop.permute.xlu0 %1101
    %1111 = vrot.lane.b32.xlu0 %v1023, 124
    %v1112 = vpop.permute.xlu0 %1111
    %1113 = vrot.lane.b32.xlu0 %v1024, 124
    %v1114 = vpop.permute.xlu0 %1113
    %1115 = vrot.lane.b32.xlu0 %v1025, 124
    %v1116 = vpop.permute.xlu0 %1115
    %1117 = vrot.lane.b32.xlu0 %v1026, 124
    %v1118 = vpop.permute.xlu0 %1117
    %1119 = vrot.lane.b32.xlu0 %v1027, 124
    %v1120 = vpop.permute.xlu0 %1119
    %1121 = vrot.lane.b32.xlu0 %v1028, 124
    %v1122 = vpop.permute.xlu0 %1121
    %1123 = vrot.lane.b32.xlu0 %v1029, 124
    %v1124 = vpop.permute.xlu0 %1123
    %1125 = vrot.lane.b32.xlu0 %v1030, 124
    %v1126 = vpop.permute.xlu0 %1125
    %1135 = vrot.lane.b32.xlu0 %v1023, 123
    %v1136 = vpop.permute.xlu0 %1135
    %1137 = vrot.lane.b32.xlu0 %v1024, 123
    %v1138 = vpop.permute.xlu0 %1137
    %1139 = vrot.lane.b32.xlu0 %v1025, 123
    %v1140 = vpop.permute.xlu0 %1139
    %1141 = vrot.lane.b32.xlu0 %v1026, 123
    %v1142 = vpop.permute.xlu0 %1141
    %1143 = vrot.lane.b32.xlu0 %v1027, 123
    %v1144 = vpop.permute.xlu0 %1143
    %1145 = vrot.lane.b32.xlu0 %v1028, 123
    %v1146 = vpop.permute.xlu0 %1145
    %1147 = vrot.lane.b32.xlu0 %v1029, 123
    %v1148 = vpop.permute.xlu0 %1147
    %1149 = vrot.lane.b32.xlu0 %v1030, 123
    %v1150 = vpop.permute.xlu0 %1149
    %1159 = vrot.lane.b32.xlu0 %v1023, 122
    %v1160 = vpop.permute.xlu0 %1159
    %1161 = vrot.lane.b32.xlu0 %v1024, 122
    %v1162 = vpop.permute.xlu0 %1161
    %1163 = vrot.lane.b32.xlu0 %v1025, 122
    %v1164 = vpop.permute.xlu0 %1163
    %1165 = vrot.lane.b32.xlu0 %v1026, 122
    %v1166 = vpop.permute.xlu0 %1165
    %1167 = vrot.lane.b32.xlu0 %v1027, 122
    %v1168 = vpop.permute.xlu0 %1167
    %1169 = vrot.lane.b32.xlu0 %v1028, 122
    %v1170 = vpop.permute.xlu0 %1169
    %1171 = vrot.lane.b32.xlu0 %v1029, 122
    %v1172 = vpop.permute.xlu0 %1171
    %1173 = vrot.lane.b32.xlu0 %v1030, 122
    %v1174 = vpop.permute.xlu0 %1173
    %1183 = vrot.lane.b32.xlu0 %v1023, 121
    %v1184 = vpop.permute.xlu0 %1183
    %1185 = vrot.lane.b32.xlu0 %v1024, 121
    %v1186 = vpop.permute.xlu0 %1185
    %1187 = vrot.lane.b32.xlu0 %v1025, 121
    %v1188 = vpop.permute.xlu0 %1187
    %1189 = vrot.lane.b32.xlu0 %v1026, 121
    %v1190 = vpop.permute.xlu0 %1189
    %1191 = vrot.lane.b32.xlu0 %v1027, 121
    %v1192 = vpop.permute.xlu0 %1191
    %1193 = vrot.lane.b32.xlu0 %v1028, 121
    %v1194 = vpop.permute.xlu0 %1193
    %1195 = vrot.lane.b32.xlu0 %v1029, 121
    %v1196 = vpop.permute.xlu0 %1195
    %1197 = vrot.lane.b32.xlu0 %v1030, 121
    %v1198 = vpop.permute.xlu0 %1197
    %1208 = vset.pattern.permute.xlu0 0
    %1209 = vperm.xlu0 %1208, %v204
    %v1210 = vpop.permute.xlu0 %1209
    %1213 = vset.pattern.permute.xlu0 0
    %1214 = vperm.xlu0 %1213, %v205
    %v1215 = vpop.permute.xlu0 %1214
    %1217 = vmatprep.subr.mxu0 0.0
    %1218 = vmatpush1.msra.mxu0 %v1054
    %1219 = vmatprep.subr.mxu0 0.0
    %1220 = vmatpush1.msra.mxu0 %v1052
    %1221 = vmatprep.subr.mxu0 0.0
    %1222 = vmatpush1.msra.mxu0 %v1050
    %1223 = vmatprep.subr.mxu0 0.0
    %1224 = vmatpush1.msra.mxu0 %v1048
    %1225 = vmatprep.subr.mxu0 0.0
    %1226 = vmatpush1.msra.mxu0 %v1046
    %1227 = vmatprep.subr.mxu0 0.0
    %1228 = vmatpush1.msra.mxu0 %v1044
    %1229 = vmatprep.subr.mxu0 0.0
    %1230 = vmatpush1.msra.mxu0 %v1042
    %1231 = vmatprep.subr.mxu0 0.0
    %1232 = vmatpush1.msra.mxu0 %v1040
    %1233 = vmatprep.subr.mxu0 0.0
    %1234 = vmatpush1.msra.mxu0 %v1030
    %1235 = vmatprep.subr.mxu0 0.0
    %1236 = vmatpush1.msra.mxu0 %v1029
    %1237 = vmatprep.subr.mxu0 0.0
    %1238 = vmatpush1.msra.mxu0 %v1028
    %1239 = vmatprep.subr.mxu0 0.0
    %1240 = vmatpush1.msra.mxu0 %v1027
    %1241 = vmatprep.subr.mxu0 0.0
    %1242 = vmatpush1.msra.mxu0 %v1026
    %1243 = vmatprep.subr.mxu0 0.0
    %1244 = vmatpush1.msra.mxu0 %v1025
    %1245 = vmatprep.subr.mxu0 0.0
    %1246 = vmatpush1.msra.mxu0 %v1024
    %1247 = vmatprep.subr.mxu0 0.0
    %1248 = vmatpush1.msra.mxu0 %v1023
    %1249 = vmatprep.subr.mxu0 0.0
    %1250 = vmatpush2.msra.mxu0 %v1102
    %1251 = vmatprep.subr.mxu0 0.0
    %1252 = vmatpush2.msra.mxu0 %v1100
    %1253 = vmatprep.subr.mxu0 0.0
    %1254 = vmatpush2.msra.mxu0 %v1098
    %1255 = vmatprep.subr.mxu0 0.0
    %1256 = vmatpush2.msra.mxu0 %v1096
    %1257 = vmatprep.subr.mxu0 0.0
    %1258 = vmatpush2.msra.mxu0 %v1094
    %1259 = vmatprep.subr.mxu0 0.0
    %1260 = vmatpush2.msra.mxu0 %v1092
    %1261 = vmatprep.subr.mxu0 0.0
    %1262 = vmatpush2.msra.mxu0 %v1090
    %1263 = vmatprep.subr.mxu0 0.0
    %1264 = vmatpush2.msra.mxu0 %v1088
    %1265 = vmatprep.subr.mxu0 0.0
    %1266 = vmatpush2.msra.mxu0 %v1078
    %1267 = vmatprep.subr.mxu0 0.0
    %1268 = vmatpush2.msra.mxu0 %v1076
    %1269 = vmatprep.subr.mxu0 0.0
    %1270 = vmatpush2.msra.mxu0 %v1074
    %1271 = vmatprep.subr.mxu0 0.0
    %1272 = vmatpush2.msra.mxu0 %v1072
    %1273 = vmatprep.subr.mxu0 0.0
    %1274 = vmatpush2.msra.mxu0 %v1070
    %1275 = vmatprep.subr.mxu0 0.0
    %1276 = vmatpush2.msra.mxu0 %v1068
    %1277 = vmatprep.subr.mxu0 0.0
    %1278 = vmatpush2.msra.mxu0 %v1066
    %1279 = vmatprep.subr.mxu0 0.0
    %1280 = vmatpush2.msra.mxu0 %v1064
    %1281 = vmatprep.mubr.f32.mxu0 %v185
    %1282 = vmatmul.mubr.f32.gmra.mxu0 %v184
    %v1283 = vpop.f32.mrf.mxu0
    %v1284 = vadd.f32 %v1210, %v1283
    %v1285 = vpop.f32.mrf.mxu0
    %1286 = vmatprep.mubr.f32.mxu0 %v189
    %1287 = vmatmul.mubr.f32.gmra.mxu0 %v188
    %v1288 = vpop.f32.mrf.mxu0
    %v1289 = vadd.f32 %v1215, %v1288
    %v1290 = vpop.f32.mrf.mxu0
    %1291 = vdwg.mxu0
    %1292 = vmatprep.subr.mxu0 0.0
    %1293 = vmatpush1.msra.mxu0 %v1150
    %1294 = vmatprep.subr.mxu0 0.0
    %1295 = vmatpush1.msra.mxu0 %v1148
    %1296 = vmatprep.subr.mxu0 0.0
    %1297 = vmatpush1.msra.mxu0 %v1146
    %1298 = vmatprep.subr.mxu0 0.0
    %1299 = vmatpush1.msra.mxu0 %v1144
    %1300 = vmatprep.subr.mxu0 0.0
    %1301 = vmatpush1.msra.mxu0 %v1142
    %1302 = vmatprep.subr.mxu0 0.0
    %1303 = vmatpush1.msra.mxu0 %v1140
    %1304 = vmatprep.subr.mxu0 0.0
    %1305 = vmatpush1.msra.mxu0 %v1138
    %1306 = vmatprep.subr.mxu0 0.0
    %1307 = vmatpush1.msra.mxu0 %v1136
    %1308 = vmatprep.subr.mxu0 0.0
    %1309 = vmatpush1.msra.mxu0 %v1126
    %1310 = vmatprep.subr.mxu0 0.0
    %1311 = vmatpush1.msra.mxu0 %v1124
    %1312 = vmatprep.subr.mxu0 0.0
    %1313 = vmatpush1.msra.mxu0 %v1122
    %1314 = vmatprep.subr.mxu0 0.0
    %1315 = vmatpush1.msra.mxu0 %v1120
    %1316 = vmatprep.subr.mxu0 0.0
    %1317 = vmatpush1.msra.mxu0 %v1118
    %1318 = vmatprep.subr.mxu0 0.0
    %1319 = vmatpush1.msra.mxu0 %v1116
    %1320 = vmatprep.subr.mxu0 0.0
    %1321 = vmatpush1.msra.mxu0 %v1114
    %1322 = vmatprep.subr.mxu0 0.0
    %1323 = vmatpush1.msra.mxu0 %v1112
    %1324 = vmatprep.subr.mxu0 0.0
    %1325 = vmatpush2.msra.mxu0 %v1198
    %1326 = vmatprep.subr.mxu0 0.0
    %1327 = vmatpush2.msra.mxu0 %v1196
    %1328 = vmatprep.subr.mxu0 0.0
    %1329 = vmatpush2.msra.mxu0 %v1194
    %1330 = vmatprep.subr.mxu0 0.0
    %1331 = vmatpush2.msra.mxu0 %v1192
    %1332 = vmatprep.subr.mxu0 0.0
    %1333 = vmatpush2.msra.mxu0 %v1190
    %1334 = vmatprep.subr.mxu0 0.0
    %1335 = vmatpush2.msra.mxu0 %v1188
    %1336 = vmatprep.subr.mxu0 0.0
    %1337 = vmatpush2.msra.mxu0 %v1186
    %1338 = vmatprep.subr.mxu0 0.0
    %1339 = vmatpush2.msra.mxu0 %v1184
    %1340 = vmatprep.subr.mxu0 0.0
    %1341 = vmatpush2.msra.mxu0 %v1174
    %1342 = vmatprep.subr.mxu0 0.0
    %1343 = vmatpush2.msra.mxu0 %v1172
    %1344 = vmatprep.subr.mxu0 0.0
    %1345 = vmatpush2.msra.mxu0 %v1170
    %1346 = vmatprep.subr.mxu0 0.0
    %1347 = vmatpush2.msra.mxu0 %v1168
    %1348 = vmatprep.subr.mxu0 0.0
    %1349 = vmatpush2.msra.mxu0 %v1166
    %1350 = vmatprep.subr.mxu0 0.0
    %1351 = vmatpush2.msra.mxu0 %v1164
    %1352 = vmatprep.subr.mxu0 0.0
    %1353 = vmatpush2.msra.mxu0 %v1162
    %1354 = vmatprep.subr.mxu0 0.0
    %1355 = vmatpush2.msra.mxu0 %v1160
    %1356 = vmatprep.mubr.f32.mxu0 %v187
    %1357 = vmatmul.mubr.f32.gmra.mxu0 %v186
    %v1358 = vpop.f32.mrf.mxu0
    %v1359 = vadd.f32 %v1284, %v1358
    %v1360 = vpop.f32.mrf.mxu0
    %1361 = vmatprep.mubr.f32.mxu0 %v191
    %1362 = vmatmul.mubr.f32.gmra.mxu0 %v190
    %v1363 = vpop.f32.mrf.mxu0
    %v1364 = vadd.f32 %v1289, %v1363
    %v1365 = vpop.f32.mrf.mxu0
    %1366 = vdwg.mxu0
    %v1367 = vmax.f32 %v1359, 0.0
    %v1368 = vmax.f32 %v1364, 0.0
    %v1369 = vmax.f32 %v1367, 0.0
    %v1370 = vmax.f32 %v1368, 0.0
    %1373 = vrot.lane.b32.xlu0 %v1367, 127
    %v1374 = vpop.permute.xlu0 %1373
    %1375 = vrot.lane.b32.xlu0 %v1368, 127
    %v1376 = vpop.permute.xlu0 %1375
    %v1379 = vmax.f32 %v1367, %v1374
    %v1380 = vmax.f32 %v1368, %v1376
    %1383 = vrot.lane.b32.xlu0 %v1379, 127
    %v1384 = vpop.permute.xlu0 %1383
    %1385 = vrot.lane.b32.xlu0 %v1380, 127
    %v1386 = vpop.permute.xlu0 %1385
    %1389 = vrot.lane.b32.xlu0 %v1379, 126
    %v1390 = vpop.permute.xlu0 %1389
    %1391 = vrot.lane.b32.xlu0 %v1380, 126
    %v1392 = vpop.permute.xlu0 %1391
    %v1395 = vsel %vm477, %v1369, %v1379
    %v1396 = vsel %vm477, %v1370, %v1380
    %v1397 = vsel %vm482, %v1395, %v1384
    %v1398 = vsel %vm482, %v1396, %v1386
    %v1399 = vsel %vm487, %v1397, %v1390
    %v1400 = vsel %vm487, %v1398, %v1392
    %v1402 = vrot.slane %v1399, 1
    %1403 = vrot.lane.b32.xlu0 %v1402, 4
    %v1404 = vpop.permute.xlu0 %1403
    %v1406 = vrot.slane %v1399, 2
    %1407 = vrot.lane.b32.xlu0 %v1406, 8
    %v1408 = vpop.permute.xlu0 %1407
    %v1410 = vrot.slane %v1399, 3
    %1411 = vrot.lane.b32.xlu0 %v1410, 12
    %v1412 = vpop.permute.xlu0 %1411
    %v1414 = vrot.slane %v1399, 4
    %1415 = vrot.lane.b32.xlu0 %v1414, 16
    %v1416 = vpop.permute.xlu0 %1415
    %v1418 = vrot.slane %v1399, 5
    %1419 = vrot.lane.b32.xlu0 %v1418, 20
    %v1420 = vpop.permute.xlu0 %1419
    %v1422 = vrot.slane %v1399, 6
    %1423 = vrot.lane.b32.xlu0 %v1422, 24
    %v1424 = vpop.permute.xlu0 %1423
    %v1426 = vrot.slane %v1399, 7
    %1427 = vrot.lane.b32.xlu0 %v1426, 28
    %v1428 = vpop.permute.xlu0 %1427
    %1431 = vrot.lane.b32.xlu0 %v1400, 32
    %v1432 = vpop.permute.xlu0 %1431
    %v1434 = vrot.slane %v1400, 1
    %1435 = vrot.lane.b32.xlu0 %v1434, 36
    %v1436 = vpop.permute.xlu0 %1435
    %v1438 = vrot.slane %v1400, 2
    %1439 = vrot.lane.b32.xlu0 %v1438, 40
    %v1440 = vpop.permute.xlu0 %1439
    %v1442 = vrot.slane %v1400, 3
    %1443 = vrot.lane.b32.xlu0 %v1442, 44
    %v1444 = vpop.permute.xlu0 %1443
    %v1446 = vrot.slane %v1400, 4
    %1447 = vrot.lane.b32.xlu0 %v1446, 48
    %v1448 = vpop.permute.xlu0 %1447
    %v1450 = vrot.slane %v1400, 5
    %1451 = vrot.lane.b32.xlu0 %v1450, 52
    %v1452 = vpop.permute.xlu0 %1451
    %v1454 = vrot.slane %v1400, 6
    %1455 = vrot.lane.b32.xlu0 %v1454, 56
    %v1456 = vpop.permute.xlu0 %1455
    %v1458 = vrot.slane %v1400, 7
    %1459 = vrot.lane.b32.xlu0 %v1458, 60
    %v1460 = vpop.permute.xlu0 %1459
    %v1462 = vsel %vm211, %v1399, %v1404
    %v1463 = vsel %vm511, %v1462, %v1408
    %vm1464 = vcmask 97280
    %v1465 = vsel %vm1464, %v1463, %v1412
    %vm1466 = vcmask 130048
    %v1467 = vsel %vm1466, %v1465, %v1416
    %v1468 = vsel %vm213, %v1467, %v1420
    %vm1469 = vcmask 195584
    %v1470 = vsel %vm1469, %v1468, %v1424
    %vm1471 = vcmask 228352
    %v1472 = vsel %vm1471, %v1470, %v1428
    %v1473 = vsel %vm263, %v1472, %v1432
    %vm1474 = vcmask 293888
    %v1475 = vsel %vm1474, %v1473, %v1436
    %vm1476 = vcmask 326656
    %v1477 = vsel %vm1476, %v1475, %v1440
    %vm1478 = vcmask 359424
    %v1479 = vsel %vm1478, %v1477, %v1444
    %vm1480 = vcmask 392192
    %v1481 = vsel %vm1480, %v1479, %v1448
    %vm1482 = vcmask 424960
    %v1483 = vsel %vm1482, %v1481, %v1452
    %vm1484 = vcmask 457728
    %v1485 = vsel %vm1484, %v1483, %v1456
    %vm1486 = vcmask 490496
    %v1487 = vsel %vm1486, %v1485, %v1460
    %s1488 = scalar_lea.vmem [#allocation2], 4
    %v1489 = vld [vmem:[%s1488] sm:$0xf]
    %1491 = vrot.lane.b32.xlu0 %v1489, 4
    %v1492 = vpop.permute.xlu0 %1491
    %v1494 = vsel %vm211, 0.0, %v1492
    %v1495 = vsel %vm213, %v1494, 0.0
    %v1497 = vrot.slane %v1495, 4
    %1498 = vrot.lane.b32.xlu0 %v1497, 127
    %v1499 = vpop.permute.xlu0 %1498
    %1501 = vrot.lane.b32.xlu0 %v1495, 126
    %v1502 = vpop.permute.xlu0 %1501
    %1504 = vrot.lane.b32.xlu0 %v1497, 125
    %v1505 = vpop.permute.xlu0 %1504
    %1507 = vrot.lane.b32.xlu0 %v1495, 124
    %v1508 = vpop.permute.xlu0 %1507
    %1510 = vrot.lane.b32.xlu0 %v1497, 123
    %v1511 = vpop.permute.xlu0 %1510
    %1513 = vrot.lane.b32.xlu0 %v1495, 122
    %v1514 = vpop.permute.xlu0 %1513
    %1516 = vrot.lane.b32.xlu0 %v1497, 121
    %v1517 = vpop.permute.xlu0 %1516
    %v1519 = vsel %vm238, %v1495, %v1499
    %v1520 = vsel %vm238, %v1502, %v1505
    %v1521 = vsel %vm238, %v1508, %v1511
    %v1522 = vsel %vm238, %v1514, %v1517
    %1523 = vmatprep.subr.mxu0 0.0
    %1524 = vmatpush1.msra.mxu0 0.0
    %1525 = vmatprep.subr.mxu0 0.0
    %1526 = vmatpush1.msra.mxu0 0.0
    %1527 = vmatprep.subr.mxu0 0.0
    %1528 = vmatpush1.msra.mxu0 0.0
    %1529 = vmatprep.subr.mxu0 0.0
    %1530 = vmatpush1.msra.mxu0 0.0
    %1531 = vmatprep.subr.mxu0 0.0
    %1532 = vmatpush1.msra.mxu0 0.0
    %1533 = vmatprep.subr.mxu0 0.0
    %1534 = vmatpush1.msra.mxu0 0.0
    %1535 = vmatprep.subr.mxu0 0.0
    %1536 = vmatpush1.msra.mxu0 0.0
    %1537 = vmatprep.subr.mxu0 0.0
    %1538 = vmatpush1.msra.mxu0 0.0
    %1539 = vmatprep.subr.mxu0 0.0
    %1540 = vmatpush1.msra.mxu0 0.0
    %1541 = vmatprep.subr.mxu0 0.0
    %1542 = vmatpush1.msra.mxu0 0.0
    %1543 = vmatprep.subr.mxu0 0.0
    %1544 = vmatpush1.msra.mxu0 0.0
    %1545 = vmatprep.subr.mxu0 0.0
    %1546 = vmatpush1.msra.mxu0 0.0
    %1547 = vmatprep.subr.mxu0 0.0
    %1548 = vmatpush1.msra.mxu0 %v1522
    %1549 = vmatprep.subr.mxu0 0.0
    %1550 = vmatpush1.msra.mxu0 %v1521
    %1551 = vmatprep.subr.mxu0 0.0
    %1552 = vmatpush1.msra.mxu0 %v1520
    %1553 = vmatprep.subr.mxu0 0.0
    %1554 = vmatpush1.msra.mxu0 %v1519
    %1555 = vmatprep.subr.mxu0 0.0
    %1556 = vmatpush2.msra.mxu0 0.0
    %1557 = vmatprep.subr.mxu0 0.0
    %1558 = vmatpush2.msra.mxu0 0.0
    %1559 = vmatprep.subr.mxu0 0.0
    %1560 = vmatpush2.msra.mxu0 0.0
    %1561 = vmatprep.subr.mxu0 0.0
    %1562 = vmatpush2.msra.mxu0 0.0
    %1563 = vmatprep.subr.mxu0 0.0
    %1564 = vmatpush2.msra.mxu0 0.0
    %1565 = vmatprep.subr.mxu0 0.0
    %1566 = vmatpush2.msra.mxu0 0.0
    %1567 = vmatprep.subr.mxu0 0.0
    %1568 = vmatpush2.msra.mxu0 0.0
    %1569 = vmatprep.subr.mxu0 0.0
    %1570 = vmatpush2.msra.mxu0 0.0
    %1571 = vmatprep.subr.mxu0 0.0
    %1572 = vmatpush2.msra.mxu0 0.0
    %1573 = vmatprep.subr.mxu0 0.0
    %1574 = vmatpush2.msra.mxu0 0.0
    %1575 = vmatprep.subr.mxu0 0.0
    %1576 = vmatpush2.msra.mxu0 0.0
    %1577 = vmatprep.subr.mxu0 0.0
    %1578 = vmatpush2.msra.mxu0 0.0
    %1579 = vmatprep.subr.mxu0 0.0
    %1580 = vmatpush2.msra.mxu0 0.0
    %1581 = vmatprep.subr.mxu0 0.0
    %1582 = vmatpush2.msra.mxu0 0.0
    %1583 = vmatprep.subr.mxu0 0.0
    %1584 = vmatpush2.msra.mxu0 0.0
    %1585 = vmatprep.subr.mxu0 0.0
    %1586 = vmatpush2.msra.mxu0 0.0
    %1587 = vmatprep.mubr.f32.mxu0 0.0
    %1588 = vmatmul.mubr.f32.gmra.mxu0 %v265
    %v1589 = vpop.f32.mrf.mxu0
    %v1590 = vadd.f32 %v246, %v1589
    %v1591 = vpop.f32.mrf.mxu0
    %1592 = vmatprep.mubr.f32.mxu0 0.0
    %1593 = vmatmul.mubr.f32.gmra.mxu0 %v268
    %v1594 = vpop.f32.mrf.mxu0
    %v1595 = vadd.f32 %v251, %v1594
    %v1596 = vpop.f32.mrf.mxu0
    %1597 = vmatprep.mubr.f32.mxu0 0.0
    %1598 = vmatmul.mubr.f32.gmra.mxu0 %v271
    %v1599 = vpop.f32.mrf.mxu0
    %v1600 = vadd.f32 %v256, %v1599
    %v1601 = vpop.f32.mrf.mxu0
    %1602 = vmatprep.mubr.f32.mxu0 0.0
    %1603 = vmatmul.mubr.f32.gmra.mxu0 %v274
    %v1604 = vpop.f32.mrf.mxu0
    %v1605 = vadd.f32 %v261, %v1604
    %v1606 = vpop.f32.mrf.mxu0
    %1607 = vdwg.mxu0
    %v1608 = vmax.f32 %v1590, 0.0
    %v1609 = vmax.f32 %v1595, 0.0
    %v1610 = vmax.f32 %v1600, 0.0
    %v1611 = vmax.f32 %v1605, 0.0
    %v1612 = vmax.f32 %v1608, 0.0
    %v1613 = vmax.f32 %v1609, 0.0
    %v1614 = vmax.f32 %v1610, 0.0
    %v1615 = vmax.f32 %v1611, 0.0
    %1620 = vrot.lane.b32.xlu0 %v1608, 127
    %v1621 = vpop.permute.xlu0 %1620
    %1622 = vrot.lane.b32.xlu0 %v1609, 127
    %v1623 = vpop.permute.xlu0 %1622
    %1624 = vrot.lane.b32.xlu0 %v1610, 127
    %v1625 = vpop.permute.xlu0 %1624
    %1626 = vrot.lane.b32.xlu0 %v1611, 127
    %v1627 = vpop.permute.xlu0 %1626
    %v1632 = vmax.f32 %v1608, %v1621
    %v1633 = vmax.f32 %v1609, %v1623
    %v1634 = vmax.f32 %v1610, %v1625
    %v1635 = vmax.f32 %v1611, %v1627
    %1640 = vrot.lane.b32.xlu0 %v1632, 127
    %v1641 = vpop.permute.xlu0 %1640
    %1642 = vrot.lane.b32.xlu0 %v1633, 127
    %v1643 = vpop.permute.xlu0 %1642
    %1644 = vrot.lane.b32.xlu0 %v1634, 127
    %v1645 = vpop.permute.xlu0 %1644
    %1646 = vrot.lane.b32.xlu0 %v1635, 127
    %v1647 = vpop.permute.xlu0 %1646
    %1652 = vrot.lane.b32.xlu0 %v1632, 126
    %v1653 = vpop.permute.xlu0 %1652
    %1654 = vrot.lane.b32.xlu0 %v1633, 126
    %v1655 = vpop.permute.xlu0 %1654
    %1656 = vrot.lane.b32.xlu0 %v1634, 126
    %v1657 = vpop.permute.xlu0 %1656
    %1658 = vrot.lane.b32.xlu0 %v1635, 126
    %v1659 = vpop.permute.xlu0 %1658
    %1664 = vrot.lane.b32.xlu0 %v1632, 125
    %v1665 = vpop.permute.xlu0 %1664
    %1666 = vrot.lane.b32.xlu0 %v1633, 125
    %v1667 = vpop.permute.xlu0 %1666
    %1668 = vrot.lane.b32.xlu0 %v1634, 125
    %v1669 = vpop.permute.xlu0 %1668
    %1670 = vrot.lane.b32.xlu0 %v1635, 125
    %v1671 = vpop.permute.xlu0 %1670
    %1676 = vrot.lane.b32.xlu0 %v1632, 124
    %v1677 = vpop.permute.xlu0 %1676
    %1678 = vrot.lane.b32.xlu0 %v1633, 124
    %v1679 = vpop.permute.xlu0 %1678
    %1680 = vrot.lane.b32.xlu0 %v1634, 124
    %v1681 = vpop.permute.xlu0 %1680
    %1682 = vrot.lane.b32.xlu0 %v1635, 124
    %v1683 = vpop.permute.xlu0 %1682
    %1688 = vrot.lane.b32.xlu0 %v1632, 123
    %v1689 = vpop.permute.xlu0 %1688
    %1690 = vrot.lane.b32.xlu0 %v1633, 123
    %v1691 = vpop.permute.xlu0 %1690
    %1692 = vrot.lane.b32.xlu0 %v1634, 123
    %v1693 = vpop.permute.xlu0 %1692
    %1694 = vrot.lane.b32.xlu0 %v1635, 123
    %v1695 = vpop.permute.xlu0 %1694
    %1700 = vrot.lane.b32.xlu0 %v1632, 122
    %v1701 = vpop.permute.xlu0 %1700
    %1702 = vrot.lane.b32.xlu0 %v1633, 122
    %v1703 = vpop.permute.xlu0 %1702
    %1704 = vrot.lane.b32.xlu0 %v1634, 122
    %v1705 = vpop.permute.xlu0 %1704
    %1706 = vrot.lane.b32.xlu0 %v1635, 122
    %v1707 = vpop.permute.xlu0 %1706
    %1712 = vrot.lane.b32.xlu0 %v1632, 121
    %v1713 = vpop.permute.xlu0 %1712
    %1714 = vrot.lane.b32.xlu0 %v1633, 121
    %v1715 = vpop.permute.xlu0 %1714
    %1716 = vrot.lane.b32.xlu0 %v1634, 121
    %v1717 = vpop.permute.xlu0 %1716
    %1718 = vrot.lane.b32.xlu0 %v1635, 121
    %v1719 = vpop.permute.xlu0 %1718
    %v1724 = vsel %vm477, %v1612, %v1632
    %v1725 = vsel %vm477, %v1613, %v1633
    %v1726 = vsel %vm477, %v1614, %v1634
    %v1727 = vsel %vm477, %v1615, %v1635
    %v1728 = vsel %vm482, %v1724, %v1641
    %v1729 = vsel %vm482, %v1725, %v1643
    %v1730 = vsel %vm482, %v1726, %v1645
    %v1731 = vsel %vm482, %v1727, %v1647
    %v1732 = vsel %vm487, %v1728, %v1653
    %v1733 = vsel %vm487, %v1729, %v1655
    %v1734 = vsel %vm487, %v1730, %v1657
    %v1735 = vsel %vm487, %v1731, %v1659
    %v1736 = vsel %vm211, %v1732, %v1665
    %v1737 = vsel %vm211, %v1733, %v1667
    %v1738 = vsel %vm211, %v1734, %v1669
    %v1739 = vsel %vm211, %v1735, %v1671
    %v1740 = vsel %vm496, %v1736, %v1677
    %v1741 = vsel %vm496, %v1737, %v1679
    %v1742 = vsel %vm496, %v1738, %v1681
    %v1743 = vsel %vm496, %v1739, %v1683
    %v1744 = vsel %vm501, %v1740, %v1689
    %v1745 = vsel %vm501, %v1741, %v1691
    %v1746 = vsel %vm501, %v1742, %v1693
    %v1747 = vsel %vm501, %v1743, %v1695
    %v1748 = vsel %vm506, %v1744, %v1701
    %v1749 = vsel %vm506, %v1745, %v1703
    %v1750 = vsel %vm506, %v1746, %v1705
    %v1751 = vsel %vm506, %v1747, %v1707
    %v1752 = vsel %vm511, %v1748, %v1713
    %v1753 = vsel %vm511, %v1749, %v1715
    %v1754 = vsel %vm511, %v1750, %v1717
    %v1755 = vsel %vm511, %v1751, %v1719
    %1760 = vrot.lane.b32.xlu0 %v1752, 4
    %v1761 = vpop.permute.xlu0 %1760
    %1762 = vrot.lane.b32.xlu0 %v1753, 4
    %v1763 = vpop.permute.xlu0 %1762
    %1764 = vrot.lane.b32.xlu0 %v1754, 4
    %v1765 = vpop.permute.xlu0 %1764
    %1766 = vrot.lane.b32.xlu0 %v1755, 4
    %v1767 = vpop.permute.xlu0 %1766
    %v1772 = vsel %vm211, 0.0, %v1761
    %v1773 = vsel %vm211, 0.0, %v1763
    %v1774 = vsel %vm211, 0.0, %v1765
    %v1775 = vsel %vm211, 0.0, %v1767
    %v1776 = vsel %vm536, %v1772, 0.0
    %v1777 = vsel %vm536, %v1773, 0.0
    %v1778 = vsel %vm536, %v1774, 0.0
    %v1779 = vsel %vm536, %v1775, 0.0
    %1784 = vrot.lane.b32.xlu0 %v1776, 127
    %v1785 = vpop.permute.xlu0 %1784
    %1786 = vrot.lane.b32.xlu0 %v1777, 127
    %v1787 = vpop.permute.xlu0 %1786
    %1788 = vrot.lane.b32.xlu0 %v1778, 127
    %v1789 = vpop.permute.xlu0 %1788
    %1790 = vrot.lane.b32.xlu0 %v1779, 127
    %v1791 = vpop.permute.xlu0 %1790
    %1796 = vrot.lane.b32.xlu0 %v1776, 126
    %v1797 = vpop.permute.xlu0 %1796
    %1798 = vrot.lane.b32.xlu0 %v1777, 126
    %v1799 = vpop.permute.xlu0 %1798
    %1800 = vrot.lane.b32.xlu0 %v1778, 126
    %v1801 = vpop.permute.xlu0 %1800
    %1802 = vrot.lane.b32.xlu0 %v1779, 126
    %v1803 = vpop.permute.xlu0 %1802
    %1808 = vrot.lane.b32.xlu0 %v1776, 125
    %v1809 = vpop.permute.xlu0 %1808
    %1810 = vrot.lane.b32.xlu0 %v1777, 125
    %v1811 = vpop.permute.xlu0 %1810
    %1812 = vrot.lane.b32.xlu0 %v1778, 125
    %v1813 = vpop.permute.xlu0 %1812
    %1814 = vrot.lane.b32.xlu0 %v1779, 125
    %v1815 = vpop.permute.xlu0 %1814
    %1820 = vrot.lane.b32.xlu0 %v1776, 124
    %v1821 = vpop.permute.xlu0 %1820
    %1822 = vrot.lane.b32.xlu0 %v1777, 124
    %v1823 = vpop.permute.xlu0 %1822
    %1824 = vrot.lane.b32.xlu0 %v1778, 124
    %v1825 = vpop.permute.xlu0 %1824
    %1826 = vrot.lane.b32.xlu0 %v1779, 124
    %v1827 = vpop.permute.xlu0 %1826
    %1832 = vrot.lane.b32.xlu0 %v1776, 123
    %v1833 = vpop.permute.xlu0 %1832
    %1834 = vrot.lane.b32.xlu0 %v1777, 123
    %v1835 = vpop.permute.xlu0 %1834
    %1836 = vrot.lane.b32.xlu0 %v1778, 123
    %v1837 = vpop.permute.xlu0 %1836
    %1838 = vrot.lane.b32.xlu0 %v1779, 123
    %v1839 = vpop.permute.xlu0 %1838
    %1844 = vrot.lane.b32.xlu0 %v1776, 122
    %v1845 = vpop.permute.xlu0 %1844
    %1846 = vrot.lane.b32.xlu0 %v1777, 122
    %v1847 = vpop.permute.xlu0 %1846
    %1848 = vrot.lane.b32.xlu0 %v1778, 122
    %v1849 = vpop.permute.xlu0 %1848
    %1850 = vrot.lane.b32.xlu0 %v1779, 122
    %v1851 = vpop.permute.xlu0 %1850
    %1856 = vrot.lane.b32.xlu0 %v1776, 121
    %v1857 = vpop.permute.xlu0 %1856
    %1858 = vrot.lane.b32.xlu0 %v1777, 121
    %v1859 = vpop.permute.xlu0 %1858
    %1860 = vrot.lane.b32.xlu0 %v1778, 121
    %v1861 = vpop.permute.xlu0 %1860
    %1862 = vrot.lane.b32.xlu0 %v1779, 121
    %v1863 = vpop.permute.xlu0 %1862
    %1868 = vmatprep.subr.mxu0 0.0
    %1869 = vmatpush1.msra.mxu0 %v1815
    %1870 = vmatprep.subr.mxu0 0.0
    %1871 = vmatpush1.msra.mxu0 %v1813
    %1872 = vmatprep.subr.mxu0 0.0
    %1873 = vmatpush1.msra.mxu0 %v1811
    %1874 = vmatprep.subr.mxu0 0.0
    %1875 = vmatpush1.msra.mxu0 %v1809
    %1876 = vmatprep.subr.mxu0 0.0
    %1877 = vmatpush1.msra.mxu0 %v1803
    %1878 = vmatprep.subr.mxu0 0.0
    %1879 = vmatpush1.msra.mxu0 %v1801
    %1880 = vmatprep.subr.mxu0 0.0
    %1881 = vmatpush1.msra.mxu0 %v1799
    %1882 = vmatprep.subr.mxu0 0.0
    %1883 = vmatpush1.msra.mxu0 %v1797
    %1884 = vmatprep.subr.mxu0 0.0
    %1885 = vmatpush1.msra.mxu0 %v1791
    %1886 = vmatprep.subr.mxu0 0.0
    %1887 = vmatpush1.msra.mxu0 %v1789
    %1888 = vmatprep.subr.mxu0 0.0
    %1889 = vmatpush1.msra.mxu0 %v1787
    %1890 = vmatprep.subr.mxu0 0.0
    %1891 = vmatpush1.msra.mxu0 %v1785
    %1892 = vmatprep.subr.mxu0 0.0
    %1893 = vmatpush1.msra.mxu0 %v1779
    %1894 = vmatprep.subr.mxu0 0.0
    %1895 = vmatpush1.msra.mxu0 %v1778
    %1896 = vmatprep.subr.mxu0 0.0
    %1897 = vmatpush1.msra.mxu0 %v1777
    %1898 = vmatprep.subr.mxu0 0.0
    %1899 = vmatpush1.msra.mxu0 %v1776
    %1900 = vmatprep.subr.mxu0 0.0
    %1901 = vmatpush2.msra.mxu0 %v1863
    %1902 = vmatprep.subr.mxu0 0.0
    %1903 = vmatpush2.msra.mxu0 %v1861
    %1904 = vmatprep.subr.mxu0 0.0
    %1905 = vmatpush2.msra.mxu0 %v1859
    %1906 = vmatprep.subr.mxu0 0.0
    %1907 = vmatpush2.msra.mxu0 %v1857
    %1908 = vmatprep.subr.mxu0 0.0
    %1909 = vmatpush2.msra.mxu0 %v1851
    %1910 = vmatprep.subr.mxu0 0.0
    %1911 = vmatpush2.msra.mxu0 %v1849
    %1912 = vmatprep.subr.mxu0 0.0
    %1913 = vmatpush2.msra.mxu0 %v1847
    %1914 = vmatprep.subr.mxu0 0.0
    %1915 = vmatpush2.msra.mxu0 %v1845
    %1916 = vmatprep.subr.mxu0 0.0
    %1917 = vmatpush2.msra.mxu0 %v1839
    %1918 = vmatprep.subr.mxu0 0.0
    %1919 = vmatpush2.msra.mxu0 %v1837
    %1920 = vmatprep.subr.mxu0 0.0
    %1921 = vmatpush2.msra.mxu0 %v1835
    %1922 = vmatprep.subr.mxu0 0.0
    %1923 = vmatpush2.msra.mxu0 %v1833
    %1924 = vmatprep.subr.mxu0 0.0
    %1925 = vmatpush2.msra.mxu0 %v1827
    %1926 = vmatprep.subr.mxu0 0.0
    %1927 = vmatpush2.msra.mxu0 %v1825
    %1928 = vmatprep.subr.mxu0 0.0
    %1929 = vmatpush2.msra.mxu0 %v1823
    %1930 = vmatprep.subr.mxu0 0.0
    %1931 = vmatpush2.msra.mxu0 %v1821
    %1932 = vmatprep.mubr.f32.mxu0 %v169
    %1933 = vmatmul.mubr.f32.gmra.mxu0 %v168
    %v1934 = vpop.f32.mrf.mxu0
    %v1935 = vadd.f32 %v632, %v1934
    %v1936 = vpop.f32.mrf.mxu0
    %1937 = vmatprep.mubr.f32.mxu0 %v171
    %1938 = vmatmul.mubr.f32.gmra.mxu0 %v170
    %v1939 = vpop.f32.mrf.mxu0
    %v1940 = vadd.f32 %v637, %v1939
    %v1941 = vpop.f32.mrf.mxu0
    %1942 = vmatprep.mubr.f32.mxu0 %v173
    %1943 = vmatmul.mubr.f32.gmra.mxu0 %v172
    %v1944 = vpop.f32.mrf.mxu0
    %v1945 = vadd.f32 %v642, %v1944
    %v1946 = vpop.f32.mrf.mxu0
    %1947 = vmatprep.mubr.f32.mxu0 %v175
    %1948 = vmatmul.mubr.f32.gmra.mxu0 %v174
    %v1949 = vpop.f32.mrf.mxu0
    %v1950 = vadd.f32 %v647, %v1949
    %v1951 = vpop.f32.mrf.mxu0
    %1952 = vmatprep.mubr.f32.mxu0 %v177
    %1953 = vmatmul.mubr.f32.gmra.mxu0 %v176
    %v1954 = vpop.f32.mrf.mxu0
    %v1955 = vadd.f32 %v652, %v1954
    %v1956 = vpop.f32.mrf.mxu0
    %1957 = vmatprep.mubr.f32.mxu0 %v179
    %1958 = vmatmul.mubr.f32.gmra.mxu0 %v178
    %v1959 = vpop.f32.mrf.mxu0
    %v1960 = vadd.f32 %v657, %v1959
    %v1961 = vpop.f32.mrf.mxu0
    %1962 = vmatprep.mubr.f32.mxu0 %v181
    %1963 = vmatmul.mubr.f32.gmra.mxu0 %v180
    %v1964 = vpop.f32.mrf.mxu0
    %v1965 = vadd.f32 %v662, %v1964
    %v1966 = vpop.f32.mrf.mxu0
    %1967 = vmatprep.mubr.f32.mxu0 %v183
    %1968 = vmatmul.mubr.f32.gmra.mxu0 %v182
    %v1969 = vpop.f32.mrf.mxu0
    %v1970 = vadd.f32 %v667, %v1969
    %v1971 = vpop.f32.mrf.mxu0
    %1972 = vdwg.mxu0
    %v1973 = vmax.f32 %v1935, 0.0
    %v1974 = vmax.f32 %v1940, 0.0
    %v1975 = vmax.f32 %v1945, 0.0
    %v1976 = vmax.f32 %v1950, 0.0
    %v1977 = vmax.f32 %v1955, 0.0
    %v1978 = vmax.f32 %v1960, 0.0
    %v1979 = vmax.f32 %v1965, 0.0
    %v1980 = vmax.f32 %v1970, 0.0
    %v1981 = vmax.f32 %v1973, 0.0
    %v1982 = vmax.f32 %v1974, 0.0
    %v1983 = vmax.f32 %v1975, 0.0
    %v1984 = vmax.f32 %v1976, 0.0
    %v1985 = vmax.f32 %v1977, 0.0
    %v1986 = vmax.f32 %v1978, 0.0
    %v1987 = vmax.f32 %v1979, 0.0
    %v1988 = vmax.f32 %v1980, 0.0
    %1997 = vrot.lane.b32.xlu0 %v1973, 127
    %v1998 = vpop.permute.xlu0 %1997
    %1999 = vrot.lane.b32.xlu0 %v1974, 127
    %v2000 = vpop.permute.xlu0 %1999
    %2001 = vrot.lane.b32.xlu0 %v1975, 127
    %v2002 = vpop.permute.xlu0 %2001
    %2003 = vrot.lane.b32.xlu0 %v1976, 127
    %v2004 = vpop.permute.xlu0 %2003
    %2005 = vrot.lane.b32.xlu0 %v1977, 127
    %v2006 = vpop.permute.xlu0 %2005
    %2007 = vrot.lane.b32.xlu0 %v1978, 127
    %v2008 = vpop.permute.xlu0 %2007
    %2009 = vrot.lane.b32.xlu0 %v1979, 127
    %v2010 = vpop.permute.xlu0 %2009
    %2011 = vrot.lane.b32.xlu0 %v1980, 127
    %v2012 = vpop.permute.xlu0 %2011
    %v2021 = vmax.f32 %v1973, %v1998
    %v2022 = vmax.f32 %v1974, %v2000
    %v2023 = vmax.f32 %v1975, %v2002
    %v2024 = vmax.f32 %v1976, %v2004
    %v2025 = vmax.f32 %v1977, %v2006
    %v2026 = vmax.f32 %v1978, %v2008
    %v2027 = vmax.f32 %v1979, %v2010
    %v2028 = vmax.f32 %v1980, %v2012
    %2037 = vrot.lane.b32.xlu0 %v2021, 127
    %v2038 = vpop.permute.xlu0 %2037
    %2039 = vrot.lane.b32.xlu0 %v2022, 127
    %v2040 = vpop.permute.xlu0 %2039
    %2041 = vrot.lane.b32.xlu0 %v2023, 127
    %v2042 = vpop.permute.xlu0 %2041
    %2043 = vrot.lane.b32.xlu0 %v2024, 127
    %v2044 = vpop.permute.xlu0 %2043
    %2045 = vrot.lane.b32.xlu0 %v2025, 127
    %v2046 = vpop.permute.xlu0 %2045
    %2047 = vrot.lane.b32.xlu0 %v2026, 127
    %v2048 = vpop.permute.xlu0 %2047
    %2049 = vrot.lane.b32.xlu0 %v2027, 127
    %v2050 = vpop.permute.xlu0 %2049
    %2051 = vrot.lane.b32.xlu0 %v2028, 127
    %v2052 = vpop.permute.xlu0 %2051
    %2061 = vrot.lane.b32.xlu0 %v2021, 126
    %v2062 = vpop.permute.xlu0 %2061
    %2063 = vrot.lane.b32.xlu0 %v2022, 126
    %v2064 = vpop.permute.xlu0 %2063
    %2065 = vrot.lane.b32.xlu0 %v2023, 126
    %v2066 = vpop.permute.xlu0 %2065
    %2067 = vrot.lane.b32.xlu0 %v2024, 126
    %v2068 = vpop.permute.xlu0 %2067
    %2069 = vrot.lane.b32.xlu0 %v2025, 126
    %v2070 = vpop.permute.xlu0 %2069
    %2071 = vrot.lane.b32.xlu0 %v2026, 126
    %v2072 = vpop.permute.xlu0 %2071
    %2073 = vrot.lane.b32.xlu0 %v2027, 126
    %v2074 = vpop.permute.xlu0 %2073
    %2075 = vrot.lane.b32.xlu0 %v2028, 126
    %v2076 = vpop.permute.xlu0 %2075
    %2085 = vrot.lane.b32.xlu0 %v2021, 125
    %v2086 = vpop.permute.xlu0 %2085
    %2087 = vrot.lane.b32.xlu0 %v2022, 125
    %v2088 = vpop.permute.xlu0 %2087
    %2089 = vrot.lane.b32.xlu0 %v2023, 125
    %v2090 = vpop.permute.xlu0 %2089
    %2091 = vrot.lane.b32.xlu0 %v2024, 125
    %v2092 = vpop.permute.xlu0 %2091
    %2093 = vrot.lane.b32.xlu0 %v2025, 125
    %v2094 = vpop.permute.xlu0 %2093
    %2095 = vrot.lane.b32.xlu0 %v2026, 125
    %v2096 = vpop.permute.xlu0 %2095
    %2097 = vrot.lane.b32.xlu0 %v2027, 125
    %v2098 = vpop.permute.xlu0 %2097
    %2099 = vrot.lane.b32.xlu0 %v2028, 125
    %v2100 = vpop.permute.xlu0 %2099
    %2117 = vrot.lane.b32.xlu0 %v1981, 124
    %v2118 = vpop.permute.xlu0 %2117
    %2119 = vrot.lane.b32.xlu0 %v1982, 124
    %v2120 = vpop.permute.xlu0 %2119
    %2121 = vrot.lane.b32.xlu0 %v1983, 124
    %v2122 = vpop.permute.xlu0 %2121
    %2123 = vrot.lane.b32.xlu0 %v1984, 124
    %v2124 = vpop.permute.xlu0 %2123
    %2125 = vrot.lane.b32.xlu0 %v1985, 124
    %v2126 = vpop.permute.xlu0 %2125
    %2127 = vrot.lane.b32.xlu0 %v1986, 124
    %v2128 = vpop.permute.xlu0 %2127
    %2129 = vrot.lane.b32.xlu0 %v1987, 124
    %v2130 = vpop.permute.xlu0 %2129
    %2131 = vrot.lane.b32.xlu0 %v1988, 124
    %v2132 = vpop.permute.xlu0 %2131
    %v2141 = vsel %vm477, %v1981, %v2021
    %v2142 = vsel %vm477, %v1982, %v2022
    %v2143 = vsel %vm477, %v1983, %v2023
    %v2144 = vsel %vm477, %v1984, %v2024
    %v2145 = vsel %vm477, %v1985, %v2025
    %v2146 = vsel %vm477, %v1986, %v2026
    %v2147 = vsel %vm477, %v1987, %v2027
    %v2148 = vsel %vm477, %v1988, %v2028
    %v2149 = vsel %vm482, %v2141, %v2038
    %v2150 = vsel %vm482, %v2142, %v2040
    %v2151 = vsel %vm482, %v2143, %v2042
    %v2152 = vsel %vm482, %v2144, %v2044
    %v2153 = vsel %vm482, %v2145, %v2046
    %v2154 = vsel %vm482, %v2146, %v2048
    %v2155 = vsel %vm482, %v2147, %v2050
    %v2156 = vsel %vm482, %v2148, %v2052
    %v2157 = vsel %vm487, %v2149, %v2062
    %v2158 = vsel %vm487, %v2150, %v2064
    %v2159 = vsel %vm487, %v2151, %v2066
    %v2160 = vsel %vm487, %v2152, %v2068
    %v2161 = vsel %vm487, %v2153, %v2070
    %v2162 = vsel %vm487, %v2154, %v2072
    %v2163 = vsel %vm487, %v2155, %v2074
    %v2164 = vsel %vm487, %v2156, %v2076
    %v2165 = vsel %vm211, %v2157, %v2086
    %v2166 = vsel %vm211, %v2158, %v2088
    %v2167 = vsel %vm211, %v2159, %v2090
    %v2168 = vsel %vm211, %v2160, %v2092
    %v2169 = vsel %vm211, %v2161, %v2094
    %v2170 = vsel %vm211, %v2162, %v2096
    %v2171 = vsel %vm211, %v2163, %v2098
    %v2172 = vsel %vm211, %v2164, %v2100
    %v2173 = vsel %vm496, %v2165, %v2118
    %v2174 = vsel %vm496, %v2166, %v2120
    %v2175 = vsel %vm496, %v2167, %v2122
    %v2176 = vsel %vm496, %v2168, %v2124
    %v2177 = vsel %vm496, %v2169, %v2126
    %v2178 = vsel %vm496, %v2170, %v2128
    %v2179 = vsel %vm496, %v2171, %v2130
    %v2180 = vsel %vm496, %v2172, %v2132
    %2189 = vrot.lane.b32.xlu0 %v2173, 4
    %v2190 = vpop.permute.xlu0 %2189
    %2191 = vrot.lane.b32.xlu0 %v2174, 4
    %v2192 = vpop.permute.xlu0 %2191
    %2193 = vrot.lane.b32.xlu0 %v2175, 4
    %v2194 = vpop.permute.xlu0 %2193
    %2195 = vrot.lane.b32.xlu0 %v2176, 4
    %v2196 = vpop.permute.xlu0 %2195
    %2197 = vrot.lane.b32.xlu0 %v2177, 4
    %v2198 = vpop.permute.xlu0 %2197
    %2199 = vrot.lane.b32.xlu0 %v2178, 4
    %v2200 = vpop.permute.xlu0 %2199
    %2201 = vrot.lane.b32.xlu0 %v2179, 4
    %v2202 = vpop.permute.xlu0 %2201
    %2203 = vrot.lane.b32.xlu0 %v2180, 4
    %v2204 = vpop.permute.xlu0 %2203
    %v2213 = vsel %vm211, 0.0, %v2190
    %v2214 = vsel %vm211, 0.0, %v2192
    %v2215 = vsel %vm211, 0.0, %v2194
    %v2216 = vsel %vm211, 0.0, %v2196
    %v2217 = vsel %vm211, 0.0, %v2198
    %v2218 = vsel %vm211, 0.0, %v2200
    %v2219 = vsel %vm211, 0.0, %v2202
    %v2220 = vsel %vm211, 0.0, %v2204
    %v2221 = vsel %vm1022, %v2213, 0.0
    %v2222 = vsel %vm1022, %v2214, 0.0
    %v2223 = vsel %vm1022, %v2215, 0.0
    %v2224 = vsel %vm1022, %v2216, 0.0
    %v2225 = vsel %vm1022, %v2217, 0.0
    %v2226 = vsel %vm1022, %v2218, 0.0
    %v2227 = vsel %vm1022, %v2219, 0.0
    %v2228 = vsel %vm1022, %v2220, 0.0
    %2237 = vrot.lane.b32.xlu0 %v2221, 127
    %v2238 = vpop.permute.xlu0 %2237
    %2239 = vrot.lane.b32.xlu0 %v2222, 127
    %v2240 = vpop.permute.xlu0 %2239
    %2241 = vrot.lane.b32.xlu0 %v2223, 127
    %v2242 = vpop.permute.xlu0 %2241
    %2243 = vrot.lane.b32.xlu0 %v2224, 127
    %v2244 = vpop.permute.xlu0 %2243
    %2245 = vrot.lane.b32.xlu0 %v2225, 127
    %v2246 = vpop.permute.xlu0 %2245
    %2247 = vrot.lane.b32.xlu0 %v2226, 127
    %v2248 = vpop.permute.xlu0 %2247
    %2249 = vrot.lane.b32.xlu0 %v2227, 127
    %v2250 = vpop.permute.xlu0 %2249
    %2251 = vrot.lane.b32.xlu0 %v2228, 127
    %v2252 = vpop.permute.xlu0 %2251
    %2261 = vrot.lane.b32.xlu0 %v2221, 126
    %v2262 = vpop.permute.xlu0 %2261
    %2263 = vrot.lane.b32.xlu0 %v2222, 126
    %v2264 = vpop.permute.xlu0 %2263
    %2265 = vrot.lane.b32.xlu0 %v2223, 126
    %v2266 = vpop.permute.xlu0 %2265
    %2267 = vrot.lane.b32.xlu0 %v2224, 126
    %v2268 = vpop.permute.xlu0 %2267
    %2269 = vrot.lane.b32.xlu0 %v2225, 126
    %v2270 = vpop.permute.xlu0 %2269
    %2271 = vrot.lane.b32.xlu0 %v2226, 126
    %v2272 = vpop.permute.xlu0 %2271
    %2273 = vrot.lane.b32.xlu0 %v2227, 126
    %v2274 = vpop.permute.xlu0 %2273
    %2275 = vrot.lane.b32.xlu0 %v2228, 126
    %v2276 = vpop.permute.xlu0 %2275
    %2285 = vrot.lane.b32.xlu0 %v2221, 125
    %v2286 = vpop.permute.xlu0 %2285
    %2287 = vrot.lane.b32.xlu0 %v2222, 125
    %v2288 = vpop.permute.xlu0 %2287
    %2289 = vrot.lane.b32.xlu0 %v2223, 125
    %v2290 = vpop.permute.xlu0 %2289
    %2291 = vrot.lane.b32.xlu0 %v2224, 125
    %v2292 = vpop.permute.xlu0 %2291
    %2293 = vrot.lane.b32.xlu0 %v2225, 125
    %v2294 = vpop.permute.xlu0 %2293
    %2295 = vrot.lane.b32.xlu0 %v2226, 125
    %v2296 = vpop.permute.xlu0 %2295
    %2297 = vrot.lane.b32.xlu0 %v2227, 125
    %v2298 = vpop.permute.xlu0 %2297
    %2299 = vrot.lane.b32.xlu0 %v2228, 125
    %v2300 = vpop.permute.xlu0 %2299
    %2309 = vrot.lane.b32.xlu0 %v2221, 124
    %v2310 = vpop.permute.xlu0 %2309
    %2311 = vrot.lane.b32.xlu0 %v2222, 124
    %v2312 = vpop.permute.xlu0 %2311
    %2313 = vrot.lane.b32.xlu0 %v2223, 124
    %v2314 = vpop.permute.xlu0 %2313
    %2315 = vrot.lane.b32.xlu0 %v2224, 124
    %v2316 = vpop.permute.xlu0 %2315
    %2317 = vrot.lane.b32.xlu0 %v2225, 124
    %v2318 = vpop.permute.xlu0 %2317
    %2319 = vrot.lane.b32.xlu0 %v2226, 124
    %v2320 = vpop.permute.xlu0 %2319
    %2321 = vrot.lane.b32.xlu0 %v2227, 124
    %v2322 = vpop.permute.xlu0 %2321
    %2323 = vrot.lane.b32.xlu0 %v2228, 124
    %v2324 = vpop.permute.xlu0 %2323
    %2333 = vrot.lane.b32.xlu0 %v2221, 123
    %v2334 = vpop.permute.xlu0 %2333
    %2335 = vrot.lane.b32.xlu0 %v2222, 123
    %v2336 = vpop.permute.xlu0 %2335
    %2337 = vrot.lane.b32.xlu0 %v2223, 123
    %v2338 = vpop.permute.xlu0 %2337
    %2339 = vrot.lane.b32.xlu0 %v2224, 123
    %v2340 = vpop.permute.xlu0 %2339
    %2341 = vrot.lane.b32.xlu0 %v2225, 123
    %v2342 = vpop.permute.xlu0 %2341
    %2343 = vrot.lane.b32.xlu0 %v2226, 123
    %v2344 = vpop.permute.xlu0 %2343
    %2345 = vrot.lane.b32.xlu0 %v2227, 123
    %v2346 = vpop.permute.xlu0 %2345
    %2347 = vrot.lane.b32.xlu0 %v2228, 123
    %v2348 = vpop.permute.xlu0 %2347
    %2357 = vrot.lane.b32.xlu0 %v2221, 122
    %v2358 = vpop.permute.xlu0 %2357
    %2359 = vrot.lane.b32.xlu0 %v2222, 122
    %v2360 = vpop.permute.xlu0 %2359
    %2361 = vrot.lane.b32.xlu0 %v2223, 122
    %v2362 = vpop.permute.xlu0 %2361
    %2363 = vrot.lane.b32.xlu0 %v2224, 122
    %v2364 = vpop.permute.xlu0 %2363
    %2365 = vrot.lane.b32.xlu0 %v2225, 122
    %v2366 = vpop.permute.xlu0 %2365
    %2367 = vrot.lane.b32.xlu0 %v2226, 122
    %v2368 = vpop.permute.xlu0 %2367
    %2369 = vrot.lane.b32.xlu0 %v2227, 122
    %v2370 = vpop.permute.xlu0 %2369
    %2371 = vrot.lane.b32.xlu0 %v2228, 122
    %v2372 = vpop.permute.xlu0 %2371
    %2381 = vrot.lane.b32.xlu0 %v2221, 121
    %v2382 = vpop.permute.xlu0 %2381
    %2383 = vrot.lane.b32.xlu0 %v2222, 121
    %v2384 = vpop.permute.xlu0 %2383
    %2385 = vrot.lane.b32.xlu0 %v2223, 121
    %v2386 = vpop.permute.xlu0 %2385
    %2387 = vrot.lane.b32.xlu0 %v2224, 121
    %v2388 = vpop.permute.xlu0 %2387
    %2389 = vrot.lane.b32.xlu0 %v2225, 121
    %v2390 = vpop.permute.xlu0 %2389
    %2391 = vrot.lane.b32.xlu0 %v2226, 121
    %v2392 = vpop.permute.xlu0 %2391
    %2393 = vrot.lane.b32.xlu0 %v2227, 121
    %v2394 = vpop.permute.xlu0 %2393
    %2395 = vrot.lane.b32.xlu0 %v2228, 121
    %v2396 = vpop.permute.xlu0 %2395
    %2405 = vmatprep.subr.mxu0 0.0
    %2406 = vmatpush1.msra.mxu0 %v2252
    %2407 = vmatprep.subr.mxu0 0.0
    %2408 = vmatpush1.msra.mxu0 %v2250
    %2409 = vmatprep.subr.mxu0 0.0
    %2410 = vmatpush1.msra.mxu0 %v2248
    %2411 = vmatprep.subr.mxu0 0.0
    %2412 = vmatpush1.msra.mxu0 %v2246
    %2413 = vmatprep.subr.mxu0 0.0
    %2414 = vmatpush1.msra.mxu0 %v2244
    %2415 = vmatprep.subr.mxu0 0.0
    %2416 = vmatpush1.msra.mxu0 %v2242
    %2417 = vmatprep.subr.mxu0 0.0
    %2418 = vmatpush1.msra.mxu0 %v2240
    %2419 = vmatprep.subr.mxu0 0.0
    %2420 = vmatpush1.msra.mxu0 %v2238
    %2421 = vmatprep.subr.mxu0 0.0
    %2422 = vmatpush1.msra.mxu0 %v2228
    %2423 = vmatprep.subr.mxu0 0.0
    %2424 = vmatpush1.msra.mxu0 %v2227
    %2425 = vmatprep.subr.mxu0 0.0
    %2426 = vmatpush1.msra.mxu0 %v2226
    %2427 = vmatprep.subr.mxu0 0.0
    %2428 = vmatpush1.msra.mxu0 %v2225
    %2429 = vmatprep.subr.mxu0 0.0
    %2430 = vmatpush1.msra.mxu0 %v2224
    %2431 = vmatprep.subr.mxu0 0.0
    %2432 = vmatpush1.msra.mxu0 %v2223
    %2433 = vmatprep.subr.mxu0 0.0
    %2434 = vmatpush1.msra.mxu0 %v2222
    %2435 = vmatprep.subr.mxu0 0.0
    %2436 = vmatpush1.msra.mxu0 %v2221
    %2437 = vmatprep.subr.mxu0 0.0
    %2438 = vmatpush2.msra.mxu0 %v2300
    %2439 = vmatprep.subr.mxu0 0.0
    %2440 = vmatpush2.msra.mxu0 %v2298
    %2441 = vmatprep.subr.mxu0 0.0
    %2442 = vmatpush2.msra.mxu0 %v2296
    %2443 = vmatprep.subr.mxu0 0.0
    %2444 = vmatpush2.msra.mxu0 %v2294
    %2445 = vmatprep.subr.mxu0 0.0
    %2446 = vmatpush2.msra.mxu0 %v2292
    %2447 = vmatprep.subr.mxu0 0.0
    %2448 = vmatpush2.msra.mxu0 %v2290
    %2449 = vmatprep.subr.mxu0 0.0
    %2450 = vmatpush2.msra.mxu0 %v2288
    %2451 = vmatprep.subr.mxu0 0.0
    %2452 = vmatpush2.msra.mxu0 %v2286
    %2453 = vmatprep.subr.mxu0 0.0
    %2454 = vmatpush2.msra.mxu0 %v2276
    %2455 = vmatprep.subr.mxu0 0.0
    %2456 = vmatpush2.msra.mxu0 %v2274
    %2457 = vmatprep.subr.mxu0 0.0
    %2458 = vmatpush2.msra.mxu0 %v2272
    %2459 = vmatprep.subr.mxu0 0.0
    %2460 = vmatpush2.msra.mxu0 %v2270
    %2461 = vmatprep.subr.mxu0 0.0
    %2462 = vmatpush2.msra.mxu0 %v2268
    %2463 = vmatprep.subr.mxu0 0.0
    %2464 = vmatpush2.msra.mxu0 %v2266
    %2465 = vmatprep.subr.mxu0 0.0
    %2466 = vmatpush2.msra.mxu0 %v2264
    %2467 = vmatprep.subr.mxu0 0.0
    %2468 = vmatpush2.msra.mxu0 %v2262
    %2469 = vmatprep.mubr.f32.mxu0 %v185
    %2470 = vmatmul.mubr.f32.gmra.mxu0 %v184
    %v2471 = vpop.f32.mrf.mxu0
    %v2472 = vadd.f32 %v1210, %v2471
    %v2473 = vpop.f32.mrf.mxu0
    %2474 = vmatprep.mubr.f32.mxu0 %v189
    %2475 = vmatmul.mubr.f32.gmra.mxu0 %v188
    %v2476 = vpop.f32.mrf.mxu0
    %v2477 = vadd.f32 %v1215, %v2476
    %v2478 = vpop.f32.mrf.mxu0
    %2479 = vdwg.mxu0
    %2480 = vmatprep.subr.mxu0 0.0
    %2481 = vmatpush1.msra.mxu0 %v2348
    %2482 = vmatprep.subr.mxu0 0.0
    %2483 = vmatpush1.msra.mxu0 %v2346
    %2484 = vmatprep.subr.mxu0 0.0
    %2485 = vmatpush1.msra.mxu0 %v2344
    %2486 = vmatprep.subr.mxu0 0.0
    %2487 = vmatpush1.msra.mxu0 %v2342
    %2488 = vmatprep.subr.mxu0 0.0
    %2489 = vmatpush1.msra.mxu0 %v2340
    %2490 = vmatprep.subr.mxu0 0.0
    %2491 = vmatpush1.msra.mxu0 %v2338
    %2492 = vmatprep.subr.mxu0 0.0
    %2493 = vmatpush1.msra.mxu0 %v2336
    %2494 = vmatprep.subr.mxu0 0.0
    %2495 = vmatpush1.msra.mxu0 %v2334
    %2496 = vmatprep.subr.mxu0 0.0
    %2497 = vmatpush1.msra.mxu0 %v2324
    %2498 = vmatprep.subr.mxu0 0.0
    %2499 = vmatpush1.msra.mxu0 %v2322
    %2500 = vmatprep.subr.mxu0 0.0
    %2501 = vmatpush1.msra.mxu0 %v2320
    %2502 = vmatprep.subr.mxu0 0.0
    %2503 = vmatpush1.msra.mxu0 %v2318
    %2504 = vmatprep.subr.mxu0 0.0
    %2505 = vmatpush1.msra.mxu0 %v2316
    %2506 = vmatprep.subr.mxu0 0.0
    %2507 = vmatpush1.msra.mxu0 %v2314
    %2508 = vmatprep.subr.mxu0 0.0
    %2509 = vmatpush1.msra.mxu0 %v2312
    %2510 = vmatprep.subr.mxu0 0.0
    %2511 = vmatpush1.msra.mxu0 %v2310
    %2512 = vmatprep.subr.mxu0 0.0
    %2513 = vmatpush2.msra.mxu0 %v2396
    %2514 = vmatprep.subr.mxu0 0.0
    %2515 = vmatpush2.msra.mxu0 %v2394
    %2516 = vmatprep.subr.mxu0 0.0
    %2517 = vmatpush2.msra.mxu0 %v2392
    %2518 = vmatprep.subr.mxu0 0.0
    %2519 = vmatpush2.msra.mxu0 %v2390
    %2520 = vmatprep.subr.mxu0 0.0
    %2521 = vmatpush2.msra.mxu0 %v2388
    %2522 = vmatprep.subr.mxu0 0.0
    %2523 = vmatpush2.msra.mxu0 %v2386
    %2524 = vmatprep.subr.mxu0 0.0
    %2525 = vmatpush2.msra.mxu0 %v2384
    %2526 = vmatprep.subr.mxu0 0.0
    %2527 = vmatpush2.msra.mxu0 %v2382
    %2528 = vmatprep.subr.mxu0 0.0
    %2529 = vmatpush2.msra.mxu0 %v2372
    %2530 = vmatprep.subr.mxu0 0.0
    %2531 = vmatpush2.msra.mxu0 %v2370
    %2532 = vmatprep.subr.mxu0 0.0
    %2533 = vmatpush2.msra.mxu0 %v2368
    %2534 = vmatprep.subr.mxu0 0.0
    %2535 = vmatpush2.msra.mxu0 %v2366
    %2536 = vmatprep.subr.mxu0 0.0
    %2537 = vmatpush2.msra.mxu0 %v2364
    %2538 = vmatprep.subr.mxu0 0.0
    %2539 = vmatpush2.msra.mxu0 %v2362
    %2540 = vmatprep.subr.mxu0 0.0
    %2541 = vmatpush2.msra.mxu0 %v2360
    %2542 = vmatprep.subr.mxu0 0.0
    %2543 = vmatpush2.msra.mxu0 %v2358
    %2544 = vmatprep.mubr.f32.mxu0 %v187
    %2545 = vmatmul.mubr.f32.gmra.mxu0 %v186
    %v2546 = vpop.f32.mrf.mxu0
    %v2547 = vadd.f32 %v2472, %v2546
    %v2548 = vpop.f32.mrf.mxu0
    %2549 = vmatprep.mubr.f32.mxu0 %v191
    %2550 = vmatmul.mubr.f32.gmra.mxu0 %v190
    %v2551 = vpop.f32.mrf.mxu0
    %v2552 = vadd.f32 %v2477, %v2551
    %v2553 = vpop.f32.mrf.mxu0
    %2554 = vdwg.mxu0
    %v2555 = vmax.f32 %v2547, 0.0
    %v2556 = vmax.f32 %v2552, 0.0
    %v2557 = vmax.f32 %v2555, 0.0
    %v2558 = vmax.f32 %v2556, 0.0
    %2561 = vrot.lane.b32.xlu0 %v2555, 127
    %v2562 = vpop.permute.xlu0 %2561
    %2563 = vrot.lane.b32.xlu0 %v2556, 127
    %v2564 = vpop.permute.xlu0 %2563
    %v2567 = vmax.f32 %v2555, %v2562
    %v2568 = vmax.f32 %v2556, %v2564
    %2571 = vrot.lane.b32.xlu0 %v2567, 127
    %v2572 = vpop.permute.xlu0 %2571
    %2573 = vrot.lane.b32.xlu0 %v2568, 127
    %v2574 = vpop.permute.xlu0 %2573
    %2577 = vrot.lane.b32.xlu0 %v2567, 126
    %v2578 = vpop.permute.xlu0 %2577
    %2579 = vrot.lane.b32.xlu0 %v2568, 126
    %v2580 = vpop.permute.xlu0 %2579
    %v2583 = vsel %vm477, %v2557, %v2567
    %v2584 = vsel %vm477, %v2558, %v2568
    %v2585 = vsel %vm482, %v2583, %v2572
    %v2586 = vsel %vm482, %v2584, %v2574
    %v2587 = vsel %vm487, %v2585, %v2578
    %v2588 = vsel %vm487, %v2586, %v2580
    %v2590 = vrot.slane %v2587, 1
    %2591 = vrot.lane.b32.xlu0 %v2590, 4
    %v2592 = vpop.permute.xlu0 %2591
    %v2594 = vrot.slane %v2587, 2
    %2595 = vrot.lane.b32.xlu0 %v2594, 8
    %v2596 = vpop.permute.xlu0 %2595
    %v2598 = vrot.slane %v2587, 3
    %2599 = vrot.lane.b32.xlu0 %v2598, 12
    %v2600 = vpop.permute.xlu0 %2599
    %v2602 = vrot.slane %v2587, 4
    %2603 = vrot.lane.b32.xlu0 %v2602, 16
    %v2604 = vpop.permute.xlu0 %2603
    %v2606 = vrot.slane %v2587, 5
    %2607 = vrot.lane.b32.xlu0 %v2606, 20
    %v2608 = vpop.permute.xlu0 %2607
    %v2610 = vrot.slane %v2587, 6
    %2611 = vrot.lane.b32.xlu0 %v2610, 24
    %v2612 = vpop.permute.xlu0 %2611
    %v2614 = vrot.slane %v2587, 7
    %2615 = vrot.lane.b32.xlu0 %v2614, 28
    %v2616 = vpop.permute.xlu0 %2615
    %2619 = vrot.lane.b32.xlu0 %v2588, 32
    %v2620 = vpop.permute.xlu0 %2619
    %v2622 = vrot.slane %v2588, 1
    %2623 = vrot.lane.b32.xlu0 %v2622, 36
    %v2624 = vpop.permute.xlu0 %2623
    %v2626 = vrot.slane %v2588, 2
    %2627 = vrot.lane.b32.xlu0 %v2626, 40
    %v2628 = vpop.permute.xlu0 %2627
    %v2630 = vrot.slane %v2588, 3
    %2631 = vrot.lane.b32.xlu0 %v2630, 44
    %v2632 = vpop.permute.xlu0 %2631
    %v2634 = vrot.slane %v2588, 4
    %2635 = vrot.lane.b32.xlu0 %v2634, 48
    %v2636 = vpop.permute.xlu0 %2635
    %v2638 = vrot.slane %v2588, 5
    %2639 = vrot.lane.b32.xlu0 %v2638, 52
    %v2640 = vpop.permute.xlu0 %2639
    %v2642 = vrot.slane %v2588, 6
    %2643 = vrot.lane.b32.xlu0 %v2642, 56
    %v2644 = vpop.permute.xlu0 %2643
    %v2646 = vrot.slane %v2588, 7
    %2647 = vrot.lane.b32.xlu0 %v2646, 60
    %v2648 = vpop.permute.xlu0 %2647
    %v2650 = vsel %vm211, %v2587, %v2592
    %v2651 = vsel %vm511, %v2650, %v2596
    %v2652 = vsel %vm1464, %v2651, %v2600
    %v2653 = vsel %vm1466, %v2652, %v2604
    %v2654 = vsel %vm213, %v2653, %v2608
    %v2655 = vsel %vm1469, %v2654, %v2612
    %v2656 = vsel %vm1471, %v2655, %v2616
    %v2657 = vsel %vm263, %v2656, %v2620
    %v2658 = vsel %vm1474, %v2657, %v2624
    %v2659 = vsel %vm1476, %v2658, %v2628
    %v2660 = vsel %vm1478, %v2659, %v2632
    %v2661 = vsel %vm1480, %v2660, %v2636
    %v2662 = vsel %vm1482, %v2661, %v2640
    %v2663 = vsel %vm1484, %v2662, %v2644
    %v2664 = vsel %vm1486, %v2663, %v2648
    %v2666 = vrot.slane %v2664, 7
    %vm2668 = vcmask 1040384
    %v2669 = vsel %vm2668, %v1487, %v2666
    %vm2670 = vcmask 517120
    %2671 = vst.msk [vmem:[#allocation17] sm:$0x3] %vm2670, %v2669
    %v2672 = vld [vmem:[#allocation14] sm:$0xff]
    %v2673 = vld [vmem:[#allocation14 + $0x8] sm:$0xff]
    %v2674 = vld [vmem:[#allocation14 + $0x10] sm:$0xff]
    %v2675 = vld [vmem:[#allocation14 + $0x18] sm:$0xff]
    %v2676 = vld [vmem:[#allocation14 + $0x20] sm:$0xff]
    %v2677 = vld [vmem:[#allocation14 + $0x28] sm:$0xff]
    %v2678 = vld [vmem:[#allocation14 + $0x30] sm:$0xff]
    %v2679 = vld [vmem:[#allocation14 + $0x38] sm:$0xff]
    %v2680 = vld [vmem:[#allocation14 + $0x40] sm:$0xff]
    %v2681 = vld [vmem:[#allocation14 + $0x48] sm:$0xff]
    %v2682 = vld [vmem:[#allocation14 + $0x50] sm:$0xff]
    %v2683 = vld [vmem:[#allocation14 + $0x58] sm:$0xff]
    %v2684 = vld [vmem:[#allocation14 + $0x60] sm:$0xff]
    %v2685 = vld [vmem:[#allocation14 + $0x68] sm:$0xff]
    %v2686 = vld [vmem:[#allocation14 + $0x70] sm:$0xff]
    %v2687 = vld [vmem:[#allocation14 + $0x78] sm:$0xff]
    %v2688 = vld [vmem:[%s8] sm:$0x3]
    %v2690 = vlaneseq
    %v2691 = vshrl.u32 %v2690, 7
    %v2692 = vsub.s32 0, %v2691
    %v2693 = vrot.slane %v2688, %v2692
    %v2694 = vlaneseq
    %v2695 = vshrl.u32 %v2694, 7
    %v2696 = vsub.s32 1, %v2695
    %v2697 = vrot.slane %v2688, %v2696
    %vm2700 = vcmask 523264
    %v2702 = vsel %vm2700, %v2669, 0
    %2704 = vmatprep.subr.mxu0 0.0
    %2705 = vmatpush1.msra.mxu0 0.0
    %2706 = vmatprep.subr.mxu0 0.0
    %2707 = vmatpush1.msra.mxu0 0.0
    %2708 = vmatprep.subr.mxu0 0.0
    %2709 = vmatpush1.msra.mxu0 0.0
    %2710 = vmatprep.subr.mxu0 0.0
    %2711 = vmatpush1.msra.mxu0 0.0
    %2712 = vmatprep.subr.mxu0 0.0
    %2713 = vmatpush1.msra.mxu0 0.0
    %2714 = vmatprep.subr.mxu0 0.0
    %2715 = vmatpush1.msra.mxu0 0.0
    %2716 = vmatprep.subr.mxu0 0.0
    %2717 = vmatpush1.msra.mxu0 0.0
    %2718 = vmatprep.subr.mxu0 0.0
    %2719 = vmatpush1.msra.mxu0 0.0
    %2720 = vmatprep.subr.mxu0 %v2687
    %2721 = vmatpush1.msra.mxu0 %v2686
    %2722 = vmatprep.subr.mxu0 %v2685
    %2723 = vmatpush1.msra.mxu0 %v2684
    %2724 = vmatprep.subr.mxu0 %v2683
    %2725 = vmatpush1.msra.mxu0 %v2682
    %2726 = vmatprep.subr.mxu0 %v2681
    %2727 = vmatpush1.msra.mxu0 %v2680
    %2728 = vmatprep.subr.mxu0 %v2679
    %2729 = vmatpush1.msra.mxu0 %v2678
    %2730 = vmatprep.subr.mxu0 %v2677
    %2731 = vmatpush1.msra.mxu0 %v2676
    %2732 = vmatprep.subr.mxu0 %v2675
    %2733 = vmatpush1.msra.mxu0 %v2674
    %2734 = vmatprep.subr.mxu0 %v2673
    %2735 = vmatpush1.msra.mxu0 %v2672
    %2736 = vmatprep.subr.mxu0 0.0
    %2737 = vmatpush2.msra.mxu0 0.0
    %2738 = vmatprep.subr.mxu0 0.0
    %2739 = vmatpush2.msra.mxu0 0.0
    %2740 = vmatprep.subr.mxu0 0.0
    %2741 = vmatpush2.msra.mxu0 0.0
    %2742 = vmatprep.subr.mxu0 0.0
    %2743 = vmatpush2.msra.mxu0 0.0
    %2744 = vmatprep.subr.mxu0 0.0
    %2745 = vmatpush2.msra.mxu0 0.0
    %2746 = vmatprep.subr.mxu0 0.0
    %2747 = vmatpush2.msra.mxu0 0.0
    %2748 = vmatprep.subr.mxu0 0.0
    %2749 = vmatpush2.msra.mxu0 0.0
    %2750 = vmatprep.subr.mxu0 0.0
    %2751 = vmatpush2.msra.mxu0 0.0
    %2752 = vmatprep.subr.mxu0 0.0
    %2753 = vmatpush2.msra.mxu0 0.0
    %2754 = vmatprep.subr.mxu0 0.0
    %2755 = vmatpush2.msra.mxu0 0.0
    %2756 = vmatprep.subr.mxu0 0.0
    %2757 = vmatpush2.msra.mxu0 0.0
    %2758 = vmatprep.subr.mxu0 0.0
    %2759 = vmatpush2.msra.mxu0 0.0
    %2760 = vmatprep.subr.mxu0 0.0
    %2761 = vmatpush2.msra.mxu0 0.0
    %2762 = vmatprep.subr.mxu0 0.0
    %2763 = vmatpush2.msra.mxu0 0.0
    %2764 = vmatprep.subr.mxu0 0.0
    %2765 = vmatpush2.msra.mxu0 0.0
    %2766 = vmatprep.subr.mxu0 0.0
    %2767 = vmatpush2.msra.mxu0 0.0
    %2768 = vmatprep.mubr.f32.mxu0 0.0
    %2769 = vmatmul.mubr.f32.gmra.mxu0 %v2702
    %v2770 = vpop.f32.mrf.mxu0
    %v2771 = vadd.f32 %v2693, %v2770
    %v2772 = vpop.f32.mrf.mxu0
    %v2773 = vadd.f32 %v2697, %v2772
    %2774 = vdwg.mxu0
    %v2775 = vmax.f32 %v2771, 0.0
    %v2776 = vmax.f32 %v2773, 0.0
    %v2777 = vld [vmem:[#allocation16] sm:$0xff]
    %v2778 = vld [vmem:[#allocation16 + $0x8] sm:$0xff]
    %v2779 = vld [vmem:[#allocation16 + $0x10] sm:$0xff]
    %v2780 = vld [vmem:[#allocation16 + $0x18] sm:$0xff]
    %v2781 = vld [vmem:[#allocation16 + $0x20] sm:$0xff]
    %v2782 = vld [vmem:[#allocation16 + $0x28] sm:$0xff]
    %v2783 = vld [vmem:[#allocation16 + $0x30] sm:$0xff]
    %v2784 = vld [vmem:[#allocation16 + $0x38] sm:$0xff]
    %v2785 = vld [vmem:[#allocation16 + $0x40] sm:$0xff]
    %v2786 = vld [vmem:[#allocation16 + $0x48] sm:$0xff]
    %v2787 = vld [vmem:[#allocation16 + $0x50] sm:$0xff]
    %v2788 = vld [vmem:[#allocation16 + $0x58] sm:$0xff]
    %v2789 = vld [vmem:[#allocation16 + $0x60] sm:$0xff]
    %v2790 = vld [vmem:[#allocation16 + $0x68] sm:$0xff]
    %v2791 = vld [vmem:[#allocation16 + $0x70] sm:$0xff]
    %v2792 = vld [vmem:[#allocation16 + $0x78] sm:$0xff]
    %v2793 = vld [vmem:[#allocation16 + $0x80] sm:$0xff]
    %v2794 = vld [vmem:[#allocation16 + $0x88] sm:$0xff]
    %v2795 = vld [vmem:[#allocation16 + $0x90] sm:$0xff]
    %v2796 = vld [vmem:[#allocation16 + $0x98] sm:$0xff]
    %v2797 = vld [vmem:[#allocation16 + $0xa0] sm:$0xff]
    %v2798 = vld [vmem:[#allocation16 + $0xa8] sm:$0xff]
    %v2799 = vld [vmem:[#allocation16 + $0xb0] sm:$0xff]
    %v2800 = vld [vmem:[#allocation16 + $0xb8] sm:$0xff]
    %v2801 = vld [vmem:[#allocation16 + $0xc0] sm:$0xff]
    %v2802 = vld [vmem:[#allocation16 + $0xc8] sm:$0xff]
    %v2803 = vld [vmem:[#allocation16 + $0xd0] sm:$0xff]
    %v2804 = vld [vmem:[#allocation16 + $0xd8] sm:$0xff]
    %v2805 = vld [vmem:[#allocation16 + $0xe0] sm:$0xff]
    %v2806 = vld [vmem:[#allocation16 + $0xe8] sm:$0xff]
    %v2807 = vld [vmem:[#allocation16 + $0xf0] sm:$0xff]
    %v2808 = vld [vmem:[#allocation16 + $0xf8] sm:$0xff]
    %v2809 = vld [vmem:[%s10] sm:$0x1]
    %v2811 = vlaneseq
    %v2812 = vshrl.u32 %v2811, 7
    %v2813 = vsub.s32 0, %v2812
    %v2814 = vrot.slane %v2809, %v2813
    %2816 = vmatprep.subr.mxu0 0.0
    %2817 = vmatpush1.msra.mxu0 %v2792
    %2818 = vmatprep.subr.mxu0 0.0
    %2819 = vmatpush1.msra.mxu0 %v2791
    %2820 = vmatprep.subr.mxu0 0.0
    %2821 = vmatpush1.msra.mxu0 %v2790
    %2822 = vmatprep.subr.mxu0 0.0
    %2823 = vmatpush1.msra.mxu0 %v2789
    %2824 = vmatprep.subr.mxu0 0.0
    %2825 = vmatpush1.msra.mxu0 %v2788
    %2826 = vmatprep.subr.mxu0 0.0
    %2827 = vmatpush1.msra.mxu0 %v2787
    %2828 = vmatprep.subr.mxu0 0.0
    %2829 = vmatpush1.msra.mxu0 %v2786
    %2830 = vmatprep.subr.mxu0 0.0
    %2831 = vmatpush1.msra.mxu0 %v2785
    %2832 = vmatprep.subr.mxu0 0.0
    %2833 = vmatpush1.msra.mxu0 %v2784
    %2834 = vmatprep.subr.mxu0 0.0
    %2835 = vmatpush1.msra.mxu0 %v2783
    %2836 = vmatprep.subr.mxu0 0.0
    %2837 = vmatpush1.msra.mxu0 %v2782
    %2838 = vmatprep.subr.mxu0 0.0
    %2839 = vmatpush1.msra.mxu0 %v2781
    %2840 = vmatprep.subr.mxu0 0.0
    %2841 = vmatpush1.msra.mxu0 %v2780
    %2842 = vmatprep.subr.mxu0 0.0
    %2843 = vmatpush1.msra.mxu0 %v2779
    %2844 = vmatprep.subr.mxu0 0.0
    %2845 = vmatpush1.msra.mxu0 %v2778
    %2846 = vmatprep.subr.mxu0 0.0
    %2847 = vmatpush1.msra.mxu0 %v2777
    %2848 = vmatprep.subr.mxu0 0.0
    %2849 = vmatpush2.msra.mxu0 %v2808
    %2850 = vmatprep.subr.mxu0 0.0
    %2851 = vmatpush2.msra.mxu0 %v2807
    %2852 = vmatprep.subr.mxu0 0.0
    %2853 = vmatpush2.msra.mxu0 %v2806
    %2854 = vmatprep.subr.mxu0 0.0
    %2855 = vmatpush2.msra.mxu0 %v2805
    %2856 = vmatprep.subr.mxu0 0.0
    %2857 = vmatpush2.msra.mxu0 %v2804
    %2858 = vmatprep.subr.mxu0 0.0
    %2859 = vmatpush2.msra.mxu0 %v2803
    %2860 = vmatprep.subr.mxu0 0.0
    %2861 = vmatpush2.msra.mxu0 %v2802
    %2862 = vmatprep.subr.mxu0 0.0
    %2863 = vmatpush2.msra.mxu0 %v2801
    %2864 = vmatprep.subr.mxu0 0.0
    %2865 = vmatpush2.msra.mxu0 %v2800
    %2866 = vmatprep.subr.mxu0 0.0
    %2867 = vmatpush2.msra.mxu0 %v2799
    %2868 = vmatprep.subr.mxu0 0.0
    %2869 = vmatpush2.msra.mxu0 %v2798
    %2870 = vmatprep.subr.mxu0 0.0
    %2871 = vmatpush2.msra.mxu0 %v2797
    %2872 = vmatprep.subr.mxu0 0.0
    %2873 = vmatpush2.msra.mxu0 %v2796
    %2874 = vmatprep.subr.mxu0 0.0
    %2875 = vmatpush2.msra.mxu0 %v2795
    %2876 = vmatprep.subr.mxu0 0.0
    %2877 = vmatpush2.msra.mxu0 %v2794
    %2878 = vmatprep.subr.mxu0 0.0
    %2879 = vmatpush2.msra.mxu0 %v2793
    %2880 = vmatprep.mubr.f32.mxu0 %v2776
    %2881 = vmatmul.mubr.f32.gmra.mxu0 %v2775
    %v2882 = vpop.f32.mrf.mxu0
    %v2883 = vadd.f32 %v2814, %v2882
    %v2884 = vpop.f32.mrf.mxu0
    %2885 = vdwg.mxu0
    %2886 = vst [vmem:[#allocation18] sm:$0x3] %v2883
    // Predicated region
    $region82: #{_lambda_.1} parent=1 // pred_check
      _
    $region83: #{_lambda_.1} parent=1 // pred_check_branch
      %2888 = sbr.rel (0) target = $region85
    $region84: #{_lambda_.1} parent=1 // pred_region
      %s2890 = ssub.s32 32, 32
      %2891 = vsyncadd [#allocation4], %s2890
      %s2893 = sshll.u32 [#allocation17], 4
      %s2894 = int_to_ptr.vmem [resolvable:$true] %s2893
      %2896 = dma.vmem_to_hbm [thread:$0]  %s2894, 32, %s11, [#allocation4]
    $region85: #{_lambda_.1} parent=1 // pred_fallthru
      _
    // Predicated region
    $region86: #{_lambda_.1} parent=1 // pred_check
      _
    $region87: #{_lambda_.1} parent=1 // pred_check_branch
      %2898 = sbr.rel (0) target = $region89
    $region88: #{_lambda_.1} parent=1 // pred_region
      %s2900 = ssub.s32 32, 32
      %2901 = vsyncadd [#allocation19], %s2900
      %s2903 = sshll.u32 [#allocation18], 4
      %s2904 = int_to_ptr.vmem [resolvable:$true] %s2903
      %2906 = dma.vmem_to_hbm [thread:$0]  %s2904, 32, %s12, [#allocation19]
    $region89: #{_lambda_.1} parent=1 // pred_fallthru
      _
    // Predicated region
    $region90: #{_lambda_.1} parent=1 // pred_check
      _
    $region91: #{_lambda_.1} parent=1 // pred_check_branch
      %2908 = sbr.rel (0) target = $region93
    $region92: #{_lambda_.1} parent=1 // pred_region
      %2909 = dma.done [#allocation4], 32
    $region93: #{_lambda_.1} parent=1 // pred_fallthru
      _
    // Predicated region
    $region94: #{_lambda_.1} parent=1 // pred_check
      _
    $region95: #{_lambda_.1} parent=1 // pred_check_branch
      %2911 = sbr.rel (0) target = $region97
    $region96: #{_lambda_.1} parent=1 // pred_region
      %2912 = dma.done [#allocation19], 32
    $region97: #{_lambda_.1} parent=1 // pred_fallthru
      _
    %2913 = vsyncpa [#allocation3], 1
    %2914 = vsyncpa [#allocation6], 1
    %2915 = vsyncpa [#allocation9], 1
    %2916 = vsyncpa [#allocation12], 1
    %2917 = vsyncpa [#allocation15], 1
    %2918 = vsyncpa [#allocation4], 1
    %2919 = vsyncpa [#allocation19], 1

</llo_original>
